<compile_context>
chip_gen: v7x
topology: tpu7x:2x2x1
jax: 0.10.0
libtpu: 0.0.40
codegen_flags: <defaults>
</compile_context>

<pallas_src>
import jax
import jax.numpy as jnp
from jax.experimental import pallas as pl
from jax.experimental.pallas import tpu as pltpu


def _round_up(n, m):
    return ((n + m - 1) // m) * m


# ---------------------------------------------------------------------------
# Kernel: fused 4x (Linear -> ReLU) forward for one batch tile.
# ---------------------------------------------------------------------------
def _mlp4_kernel(x_ref,
                 w1_ref, b1_ref,
                 w2_ref, b2_ref,
                 w3_ref, b3_ref,
                 w4_ref, b4_ref,
                 o_ref):
    h = x_ref[...]                       # bf16 tile, fed straight to the MXU
    for w_ref, b_ref in ((w1_ref, b1_ref), (w2_ref, b2_ref),
                         (w3_ref, b3_ref), (w4_ref, b4_ref)):
        # bf16 x bf16 on the MXU, f32 accumulation.
        h = jnp.dot(h.astype(w_ref.dtype), w_ref[...],
                    preferred_element_type=jnp.float32)
        h = jnp.maximum(h + b_ref[...], 0.0)       # bias broadcast + ReLU (f32)
    o_ref[...] = h.astype(o_ref.dtype)


# ---------------------------------------------------------------------------
# One-time parameter preparation (hoisted out of the per-call path).
# ---------------------------------------------------------------------------
def prepare_params(params, weight_dtype=jnp.bfloat16):
    """Pad + cast the Linear parameters once; reuse across forward calls.

    params: list of 4 (W, b) pairs, W: (in, out) f32, b: (1, out) f32.
            (W laid out as (in, out) so the kernel computes h @ W + b, which
             matches PyTorch's x @ W.T + b for W of shape (out, in).)
    """
    dims = [params[0][0].shape[0]] + [w.shape[1] for w, _ in params]
    dims_pad = [_round_up(d, 128) for d in dims]

    flat = []
    for li, (w, b) in enumerate(params):
        d_in, d_out = w.shape
        w_p = jnp.zeros((dims_pad[li], dims_pad[li + 1]), weight_dtype)
        w_p = w_p.at[:d_in, :d_out].set(w.astype(weight_dtype))
        b_p = jnp.zeros((1, dims_pad[li + 1]), jnp.float32)
        b_p = b_p.at[:, :d_out].set(b.astype(jnp.float32).reshape(1, -1))
        flat.extend([jax.device_put(w_p), jax.device_put(b_p)])

    return {
        "flat": tuple(flat),
        "in_dim": dims[0],
        "out_dim": dims[-1],
        "in_pad": dims_pad[0],
        "out_pad": dims_pad[-1],
    }


# ---------------------------------------------------------------------------
# Forward pass.
# ---------------------------------------------------------------------------
_WEIGHTS_SINGLE_BUFFER = None   # decided (and cached) on the first call


def _pallas_forward(x_p, flat_params, *, tm, in_pad, out_pad, b_pad,
                    out_dtype, parallel, single_buffer_weights):
    in_specs = [pl.BlockSpec((tm, in_pad), lambda i: (i, 0))]
    for p in flat_params:
        if single_buffer_weights:
            # Grid-invariant weights/biases: one VMEM buffer is enough.
            in_specs.append(pl.BlockSpec(p.shape, lambda i: (0, 0),
                                         pipeline_mode=pl.Buffered(1)))
        else:
            in_specs.append(pl.BlockSpec(p.shape, lambda i: (0, 0)))
    out_spec = pl.BlockSpec((tm, out_pad), lambda i: (i, 0))

    return pl.pallas_call(
        _mlp4_kernel,
        out_shape=jax.ShapeDtypeStruct((b_pad, out_pad), out_dtype),
        grid=(b_pad // tm,),
        in_specs=in_specs,
        out_specs=out_spec,
        compiler_params=pltpu.CompilerParams(
            dimension_semantics=("parallel",) if parallel else ("arbitrary",),
            vmem_limit_bytes=16 << 20),
    )(x_p, *flat_params)


def local_model_forward(x, prepared, *, tm=None, out_dtype=None):
    """x: (B, in_features) float32.  prepared: output of prepare_params()."""
    global _WEIGHTS_SINGLE_BUFFER

    B = x.shape[0]
    in_dim, out_dim = prepared["in_dim"], prepared["out_dim"]
    in_pad, out_pad = prepared["in_pad"], prepared["out_pad"]
    flat_params = prepared["flat"]
    if out_dtype is None:
        out_dtype = x.dtype            # f32 by default (matches the module)

    # Batch tile: fatter tiles amortize the ~0.35 us/step pipeline overhead.
    # tm=256 fits comfortably in 16 MiB VMEM on all generations with bf16
    # activations; pass tm=512 explicitly for large batches on v6e/v7x.
    if tm is None:
        if B >= 256:
            tm = 256
        elif B >= 128:
            tm = 128
        else:
            tm = _round_up(max(B, 8), 8)
    b_pad = _round_up(B, tm)
    num_steps = b_pad // tm

    # Only shard across TensorCores (v7x megacore) when there are enough grid
    # steps for the 2x compute to beat the replicated weight DMA.
    parallel = num_steps >= 4

    # Pad batch/features and cast activations to bf16 (halves the x-tile DMA;
    # padded rows/cols are mathematically inert given zero-padded params).
    x_p = jnp.zeros((b_pad, in_pad), jnp.bfloat16)
    x_p = x_p.at[:B, :in_dim].set(x.astype(jnp.bfloat16))

    kwargs = dict(tm=tm, in_pad=in_pad, out_pad=out_pad, b_pad=b_pad,
                  out_dtype=out_dtype, parallel=parallel)

    if _WEIGHTS_SINGLE_BUFFER is None:
        try:
            out_p = _pallas_forward(x_p, flat_params,
                                    single_buffer_weights=True, **kwargs)
            out_p = jax.block_until_ready(out_p)
            _WEIGHTS_SINGLE_BUFFER = True
        except Exception:
            # This build rejected Buffered(1); fall back to default buffering.
            _WEIGHTS_SINGLE_BUFFER = False
            out_p = _pallas_forward(x_p, flat_params,
                                    single_buffer_weights=False, **kwargs)
    else:
        out_p = _pallas_forward(x_p, flat_params,
                                single_buffer_weights=_WEIGHTS_SINGLE_BUFFER,
                                **kwargs)

    return out_p[:B, :out_dim]


# ---------------------------------------------------------------------------
# Test harness.
# ---------------------------------------------------------------------------
def make_params(key, dims):
    """Deterministic synthetic parameters for a Linear stack of `dims`."""
    params = []
    for i in range(len(dims) - 1):
        key, kw, kb = jax.random.split(key, 3)
        fan_in, fan_out = dims[i], dims[i + 1]
        scale = 1.0 / jnp.sqrt(jnp.float32(fan_in))
        w = jax.random.uniform(kw, (fan_in, fan_out), jnp.float32,
                               minval=-scale, maxval=scale)
        b = jax.random.uniform(kb, (1, fan_out), jnp.float32,
                               minval=-scale, maxval=scale)
        params.append((w, b))
    return params


def reference_forward(x, params):
    """Pure-JAX f32 reference (matches the PyTorch module semantics)."""
    h = x
    for w, b in params:
        h = jnp.maximum(h @ w + b, 0.0)
    return h


if __name__ == "__main__":
    key = jax.random.PRNGKey(0)
    batch = 8

    # client_number == 0 : image backbone (634 -> 320 -> 160 -> 80 -> 40)
    key, kx_i, kp_i = jax.random.split(key, 3)
    x_image = jax.random.normal(kx_i, (batch, 634), jnp.float32)
    params_image = make_params(kp_i, (634, 320, 160, 80, 40))
    prep_image = prepare_params(params_image)          # padded/cast once

    # client_number != 0 : text backbone (1000 -> 500 -> 250 -> 125 -> 60)
    key, kx_t, kp_t = jax.random.split(key, 3)
    x_text = jax.random.normal(kx_t, (batch, 1000), jnp.float32)
    params_text = make_params(kp_t, (1000, 500, 250, 125, 60))
    prep_text = prepare_params(params_text)             # padded/cast once

    out_image = jax.block_until_ready(local_model_forward(x_image, prep_image))
    out_text = jax.block_until_ready(local_model_forward(x_text, prep_text))
    # Second call exercises the cached (prepared-params) fast path.
    out_image2 = jax.block_until_ready(local_model_forward(x_image, prep_image))

    ref_image = reference_forward(x_image, params_image)
    ref_text = reference_forward(x_text, params_text)

    assert out_image.shape == (batch, 40), out_image.shape
    assert out_text.shape == (batch, 60), out_text.shape
    # bf16 weights + bf16 activations -> looser tolerance vs the f32 reference.
    assert jnp.allclose(out_image, ref_image, atol=5e-2, rtol=5e-2)
    assert jnp.allclose(out_text, ref_text, atol=5e-2, rtol=5e-2)
    assert jnp.allclose(out_image, out_image2)

    print("KERNEL_OK")
</pallas_src>

<mosaic_0001>
module attributes {stable_mosaic.version = 11 : i64} {
  func.func @_mlp4_kernel(%arg0: i32, %arg1: memref<8x640xbf16, #tpu.memory_space<vmem>>, %arg2: memref<640x384xbf16, #tpu.memory_space<vmem>>, %arg3: memref<1x384xf32, #tpu.memory_space<vmem>>, %arg4: memref<384x256xbf16, #tpu.memory_space<vmem>>, %arg5: memref<1x256xf32, #tpu.memory_space<vmem>>, %arg6: memref<256x128xbf16, #tpu.memory_space<vmem>>, %arg7: memref<1x128xf32, #tpu.memory_space<vmem>>, %arg8: memref<128x128xbf16, #tpu.memory_space<vmem>>, %arg9: memref<1x128xf32, #tpu.memory_space<vmem>>, %arg10: memref<8x128xf32, #tpu.memory_space<vmem>>) attributes {dimension_semantics = [#tpu.dimension_semantics<arbitrary>], iteration_bounds = array<i64: 1>, scalar_prefetch = 0 : i64, scratch_operands = 0 : i64, tpu.core_type = #tpu.core_type<tc>, window_params = [{transform_indices = @transform_0, window_bounds = array<i64: 8, 640>}, {pipeline_mode = #tpu.pipeline_mode<synchronous>, transform_indices = @transform_1, window_bounds = array<i64: 640, 384>}, {pipeline_mode = #tpu.pipeline_mode<synchronous>, transform_indices = @transform_2, window_bounds = array<i64: 1, 384>}, {pipeline_mode = #tpu.pipeline_mode<synchronous>, transform_indices = @transform_3, window_bounds = array<i64: 384, 256>}, {pipeline_mode = #tpu.pipeline_mode<synchronous>, transform_indices = @transform_4, window_bounds = array<i64: 1, 256>}, {pipeline_mode = #tpu.pipeline_mode<synchronous>, transform_indices = @transform_5, window_bounds = array<i64: 256, 128>}, {pipeline_mode = #tpu.pipeline_mode<synchronous>, transform_indices = @transform_6, window_bounds = array<i64: 1, 128>}, {pipeline_mode = #tpu.pipeline_mode<synchronous>, transform_indices = @transform_7, window_bounds = array<i64: 128, 128>}, {pipeline_mode = #tpu.pipeline_mode<synchronous>, transform_indices = @transform_8, window_bounds = array<i64: 1, 128>}, {transform_indices = @transform_9, window_bounds = array<i64: 8, 128>}]} {
    %c0 = arith.constant 0 : index
    %c0_0 = arith.constant 0 : index
    %0 = vector.load %arg1[%c0, %c0_0] : memref<8x640xbf16, #tpu.memory_space<vmem>>, vector<8x640xbf16>
    %c0_1 = arith.constant 0 : index
    %c0_2 = arith.constant 0 : index
    %1 = vector.load %arg2[%c0_1, %c0_2] : memref<640x384xbf16, #tpu.memory_space<vmem>>, vector<640x384xbf16>
    %cst = arith.constant dense<0.000000e+00> : vector<8x384xf32>
    %2 = tpu.matmul %0, %1, %cst {dimension_numbers = #tpu.dot_dimension_numbers<[1], [0], [0], [1], [0, 0, 1, 1], [], []>} : vector<8x640xbf16>, vector<640x384xbf16>, vector<8x384xf32> -> vector<8x384xf32>
    %c0_3 = arith.constant 0 : index
    %c0_4 = arith.constant 0 : index
    %3 = vector.load %arg3[%c0_3, %c0_4] : memref<1x384xf32, #tpu.memory_space<vmem>>, vector<1x384xf32>
    %4 = vector.broadcast %3 : vector<1x384xf32> to vector<8x384xf32>
    %5 = arith.addf %2, %4 : vector<8x384xf32>
    %cst_5 = arith.constant 0.000000e+00 : f32
    %6 = vector.broadcast %cst_5 : f32 to vector<8x384xf32>
    %7 = arith.maximumf %5, %6 : vector<8x384xf32>
    %8 = arith.truncf %7 : vector<8x384xf32> to vector<8x384xbf16>
    %c0_6 = arith.constant 0 : index
    %c0_7 = arith.constant 0 : index
    %9 = vector.load %arg4[%c0_6, %c0_7] : memref<384x256xbf16, #tpu.memory_space<vmem>>, vector<384x256xbf16>
    %cst_8 = arith.constant dense<0.000000e+00> : vector<8x256xf32>
    %10 = tpu.matmul %8, %9, %cst_8 {dimension_numbers = #tpu.dot_dimension_numbers<[1], [0], [0], [1], [0, 0, 1, 1], [], []>} : vector<8x384xbf16>, vector<384x256xbf16>, vector<8x256xf32> -> vector<8x256xf32>
    %c0_9 = arith.constant 0 : index
    %c0_10 = arith.constant 0 : index
    %11 = vector.load %arg5[%c0_9, %c0_10] : memref<1x256xf32, #tpu.memory_space<vmem>>, vector<1x256xf32>
    %12 = vector.broadcast %11 : vector<1x256xf32> to vector<8x256xf32>
    %13 = arith.addf %10, %12 : vector<8x256xf32>
    %cst_11 = arith.constant 0.000000e+00 : f32
    %14 = vector.broadcast %cst_11 : f32 to vector<8x256xf32>
    %15 = arith.maximumf %13, %14 : vector<8x256xf32>
    %16 = arith.truncf %15 : vector<8x256xf32> to vector<8x256xbf16>
    %c0_12 = arith.constant 0 : index
    %c0_13 = arith.constant 0 : index
    %17 = vector.load %arg6[%c0_12, %c0_13] : memref<256x128xbf16, #tpu.memory_space<vmem>>, vector<256x128xbf16>
    %cst_14 = arith.constant dense<0.000000e+00> : vector<8x128xf32>
    %18 = tpu.matmul %16, %17, %cst_14 {dimension_numbers = #tpu.dot_dimension_numbers<[1], [0], [0], [1], [0, 0, 1, 1], [], []>} : vector<8x256xbf16>, vector<256x128xbf16>, vector<8x128xf32> -> vector<8x128xf32>
    %c0_15 = arith.constant 0 : index
    %c0_16 = arith.constant 0 : index
    %19 = vector.load %arg7[%c0_15, %c0_16] : memref<1x128xf32, #tpu.memory_space<vmem>>, vector<1x128xf32>
    %20 = vector.broadcast %19 : vector<1x128xf32> to vector<8x128xf32>
    %21 = arith.addf %18, %20 : vector<8x128xf32>
    %cst_17 = arith.constant 0.000000e+00 : f32
    %22 = vector.broadcast %cst_17 : f32 to vector<8x128xf32>
    %23 = arith.maximumf %21, %22 : vector<8x128xf32>
    %24 = arith.truncf %23 : vector<8x128xf32> to vector<8x128xbf16>
    %c0_18 = arith.constant 0 : index
    %c0_19 = arith.constant 0 : index
    %25 = vector.load %arg8[%c0_18, %c0_19] : memref<128x128xbf16, #tpu.memory_space<vmem>>, vector<128x128xbf16>
    %cst_20 = arith.constant dense<0.000000e+00> : vector<8x128xf32>
    %26 = tpu.matmul %24, %25, %cst_20 {dimension_numbers = #tpu.dot_dimension_numbers<[1], [0], [0], [1], [0, 0, 1, 1], [], []>} : vector<8x128xbf16>, vector<128x128xbf16>, vector<8x128xf32> -> vector<8x128xf32>
    %c0_21 = arith.constant 0 : index
    %c0_22 = arith.constant 0 : index
    %27 = vector.load %arg9[%c0_21, %c0_22] : memref<1x128xf32, #tpu.memory_space<vmem>>, vector<1x128xf32>
    %28 = vector.broadcast %27 : vector<1x128xf32> to vector<8x128xf32>
    %29 = arith.addf %26, %28 : vector<8x128xf32>
    %cst_23 = arith.constant 0.000000e+00 : f32
    %30 = vector.broadcast %cst_23 : f32 to vector<8x128xf32>
    %31 = arith.maximumf %29, %30 : vector<8x128xf32>
    %c0_24 = arith.constant 0 : index
    %c0_25 = arith.constant 0 : index
    %32 = vector.load %arg10[%c0_24, %c0_25] : memref<8x128xf32, #tpu.memory_space<vmem>>, vector<8x128xf32>
    tpu.vector_store %arg10[%c0_24, %c0_25], %31 {strides = array<i32>} : memref<8x128xf32, #tpu.memory_space<vmem>>, vector<8x128xf32>,
    return
  }
  func.func @transform_0(%arg0: i32) -> (i32, i32) {
    %c0_i32 = arith.constant 0 : i32
    %c0_i32_0 = arith.constant 0 : i32
    return %arg0, %c0_i32 : i32, i32
  }
  func.func @transform_1(%arg0: i32) -> (i32, i32) {
    %c0_i32 = arith.constant 0 : i32
    %c0_i32_0 = arith.constant 0 : i32
    %c0_i32_1 = arith.constant 0 : i32
    return %c0_i32, %c0_i32_0 : i32, i32
  }
  func.func @transform_2(%arg0: i32) -> (i32, i32) {
    %c0_i32 = arith.constant 0 : i32
    %c0_i32_0 = arith.constant 0 : i32
    %c0_i32_1 = arith.constant 0 : i32
    return %c0_i32, %c0_i32_0 : i32, i32
  }
  func.func @transform_3(%arg0: i32) -> (i32, i32) {
    %c0_i32 = arith.constant 0 : i32
    %c0_i32_0 = arith.constant 0 : i32
    %c0_i32_1 = arith.constant 0 : i32
    return %c0_i32, %c0_i32_0 : i32, i32
  }
  func.func @transform_4(%arg0: i32) -> (i32, i32) {
    %c0_i32 = arith.constant 0 : i32
    %c0_i32_0 = arith.constant 0 : i32
    %c0_i32_1 = arith.constant 0 : i32
    return %c0_i32, %c0_i32_0 : i32, i32
  }
  func.func @transform_5(%arg0: i32) -> (i32, i32) {
    %c0_i32 = arith.constant 0 : i32
    %c0_i32_0 = arith.constant 0 : i32
    %c0_i32_1 = arith.constant 0 : i32
    return %c0_i32, %c0_i32_0 : i32, i32
  }
  func.func @transform_6(%arg0: i32) -> (i32, i32) {
    %c0_i32 = arith.constant 0 : i32
    %c0_i32_0 = arith.constant 0 : i32
    %c0_i32_1 = arith.constant 0 : i32
    return %c0_i32, %c0_i32_0 : i32, i32
  }
  func.func @transform_7(%arg0: i32) -> (i32, i32) {
    %c0_i32 = arith.constant 0 : i32
    %c0_i32_0 = arith.constant 0 : i32
    %c0_i32_1 = arith.constant 0 : i32
    return %c0_i32, %c0_i32_0 : i32, i32
  }
  func.func @transform_8(%arg0: i32) -> (i32, i32) {
    %c0_i32 = arith.constant 0 : i32
    %c0_i32_0 = arith.constant 0 : i32
    %c0_i32_1 = arith.constant 0 : i32
    return %c0_i32, %c0_i32_0 : i32, i32
  }
  func.func @transform_9(%arg0: i32) -> (i32, i32) {
    %c0_i32 = arith.constant 0 : i32
    %c0_i32_0 = arith.constant 0 : i32
    return %arg0, %c0_i32 : i32, i32
  }
}

module attributes {stable_mosaic.version = 11 : i64} {
  func.func @_mlp4_kernel(%arg0: i32, %arg1: memref<8x640xbf16, #tpu.memory_space<vmem>>, %arg2: memref<640x384xbf16, #tpu.memory_space<vmem>>, %arg3: memref<1x384xf32, #tpu.memory_space<vmem>>, %arg4: memref<384x256xbf16, #tpu.memory_space<vmem>>, %arg5: memref<1x256xf32, #tpu.memory_space<vmem>>, %arg6: memref<256x128xbf16, #tpu.memory_space<vmem>>, %arg7: memref<1x128xf32, #tpu.memory_space<vmem>>, %arg8: memref<128x128xbf16, #tpu.memory_space<vmem>>, %arg9: memref<1x128xf32, #tpu.memory_space<vmem>>, %arg10: memref<8x128xf32, #tpu.memory_space<vmem>>) attributes {dimension_semantics = [#tpu.dimension_semantics<arbitrary>], iteration_bounds = array<i64: 1>, scalar_prefetch = 0 : i64, scratch_operands = 0 : i64, tpu.core_type = #tpu.core_type<tc>, window_params = [{transform_indices = @transform_0, window_bounds = array<i64: 8, 640>}, {pipeline_mode = #tpu.pipeline_mode<synchronous>, transform_indices = @transform_1, window_bounds = array<i64: 640, 384>}, {pipeline_mode = #tpu.pipeline_mode<synchronous>, transform_indices = @transform_2, window_bounds = array<i64: 1, 384>}, {pipeline_mode = #tpu.pipeline_mode<synchronous>, transform_indices = @transform_3, window_bounds = array<i64: 384, 256>}, {pipeline_mode = #tpu.pipeline_mode<synchronous>, transform_indices = @transform_4, window_bounds = array<i64: 1, 256>}, {pipeline_mode = #tpu.pipeline_mode<synchronous>, transform_indices = @transform_5, window_bounds = array<i64: 256, 128>}, {pipeline_mode = #tpu.pipeline_mode<synchronous>, transform_indices = @transform_6, window_bounds = array<i64: 1, 128>}, {pipeline_mode = #tpu.pipeline_mode<synchronous>, transform_indices = @transform_7, window_bounds = array<i64: 128, 128>}, {pipeline_mode = #tpu.pipeline_mode<synchronous>, transform_indices = @transform_8, window_bounds = array<i64: 1, 128>}, {transform_indices = @transform_9, window_bounds = array<i64: 8, 128>}]} {
    %c0 = arith.constant 0 : index
    %c0_0 = arith.constant 0 : index
    %0 = vector.load %arg1[%c0, %c0_0] : memref<8x640xbf16, #tpu.memory_space<vmem>>, vector<8x640xbf16>
    %c0_1 = arith.constant 0 : index
    %c0_2 = arith.constant 0 : index
    %1 = vector.load %arg2[%c0_1, %c0_2] : memref<640x384xbf16, #tpu.memory_space<vmem>>, vector<640x384xbf16>
    %cst = arith.constant dense<0.000000e+00> : vector<8x384xf32>
    %2 = tpu.matmul %0, %1, %cst {dimension_numbers = #tpu.dot_dimension_numbers<[1], [0], [0], [1], [0, 0, 1, 1], [], []>} : vector<8x640xbf16>, vector<640x384xbf16>, vector<8x384xf32> -> vector<8x384xf32>
    %c0_3 = arith.constant 0 : index
    %c0_4 = arith.constant 0 : index
    %3 = vector.load %arg3[%c0_3, %c0_4] : memref<1x384xf32, #tpu.memory_space<vmem>>, vector<1x384xf32>
    %4 = vector.broadcast %3 : vector<1x384xf32> to vector<8x384xf32>
    %5 = arith.addf %2, %4 : vector<8x384xf32>
    %cst_5 = arith.constant 0.000000e+00 : f32
    %6 = vector.broadcast %cst_5 : f32 to vector<8x384xf32>
    %7 = arith.maximumf %5, %6 : vector<8x384xf32>
    %8 = arith.truncf %7 : vector<8x384xf32> to vector<8x384xbf16>
    %c0_6 = arith.constant 0 : index
    %c0_7 = arith.constant 0 : index
    %9 = vector.load %arg4[%c0_6, %c0_7] : memref<384x256xbf16, #tpu.memory_space<vmem>>, vector<384x256xbf16>
    %cst_8 = arith.constant dense<0.000000e+00> : vector<8x256xf32>
    %10 = tpu.matmul %8, %9, %cst_8 {dimension_numbers = #tpu.dot_dimension_numbers<[1], [0], [0], [1], [0, 0, 1, 1], [], []>} : vector<8x384xbf16>, vector<384x256xbf16>, vector<8x256xf32> -> vector<8x256xf32>
    %c0_9 = arith.constant 0 : index
    %c0_10 = arith.constant 0 : index
    %11 = vector.load %arg5[%c0_9, %c0_10] : memref<1x256xf32, #tpu.memory_space<vmem>>, vector<1x256xf32>
    %12 = vector.broadcast %11 : vector<1x256xf32> to vector<8x256xf32>
    %13 = arith.addf %10, %12 : vector<8x256xf32>
    %cst_11 = arith.constant 0.000000e+00 : f32
    %14 = vector.broadcast %cst_11 : f32 to vector<8x256xf32>
    %15 = arith.maximumf %13, %14 : vector<8x256xf32>
    %16 = arith.truncf %15 : vector<8x256xf32> to vector<8x256xbf16>
    %c0_12 = arith.constant 0 : index
    %c0_13 = arith.constant 0 : index
    %17 = vector.load %arg6[%c0_12, %c0_13] : memref<256x128xbf16, #tpu.memory_space<vmem>>, vector<256x128xbf16>
    %cst_14 = arith.constant dense<0.000000e+00> : vector<8x128xf32>
    %18 = tpu.matmul %16, %17, %cst_14 {dimension_numbers = #tpu.dot_dimension_numbers<[1], [0], [0], [1], [0, 0, 1, 1], [], []>} : vector<8x256xbf16>, vector<256x128xbf16>, vector<8x128xf32> -> vector<8x128xf32>
    %c0_15 = arith.constant 0 : index
    %c0_16 = arith.constant 0 : index
    %19 = vector.load %arg7[%c0_15, %c0_16] : memref<1x128xf32, #tpu.memory_space<vmem>>, vector<1x128xf32>
    %20 = vector.broadcast %19 : vector<1x128xf32> to vector<8x128xf32>
    %21 = arith.addf %18, %20 : vector<8x128xf32>
    %cst_17 = arith.constant 0.000000e+00 : f32
    %22 = vector.broadcast %cst_17 : f32 to vector<8x128xf32>
    %23 = arith.maximumf %21, %22 : vector<8x128xf32>
    %24 = arith.truncf %23 : vector<8x128xf32> to vector<8x128xbf16>
    %c0_18 = arith.constant 0 : index
    %c0_19 = arith.constant 0 : index
    %25 = vector.load %arg8[%c0_18, %c0_19] : memref<128x128xbf16, #tpu.memory_space<vmem>>, vector<128x128xbf16>
    %cst_20 = arith.constant dense<0.000000e+00> : vector<8x128xf32>
    %26 = tpu.matmul %24, %25, %cst_20 {dimension_numbers = #tpu.dot_dimension_numbers<[1], [0], [0], [1], [0, 0, 1, 1], [], []>} : vector<8x128xbf16>, vector<128x128xbf16>, vector<8x128xf32> -> vector<8x128xf32>
    %c0_21 = arith.constant 0 : index
    %c0_22 = arith.constant 0 : index
    %27 = vector.load %arg9[%c0_21, %c0_22] : memref<1x128xf32, #tpu.memory_space<vmem>>, vector<1x128xf32>
    %28 = vector.broadcast %27 : vector<1x128xf32> to vector<8x128xf32>
    %29 = arith.addf %26, %28 : vector<8x128xf32>
    %cst_23 = arith.constant 0.000000e+00 : f32
    %30 = vector.broadcast %cst_23 : f32 to vector<8x128xf32>
    %31 = arith.maximumf %29, %30 : vector<8x128xf32>
    %c0_24 = arith.constant 0 : index
    %c0_25 = arith.constant 0 : index
    %32 = vector.load %arg10[%c0_24, %c0_25] : memref<8x128xf32, #tpu.memory_space<vmem>>, vector<8x128xf32>
    tpu.vector_store %arg10[%c0_24, %c0_25], %31 {strides = array<i32>} : memref<8x128xf32, #tpu.memory_space<vmem>>, vector<8x128xf32>,
    return
  }
  func.func @transform_0(%arg0: i32) -> (i32, i32) {
    %c0_i32 = arith.constant 0 : i32
    %c0_i32_0 = arith.constant 0 : i32
    return %arg0, %c0_i32 : i32, i32
  }
  func.func @transform_1(%arg0: i32) -> (i32, i32) {
    %c0_i32 = arith.constant 0 : i32
    %c0_i32_0 = arith.constant 0 : i32
    %c0_i32_1 = arith.constant 0 : i32
    return %c0_i32, %c0_i32_0 : i32, i32
  }
  func.func @transform_2(%arg0: i32) -> (i32, i32) {
    %c0_i32 = arith.constant 0 : i32
    %c0_i32_0 = arith.constant 0 : i32
    %c0_i32_1 = arith.constant 0 : i32
    return %c0_i32, %c0_i32_0 : i32, i32
  }
  func.func @transform_3(%arg0: i32) -> (i32, i32) {
    %c0_i32 = arith.constant 0 : i32
    %c0_i32_0 = arith.constant 0 : i32
    %c0_i32_1 = arith.constant 0 : i32
    return %c0_i32, %c0_i32_0 : i32, i32
  }
  func.func @transform_4(%arg0: i32) -> (i32, i32) {
    %c0_i32 = arith.constant 0 : i32
    %c0_i32_0 = arith.constant 0 : i32
    %c0_i32_1 = arith.constant 0 : i32
    return %c0_i32, %c0_i32_0 : i32, i32
  }
  func.func @transform_5(%arg0: i32) -> (i32, i32) {
    %c0_i32 = arith.constant 0 : i32
    %c0_i32_0 = arith.constant 0 : i32
    %c0_i32_1 = arith.constant 0 : i32
    return %c0_i32, %c0_i32_0 : i32, i32
  }
  func.func @transform_6(%arg0: i32) -> (i32, i32) {
    %c0_i32 = arith.constant 0 : i32
    %c0_i32_0 = arith.constant 0 : i32
    %c0_i32_1 = arith.constant 0 : i32
    return %c0_i32, %c0_i32_0 : i32, i32
  }
  func.func @transform_7(%arg0: i32) -> (i32, i32) {
    %c0_i32 = arith.constant 0 : i32
    %c0_i32_0 = arith.constant 0 : i32
    %c0_i32_1 = arith.constant 0 : i32
    return %c0_i32, %c0_i32_0 : i32, i32
  }
  func.func @transform_8(%arg0: i32) -> (i32, i32) {
    %c0_i32 = arith.constant 0 : i32
    %c0_i32_0 = arith.constant 0 : i32
    %c0_i32_1 = arith.constant 0 : i32
    return %c0_i32, %c0_i32_0 : i32, i32
  }
  func.func @transform_9(%arg0: i32) -> (i32, i32) {
    %c0_i32 = arith.constant 0 : i32
    %c0_i32_0 = arith.constant 0 : i32
    return %arg0, %c0_i32 : i32, i32
  }
}

</mosaic_0001>

<llo_original>
// kernel: tpu_custom_call.1
$region0: #{tpu_custom_call.1}
  #allocation0 [shape = 'u32[]', space=smem, size = 0x4, offset = 0x4, fixed_abs, tag = 'smem constant byte address 0x4 - core index']
  #allocation1 [shape = 'u32[144,128]{1,0:T(1,128)}', space=vmem, size = 0x12000, scoped, tag = 'internal scratch']
  %s0 = inlined_call_operand.hbm [shape: bf16[8,640], index: 0, kind: input, shape index: {}]
  %s1 = inlined_call_operand.hbm [shape: bf16[640,384], index: 1, kind: input, shape index: {}]
  %s2 = inlined_call_operand.vmem [shape: f32[1,384], index: 2, kind: input, shape index: {}]
  %s3 = inlined_call_operand.hbm [shape: bf16[384,256], index: 3, kind: input, shape index: {}]
  %s4 = inlined_call_operand.vmem [shape: f32[1,256], index: 4, kind: input, shape index: {}]
  %s5 = inlined_call_operand.hbm [shape: bf16[256,128], index: 5, kind: input, shape index: {}]
  %s6 = inlined_call_operand.vmem [shape: f32[1,128], index: 6, kind: input, shape index: {}]
  %s7 = inlined_call_operand.hbm [shape: bf16[128,128], index: 7, kind: input, shape index: {}]
  %s8 = inlined_call_operand.vmem [shape: f32[1,128], index: 8, kind: input, shape index: {}]
  %s9 = inlined_call_operand.hbm [shape: f32[8,128], index: 9, kind: output, shape index: {}]
  %s10 = sld [smem:[#allocation0]]
  $region66: #{tpu_custom_call.1} parent=0
    _
  %s12 = ssub.s32 1, %s10
  %s13 = scalar_select 0, %s12, %s10
  $region1: #{tpu_custom_call.1} parent=0
    #allocation2 [shape = 'u8[10240]{0}', space=vmem, size = 0x2800, scoped, tag = 'input window, operand 0, single buffered']
    #allocation3 [shape = 's32[1]{0}', space=sflag, size = 0x4, scoped, tag = 'scoped memory for tpu_custom_call.1']
    #allocation4 [shape = 's32[1]{0}', space=sflag, size = 0x4, scoped, tag = 'scoped memory for tpu_custom_call.1']
    #allocation5 [shape = 'u8[491520]{0}', space=vmem, size = 0x78000, scoped, tag = 'input window, operand 1, single buffered']
    #allocation6 [shape = 's32[1]{0}', space=sflag, size = 0x4, scoped, tag = 'scoped memory for tpu_custom_call.1']
    #allocation7 [shape = 'u8[196608]{0}', space=vmem, size = 0x30000, scoped, tag = 'input window, operand 3, single buffered']
    #allocation8 [shape = 'u8[65536]{0}', space=vmem, size = 0x10000, scoped, tag = 'input window, operand 5, single buffered']
    #allocation9 [shape = 's32[1]{0}', space=sflag, size = 0x4, scoped, tag = 'scoped memory for tpu_custom_call.1']
    #allocation10 [shape = 'u8[32768]{0}', space=vmem, size = 0x8000, scoped, tag = 'input window, operand 7, single buffered']
    #allocation11 [shape = 'u8[4096]{0}', space=vmem, size = 0x1000, scoped, tag = 'output window, operand 0, single buffered']
    %14 = vsyncpa [#allocation3], 0
    %15 = vsyncpa [#allocation6], 0
    %16 = vsyncpa [#allocation9], 0
    %17 = vsyncpa [#allocation4], 0
    // Predicated region
    $region2: #{tpu_custom_call.1} parent=1 // pred_check
      _
    $region3: #{tpu_custom_call.1} parent=1 // pred_check_branch
      %19 = sbr.rel (0) target = $region5
    $region4: #{tpu_custom_call.1} parent=1 // pred_region
      %s21 = ssub.s32 320, 320
      %22 = vsyncadd [#allocation3], %s21
      %s24 = sshll.u32 [#allocation2], 4
      %s25 = int_to_ptr.vmem [resolvable:$true] %s24
      %27 = dma.hbm_to_vmem [thread:$0]  %s0, 320, %s25, [#allocation3]
    $region5: #{tpu_custom_call.1} parent=1 // pred_fallthru
      _
    // Predicated region
    $region6: #{tpu_custom_call.1} parent=1 // pred_check
      _
    $region7: #{tpu_custom_call.1} parent=1 // pred_check_branch
      %29 = sbr.rel (0) target = $region9
    $region8: #{tpu_custom_call.1} parent=1 // pred_region
      %s31 = ssub.s32 15360, 15360
      %32 = vsyncadd [#allocation6], %s31
      %s33 = sshll.u32 [#allocation5], 4
      %s34 = int_to_ptr.vmem [resolvable:$true] %s33
      %39 = dma.hbm_to_vmem [thread:$0]  %s1, 15360, %s34, [#allocation6], 192, 192, 12
    $region9: #{tpu_custom_call.1} parent=1 // pred_fallthru
      _
    // Predicated region
    $region10: #{tpu_custom_call.1} parent=1 // pred_check
      _
    $region11: #{tpu_custom_call.1} parent=1 // pred_check_branch
      %41 = sbr.rel (0) target = $region13
    $region12: #{tpu_custom_call.1} parent=1 // pred_region
      _
    $region13: #{tpu_custom_call.1} parent=1 // pred_fallthru
      _
    // Predicated region
    $region14: #{tpu_custom_call.1} parent=1 // pred_check
      _
    $region15: #{tpu_custom_call.1} parent=1 // pred_check_branch
      %43 = sbr.rel (0) target = $region17
    $region16: #{tpu_custom_call.1} parent=1 // pred_region
      %s45 = ssub.s32 6144, 6144
      %46 = vsyncadd [#allocation6], %s45
      %s47 = sshll.u32 [#allocation7], 4
      %s48 = int_to_ptr.vmem [resolvable:$true] %s47
      %53 = dma.hbm_to_vmem [thread:$0]  %s3, 6144, %s48, [#allocation6], 128, 128, 8
    $region17: #{tpu_custom_call.1} parent=1 // pred_fallthru
      _
    // Predicated region
    $region18: #{tpu_custom_call.1} parent=1 // pred_check
      _
    $region19: #{tpu_custom_call.1} parent=1 // pred_check_branch
      %55 = sbr.rel (0) target = $region21
    $region20: #{tpu_custom_call.1} parent=1 // pred_region
      _
    $region21: #{tpu_custom_call.1} parent=1 // pred_fallthru
      _
    // Predicated region
    $region22: #{tpu_custom_call.1} parent=1 // pred_check
      _
    $region23: #{tpu_custom_call.1} parent=1 // pred_check_branch
      %57 = sbr.rel (0) target = $region25
    $region24: #{tpu_custom_call.1} parent=1 // pred_region
      %s59 = ssub.s32 2048, 2048
      %60 = vsyncadd [#allocation9], %s59
      %s61 = sshll.u32 [#allocation8], 4
      %s62 = int_to_ptr.vmem [resolvable:$true] %s61
      %67 = dma.hbm_to_vmem [thread:$0]  %s5, 2048, %s62, [#allocation9], 64, 64, 4
    $region25: #{tpu_custom_call.1} parent=1 // pred_fallthru
      _
    // Predicated region
    $region26: #{tpu_custom_call.1} parent=1 // pred_check
      _
    $region27: #{tpu_custom_call.1} parent=1 // pred_check_branch
      %69 = sbr.rel (0) target = $region29
    $region28: #{tpu_custom_call.1} parent=1 // pred_region
      _
    $region29: #{tpu_custom_call.1} parent=1 // pred_fallthru
      _
    // Predicated region
    $region30: #{tpu_custom_call.1} parent=1 // pred_check
      _
    $region31: #{tpu_custom_call.1} parent=1 // pred_check_branch
      %71 = sbr.rel (0) target = $region33
    $region32: #{tpu_custom_call.1} parent=1 // pred_region
      %s73 = ssub.s32 1024, 1024
      %74 = vsyncadd [#allocation9], %s73
      %s75 = sshll.u32 [#allocation10], 4
      %s76 = int_to_ptr.vmem [resolvable:$true] %s75
      %81 = dma.hbm_to_vmem [thread:$0]  %s7, 1024, %s76, [#allocation9], 64, 64, 4
    $region33: #{tpu_custom_call.1} parent=1 // pred_fallthru
      _
    // Predicated region
    $region34: #{tpu_custom_call.1} parent=1 // pred_check
      _
    $region35: #{tpu_custom_call.1} parent=1 // pred_check_branch
      %83 = sbr.rel (0) target = $region37
    $region36: #{tpu_custom_call.1} parent=1 // pred_region
      _
    $region37: #{tpu_custom_call.1} parent=1 // pred_fallthru
      _
    // Predicated region
    $region38: #{tpu_custom_call.1} parent=1 // pred_check
      _
    $region39: #{tpu_custom_call.1} parent=1 // pred_check_branch
      %85 = sbr.rel (0) target = $region41
    $region40: #{tpu_custom_call.1} parent=1 // pred_region
      %86 = dma.done [#allocation3], 320
    $region41: #{tpu_custom_call.1} parent=1 // pred_fallthru
      _
    // Predicated region
    $region42: #{tpu_custom_call.1} parent=1 // pred_check
      _
    $region43: #{tpu_custom_call.1} parent=1 // pred_check_branch
      %88 = sbr.rel (0) target = $region45
    $region44: #{tpu_custom_call.1} parent=1 // pred_region
      %89 = dma.done [#allocation6], 15360
    $region45: #{tpu_custom_call.1} parent=1 // pred_fallthru
      _
    // Predicated region
    $region46: #{tpu_custom_call.1} parent=1 // pred_check
      _
    $region47: #{tpu_custom_call.1} parent=1 // pred_check_branch
      %91 = sbr.rel (0) target = $region49
    $region48: #{tpu_custom_call.1} parent=1 // pred_region
      %92 = dma.done [#allocation6], 6144
    $region49: #{tpu_custom_call.1} parent=1 // pred_fallthru
      _
    // Predicated region
    $region50: #{tpu_custom_call.1} parent=1 // pred_check
      _
    $region51: #{tpu_custom_call.1} parent=1 // pred_check_branch
      %94 = sbr.rel (0) target = $region53
    $region52: #{tpu_custom_call.1} parent=1 // pred_region
      %95 = dma.done [#allocation9], 2048
    $region53: #{tpu_custom_call.1} parent=1 // pred_fallthru
      _
    // Predicated region
    $region54: #{tpu_custom_call.1} parent=1 // pred_check
      _
    $region55: #{tpu_custom_call.1} parent=1 // pred_check_branch
      %97 = sbr.rel (0) target = $region57
    $region56: #{tpu_custom_call.1} parent=1 // pred_region
      %98 = dma.done [#allocation9], 1024
    $region57: #{tpu_custom_call.1} parent=1 // pred_fallthru
      _
    %v100 = vld [vmem:[#allocation2] sm:$0xff]
    %v101 = vld [vmem:[#allocation2 + $0x8] sm:$0xff]
    %v102 = vld [vmem:[#allocation2 + $0x10] sm:$0xf]
    %v103 = vld [vmem:[#allocation5] sm:$0xff]
    %v104 = vld [vmem:[#allocation5 + $0x8] sm:$0xf]
    %v105 = vld [vmem:[#allocation5 + $0xc] sm:$0xff]
    %v106 = vld [vmem:[#allocation5 + $0x14] sm:$0xf]
    %v107 = vld [vmem:[#allocation5 + $0x18] sm:$0xff]
    %v108 = vld [vmem:[#allocation5 + $0x20] sm:$0xf]
    %v109 = vld [vmem:[#allocation5 + $0x24] sm:$0xff]
    %v110 = vld [vmem:[#allocation5 + $0x2c] sm:$0xf]
    %v111 = vld [vmem:[#allocation5 + $0x30] sm:$0xff]
    %v112 = vld [vmem:[#allocation5 + $0x38] sm:$0xf]
    %v113 = vld [vmem:[#allocation5 + $0x3c] sm:$0xff]
    %v114 = vld [vmem:[#allocation5 + $0x44] sm:$0xf]
    %v115 = vld [vmem:[#allocation5 + $0x48] sm:$0xff]
    %v116 = vld [vmem:[#allocation5 + $0x50] sm:$0xf]
    %v117 = vld [vmem:[#allocation5 + $0x54] sm:$0xff]
    %v118 = vld [vmem:[#allocation5 + $0x5c] sm:$0xf]
    %v119 = vld [vmem:[#allocation5 + $0x60] sm:$0xff]
    %v120 = vld [vmem:[#allocation5 + $0x68] sm:$0xf]
    %v121 = vld [vmem:[#allocation5 + $0x6c] sm:$0xff]
    %v122 = vld [vmem:[#allocation5 + $0x74] sm:$0xf]
    %v123 = vld [vmem:[#allocation5 + $0x78] sm:$0xff]
    %v124 = vld [vmem:[#allocation5 + $0x80] sm:$0xf]
    %v125 = vld [vmem:[#allocation5 + $0x84] sm:$0xff]
    %v126 = vld [vmem:[#allocation5 + $0x8c] sm:$0xf]
    %v127 = vld [vmem:[#allocation5 + $0x90] sm:$0xff]
    %v128 = vld [vmem:[#allocation5 + $0x98] sm:$0xf]
    %v129 = vld [vmem:[#allocation5 + $0x9c] sm:$0xff]
    %v130 = vld [vmem:[#allocation5 + $0xa4] sm:$0xf]
    %v131 = vld [vmem:[#allocation5 + $0xa8] sm:$0xff]
    %v132 = vld [vmem:[#allocation5 + $0xb0] sm:$0xf]
    %v133 = vld [vmem:[#allocation5 + $0xb4] sm:$0xff]
    %v134 = vld [vmem:[#allocation5 + $0xbc] sm:$0xf]
    %v135 = vld [vmem:[#allocation5 + $0xc0] sm:$0xff]
    %v136 = vld [vmem:[#allocation5 + $0xc8] sm:$0xf]
    %v137 = vld [vmem:[#allocation5 + $0xcc] sm:$0xff]
    %v138 = vld [vmem:[#allocation5 + $0xd4] sm:$0xf]
    %v139 = vld [vmem:[#allocation5 + $0xd8] sm:$0xff]
    %v140 = vld [vmem:[#allocation5 + $0xe0] sm:$0xf]
    %v141 = vld [vmem:[#allocation5 + $0xe4] sm:$0xff]
    %v142 = vld [vmem:[#allocation5 + $0xec] sm:$0xf]
    %v143 = vld [vmem:[#allocation5 + $0xf0] sm:$0xff]
    %v144 = vld [vmem:[#allocation5 + $0xf8] sm:$0xf]
    %v145 = vld [vmem:[#allocation5 + $0xfc] sm:$0xff]
    %v146 = vld [vmem:[#allocation5 + $0x104] sm:$0xf]
    %v147 = vld [vmem:[#allocation5 + $0x108] sm:$0xff]
    %v148 = vld [vmem:[#allocation5 + $0x110] sm:$0xf]
    %v149 = vld [vmem:[#allocation5 + $0x114] sm:$0xff]
    %v150 = vld [vmem:[#allocation5 + $0x11c] sm:$0xf]
    %v151 = vld [vmem:[#allocation5 + $0x120] sm:$0xff]
    %v152 = vld [vmem:[#allocation5 + $0x128] sm:$0xf]
    %v153 = vld [vmem:[#allocation5 + $0x12c] sm:$0xff]
    %v154 = vld [vmem:[#allocation5 + $0x134] sm:$0xf]
    %v155 = vld [vmem:[#allocation5 + $0x138] sm:$0xff]
    %v156 = vld [vmem:[#allocation5 + $0x140] sm:$0xf]
    %v157 = vld [vmem:[#allocation5 + $0x144] sm:$0xff]
    %v158 = vld [vmem:[#allocation5 + $0x14c] sm:$0xf]
    %v159 = vld [vmem:[#allocation5 + $0x150] sm:$0xff]
    %v160 = vld [vmem:[#allocation5 + $0x158] sm:$0xf]
    %v161 = vld [vmem:[#allocation5 + $0x15c] sm:$0xff]
    %v162 = vld [vmem:[#allocation5 + $0x164] sm:$0xf]
    %v163 = vld [vmem:[#allocation5 + $0x168] sm:$0xff]
    %v164 = vld [vmem:[#allocation5 + $0x170] sm:$0xf]
    %v165 = vld [vmem:[#allocation5 + $0x174] sm:$0xff]
    %v166 = vld [vmem:[#allocation5 + $0x17c] sm:$0xf]
    %v167 = vld [vmem:[#allocation5 + $0x180] sm:$0xff]
    %v168 = vld [vmem:[#allocation5 + $0x188] sm:$0xf]
    %v169 = vld [vmem:[#allocation5 + $0x18c] sm:$0xff]
    %v170 = vld [vmem:[#allocation5 + $0x194] sm:$0xf]
    %v171 = vld [vmem:[#allocation5 + $0x198] sm:$0xff]
    %v172 = vld [vmem:[#allocation5 + $0x1a0] sm:$0xf]
    %v173 = vld [vmem:[#allocation5 + $0x1a4] sm:$0xff]
    %v174 = vld [vmem:[#allocation5 + $0x1ac] sm:$0xf]
    %v175 = vld [vmem:[#allocation5 + $0x1b0] sm:$0xff]
    %v176 = vld [vmem:[#allocation5 + $0x1b8] sm:$0xf]
    %v177 = vld [vmem:[#allocation5 + $0x1bc] sm:$0xff]
    %v178 = vld [vmem:[#allocation5 + $0x1c4] sm:$0xf]
    %v179 = vld [vmem:[#allocation5 + $0x1c8] sm:$0xff]
    %v180 = vld [vmem:[#allocation5 + $0x1d0] sm:$0xf]
    %v181 = vld [vmem:[#allocation5 + $0x1d4] sm:$0xff]
    %v182 = vld [vmem:[#allocation5 + $0x1dc] sm:$0xf]
    %v183 = vld [vmem:[#allocation5 + $0x1e0] sm:$0xff]
    %v184 = vld [vmem:[#allocation5 + $0x1e8] sm:$0xf]
    %v185 = vld [vmem:[#allocation5 + $0x1ec] sm:$0xff]
    %v186 = vld [vmem:[#allocation5 + $0x1f4] sm:$0xf]
    %v187 = vld [vmem:[#allocation5 + $0x1f8] sm:$0xff]
    %v188 = vld [vmem:[#allocation5 + $0x200] sm:$0xf]
    %v189 = vld [vmem:[#allocation5 + $0x204] sm:$0xff]
    %v190 = vld [vmem:[#allocation5 + $0x20c] sm:$0xf]
    %v191 = vld [vmem:[#allocation5 + $0x210] sm:$0xff]
    %v192 = vld [vmem:[#allocation5 + $0x218] sm:$0xf]
    %v193 = vld [vmem:[#allocation5 + $0x21c] sm:$0xff]
    %v194 = vld [vmem:[#allocation5 + $0x224] sm:$0xf]
    %v195 = vld [vmem:[#allocation5 + $0x228] sm:$0xff]
    %v196 = vld [vmem:[#allocation5 + $0x230] sm:$0xf]
    %v197 = vld [vmem:[#allocation5 + $0x234] sm:$0xff]
    %v198 = vld [vmem:[#allocation5 + $0x23c] sm:$0xf]
    %v199 = vld [vmem:[#allocation5 + $0x240] sm:$0xff]
    %v200 = vld [vmem:[#allocation5 + $0x248] sm:$0xf]
    %v201 = vld [vmem:[#allocation5 + $0x24c] sm:$0xff]
    %v202 = vld [vmem:[#allocation5 + $0x254] sm:$0xf]
    %v203 = vld [vmem:[#allocation5 + $0x258] sm:$0xff]
    %v204 = vld [vmem:[#allocation5 + $0x260] sm:$0xf]
    %v205 = vld [vmem:[#allocation5 + $0x264] sm:$0xff]
    %v206 = vld [vmem:[#allocation5 + $0x26c] sm:$0xf]
    %v207 = vld [vmem:[#allocation5 + $0x270] sm:$0xff]
    %v208 = vld [vmem:[#allocation5 + $0x278] sm:$0xf]
    %v209 = vld [vmem:[#allocation5 + $0x27c] sm:$0xff]
    %v210 = vld [vmem:[#allocation5 + $0x284] sm:$0xf]
    %v211 = vld [vmem:[#allocation5 + $0x288] sm:$0xff]
    %v212 = vld [vmem:[#allocation5 + $0x290] sm:$0xf]
    %v213 = vld [vmem:[#allocation5 + $0x294] sm:$0xff]
    %v214 = vld [vmem:[#allocation5 + $0x29c] sm:$0xf]
    %v215 = vld [vmem:[#allocation5 + $0x2a0] sm:$0xff]
    %v216 = vld [vmem:[#allocation5 + $0x2a8] sm:$0xf]
    %v217 = vld [vmem:[#allocation5 + $0x2ac] sm:$0xff]
    %v218 = vld [vmem:[#allocation5 + $0x2b4] sm:$0xf]
    %v219 = vld [vmem:[#allocation5 + $0x2b8] sm:$0xff]
    %v220 = vld [vmem:[#allocation5 + $0x2c0] sm:$0xf]
    %v221 = vld [vmem:[#allocation5 + $0x2c4] sm:$0xff]
    %v222 = vld [vmem:[#allocation5 + $0x2cc] sm:$0xf]
    %v223 = vld [vmem:[#allocation5 + $0x2d0] sm:$0xff]
    %v224 = vld [vmem:[#allocation5 + $0x2d8] sm:$0xf]
    %v225 = vld [vmem:[#allocation5 + $0x2dc] sm:$0xff]
    %v226 = vld [vmem:[#allocation5 + $0x2e4] sm:$0xf]
    %v227 = vld [vmem:[#allocation5 + $0x2e8] sm:$0xff]
    %v228 = vld [vmem:[#allocation5 + $0x2f0] sm:$0xf]
    %v229 = vld [vmem:[#allocation5 + $0x2f4] sm:$0xff]
    %v230 = vld [vmem:[#allocation5 + $0x2fc] sm:$0xf]
    %v231 = vld [vmem:[#allocation5 + $0x300] sm:$0xff]
    %v232 = vld [vmem:[#allocation5 + $0x308] sm:$0xf]
    %v233 = vld [vmem:[#allocation5 + $0x30c] sm:$0xff]
    %v234 = vld [vmem:[#allocation5 + $0x314] sm:$0xf]
    %v235 = vld [vmem:[#allocation5 + $0x318] sm:$0xff]
    %v236 = vld [vmem:[#allocation5 + $0x320] sm:$0xf]
    %v237 = vld [vmem:[#allocation5 + $0x324] sm:$0xff]
    %v238 = vld [vmem:[#allocation5 + $0x32c] sm:$0xf]
    %v239 = vld [vmem:[#allocation5 + $0x330] sm:$0xff]
    %v240 = vld [vmem:[#allocation5 + $0x338] sm:$0xf]
    %v241 = vld [vmem:[#allocation5 + $0x33c] sm:$0xff]
    %v242 = vld [vmem:[#allocation5 + $0x344] sm:$0xf]
    %v243 = vld [vmem:[#allocation5 + $0x348] sm:$0xff]
    %v244 = vld [vmem:[#allocation5 + $0x350] sm:$0xf]
    %v245 = vld [vmem:[#allocation5 + $0x354] sm:$0xff]
    %v246 = vld [vmem:[#allocation5 + $0x35c] sm:$0xf]
    %v247 = vld [vmem:[#allocation5 + $0x360] sm:$0xff]
    %v248 = vld [vmem:[#allocation5 + $0x368] sm:$0xf]
    %v249 = vld [vmem:[#allocation5 + $0x36c] sm:$0xff]
    %v250 = vld [vmem:[#allocation5 + $0x374] sm:$0xf]
    %v251 = vld [vmem:[#allocation5 + $0x378] sm:$0xff]
    %v252 = vld [vmem:[#allocation5 + $0x380] sm:$0xf]
    %v253 = vld [vmem:[#allocation5 + $0x384] sm:$0xff]
    %v254 = vld [vmem:[#allocation5 + $0x38c] sm:$0xf]
    %v255 = vld [vmem:[#allocation5 + $0x390] sm:$0xff]
    %v256 = vld [vmem:[#allocation5 + $0x398] sm:$0xf]
    %v257 = vld [vmem:[#allocation5 + $0x39c] sm:$0xff]
    %v258 = vld [vmem:[#allocation5 + $0x3a4] sm:$0xf]
    %v259 = vld [vmem:[#allocation5 + $0x3a8] sm:$0xff]
    %v260 = vld [vmem:[#allocation5 + $0x3b0] sm:$0xf]
    %v261 = vld [vmem:[#allocation5 + $0x3b4] sm:$0xff]
    %v262 = vld [vmem:[#allocation5 + $0x3bc] sm:$0xf]
    %v263 = vld [vmem:[%s2] sm:$0x7]
    %v265 = vlaneseq
    %v266 = vshrl.u32 %v265, 7
    %v267 = vsub.s32 0, %v266
    %v268 = vrot.slane %v263, %v267
    %v269 = vlaneseq
    %v270 = vshrl.u32 %v269, 7
    %v271 = vsub.s32 1, %v270
    %v272 = vrot.slane %v263, %v271
    %v273 = vlaneseq
    %v274 = vshrl.u32 %v273, 7
    %v275 = vsub.s32 2, %v274
    %v276 = vrot.slane %v263, %v275
    %v283 = vunpack.c.l.b16 %v100
    %v284 = vunpack.c.h.b16 %v100
    %v285 = vunpack.c.l.b16 %v101
    %v286 = vunpack.c.h.b16 %v101
    %v287 = vunpack.c.l.b16 %v102
    %v288 = vpack.c.b16 %v283, %v283
    %v289 = vpack.c.b16 %v284, %v284
    %v290 = vpack.c.b16 %v285, %v285
    %v291 = vpack.c.b16 %v286, %v286
    %v292 = vpack.c.b16 %v287, %v287
    %v458 = vunpack.c.l.b16 %v103
    %v459 = vunpack.c.h.b16 %v103
    %v460 = vunpack.c.l.b16 %v104
    %v461 = vunpack.c.l.b16 %v105
    %v462 = vunpack.c.h.b16 %v105
    %v463 = vunpack.c.l.b16 %v106
    %v464 = vunpack.c.l.b16 %v107
    %v465 = vunpack.c.h.b16 %v107
    %v466 = vunpack.c.l.b16 %v108
    %v467 = vunpack.c.l.b16 %v109
    %v468 = vunpack.c.h.b16 %v109
    %v469 = vunpack.c.l.b16 %v110
    %v470 = vunpack.c.l.b16 %v111
    %v471 = vunpack.c.h.b16 %v111
    %v472 = vunpack.c.l.b16 %v112
    %v473 = vunpack.c.l.b16 %v113
    %v474 = vunpack.c.h.b16 %v113
    %v475 = vunpack.c.l.b16 %v114
    %v476 = vunpack.c.l.b16 %v115
    %v477 = vunpack.c.h.b16 %v115
    %v478 = vunpack.c.l.b16 %v116
    %v479 = vunpack.c.l.b16 %v117
    %v480 = vunpack.c.h.b16 %v117
    %v481 = vunpack.c.l.b16 %v118
    %v482 = vunpack.c.l.b16 %v119
    %v483 = vunpack.c.h.b16 %v119
    %v484 = vunpack.c.l.b16 %v120
    %v485 = vunpack.c.l.b16 %v121
    %v486 = vunpack.c.h.b16 %v121
    %v487 = vunpack.c.l.b16 %v122
    %v488 = vunpack.c.l.b16 %v123
    %v489 = vunpack.c.h.b16 %v123
    %v490 = vunpack.c.l.b16 %v124
    %v491 = vunpack.c.l.b16 %v125
    %v492 = vunpack.c.h.b16 %v125
    %v493 = vunpack.c.l.b16 %v126
    %v494 = vunpack.c.l.b16 %v127
    %v495 = vunpack.c.h.b16 %v127
    %v496 = vunpack.c.l.b16 %v128
    %v497 = vunpack.c.l.b16 %v129
    %v498 = vunpack.c.h.b16 %v129
    %v499 = vunpack.c.l.b16 %v130
    %v500 = vunpack.c.l.b16 %v131
    %v501 = vunpack.c.h.b16 %v131
    %v502 = vunpack.c.l.b16 %v132
    %v503 = vunpack.c.l.b16 %v133
    %v504 = vunpack.c.h.b16 %v133
    %v505 = vunpack.c.l.b16 %v134
    %v506 = vunpack.c.l.b16 %v135
    %v507 = vunpack.c.h.b16 %v135
    %v508 = vunpack.c.l.b16 %v136
    %v509 = vunpack.c.l.b16 %v137
    %v510 = vunpack.c.h.b16 %v137
    %v511 = vunpack.c.l.b16 %v138
    %v512 = vunpack.c.l.b16 %v139
    %v513 = vunpack.c.h.b16 %v139
    %v514 = vunpack.c.l.b16 %v140
    %v515 = vunpack.c.l.b16 %v141
    %v516 = vunpack.c.h.b16 %v141
    %v517 = vunpack.c.l.b16 %v142
    %v518 = vunpack.c.l.b16 %v143
    %v519 = vunpack.c.h.b16 %v143
    %v520 = vunpack.c.l.b16 %v144
    %v521 = vunpack.c.l.b16 %v145
    %v522 = vunpack.c.h.b16 %v145
    %v523 = vunpack.c.l.b16 %v146
    %v524 = vunpack.c.l.b16 %v147
    %v525 = vunpack.c.h.b16 %v147
    %v526 = vunpack.c.l.b16 %v148
    %v527 = vunpack.c.l.b16 %v149
    %v528 = vunpack.c.h.b16 %v149
    %v529 = vunpack.c.l.b16 %v150
    %v530 = vunpack.c.l.b16 %v151
    %v531 = vunpack.c.h.b16 %v151
    %v532 = vunpack.c.l.b16 %v152
    %v533 = vunpack.c.l.b16 %v153
    %v534 = vunpack.c.h.b16 %v153
    %v535 = vunpack.c.l.b16 %v154
    %v536 = vunpack.c.l.b16 %v155
    %v537 = vunpack.c.h.b16 %v155
    %v538 = vunpack.c.l.b16 %v156
    %v539 = vunpack.c.l.b16 %v157
    %v540 = vunpack.c.h.b16 %v157
    %v541 = vunpack.c.l.b16 %v158
    %v542 = vunpack.c.l.b16 %v159
    %v543 = vunpack.c.h.b16 %v159
    %v544 = vunpack.c.l.b16 %v160
    %v545 = vunpack.c.l.b16 %v161
    %v546 = vunpack.c.h.b16 %v161
    %v547 = vunpack.c.l.b16 %v162
    %v548 = vunpack.c.l.b16 %v163
    %v549 = vunpack.c.h.b16 %v163
    %v550 = vunpack.c.l.b16 %v164
    %v551 = vunpack.c.l.b16 %v165
    %v552 = vunpack.c.h.b16 %v165
    %v553 = vunpack.c.l.b16 %v166
    %v554 = vunpack.c.l.b16 %v167
    %v555 = vunpack.c.h.b16 %v167
    %v556 = vunpack.c.l.b16 %v168
    %v557 = vunpack.c.l.b16 %v169
    %v558 = vunpack.c.h.b16 %v169
    %v559 = vunpack.c.l.b16 %v170
    %v560 = vunpack.c.l.b16 %v171
    %v561 = vunpack.c.h.b16 %v171
    %v562 = vunpack.c.l.b16 %v172
    %v563 = vunpack.c.l.b16 %v173
    %v564 = vunpack.c.h.b16 %v173
    %v565 = vunpack.c.l.b16 %v174
    %v566 = vunpack.c.l.b16 %v175
    %v567 = vunpack.c.h.b16 %v175
    %v568 = vunpack.c.l.b16 %v176
    %v569 = vunpack.c.l.b16 %v177
    %v570 = vunpack.c.h.b16 %v177
    %v571 = vunpack.c.l.b16 %v178
    %v572 = vunpack.c.l.b16 %v179
    %v573 = vunpack.c.h.b16 %v179
    %v574 = vunpack.c.l.b16 %v180
    %v575 = vunpack.c.l.b16 %v181
    %v576 = vunpack.c.h.b16 %v181
    %v577 = vunpack.c.l.b16 %v182
    %v578 = vunpack.c.l.b16 %v183
    %v579 = vunpack.c.h.b16 %v183
    %v580 = vunpack.c.l.b16 %v184
    %v581 = vunpack.c.l.b16 %v185
    %v582 = vunpack.c.h.b16 %v185
    %v583 = vunpack.c.l.b16 %v186
    %v584 = vunpack.c.l.b16 %v187
    %v585 = vunpack.c.h.b16 %v187
    %v586 = vunpack.c.l.b16 %v188
    %v587 = vunpack.c.l.b16 %v189
    %v588 = vunpack.c.h.b16 %v189
    %v589 = vunpack.c.l.b16 %v190
    %v590 = vunpack.c.l.b16 %v191
    %v591 = vunpack.c.h.b16 %v191
    %v592 = vunpack.c.l.b16 %v192
    %v593 = vunpack.c.l.b16 %v193
    %v594 = vunpack.c.h.b16 %v193
    %v595 = vunpack.c.l.b16 %v194
    %v596 = vunpack.c.l.b16 %v195
    %v597 = vunpack.c.h.b16 %v195
    %v598 = vunpack.c.l.b16 %v196
    %v599 = vunpack.c.l.b16 %v197
    %v600 = vunpack.c.h.b16 %v197
    %v601 = vunpack.c.l.b16 %v198
    %v602 = vunpack.c.l.b16 %v199
    %v603 = vunpack.c.h.b16 %v199
    %v604 = vunpack.c.l.b16 %v200
    %v605 = vunpack.c.l.b16 %v201
    %v606 = vunpack.c.h.b16 %v201
    %v607 = vunpack.c.l.b16 %v202
    %v608 = vunpack.c.l.b16 %v203
    %v609 = vunpack.c.h.b16 %v203
    %v610 = vunpack.c.l.b16 %v204
    %v611 = vunpack.c.l.b16 %v205
    %v612 = vunpack.c.h.b16 %v205
    %v613 = vunpack.c.l.b16 %v206
    %v614 = vunpack.c.l.b16 %v207
    %v615 = vunpack.c.h.b16 %v207
    %v616 = vunpack.c.l.b16 %v208
    %v617 = vunpack.c.l.b16 %v209
    %v618 = vunpack.c.h.b16 %v209
    %v619 = vunpack.c.l.b16 %v210
    %v620 = vunpack.c.l.b16 %v211
    %v621 = vunpack.c.h.b16 %v211
    %v622 = vunpack.c.l.b16 %v212
    %v623 = vunpack.c.l.b16 %v213
    %v624 = vunpack.c.h.b16 %v213
    %v625 = vunpack.c.l.b16 %v214
    %v626 = vunpack.c.l.b16 %v215
    %v627 = vunpack.c.h.b16 %v215
    %v628 = vunpack.c.l.b16 %v216
    %v629 = vunpack.c.l.b16 %v217
    %v630 = vunpack.c.h.b16 %v217
    %v631 = vunpack.c.l.b16 %v218
    %v632 = vunpack.c.l.b16 %v219
    %v633 = vunpack.c.h.b16 %v219
    %v634 = vunpack.c.l.b16 %v220
    %v635 = vunpack.c.l.b16 %v221
    %v636 = vunpack.c.h.b16 %v221
    %v637 = vunpack.c.l.b16 %v222
    %v638 = vunpack.c.l.b16 %v223
    %v639 = vunpack.c.h.b16 %v223
    %v640 = vunpack.c.l.b16 %v224
    %v641 = vunpack.c.l.b16 %v225
    %v642 = vunpack.c.h.b16 %v225
    %v643 = vunpack.c.l.b16 %v226
    %v644 = vunpack.c.l.b16 %v227
    %v645 = vunpack.c.h.b16 %v227
    %v646 = vunpack.c.l.b16 %v228
    %v647 = vunpack.c.l.b16 %v229
    %v648 = vunpack.c.h.b16 %v229
    %v649 = vunpack.c.l.b16 %v230
    %v650 = vunpack.c.l.b16 %v231
    %v651 = vunpack.c.h.b16 %v231
    %v652 = vunpack.c.l.b16 %v232
    %v653 = vunpack.c.l.b16 %v233
    %v654 = vunpack.c.h.b16 %v233
    %v655 = vunpack.c.l.b16 %v234
    %v656 = vunpack.c.l.b16 %v235
    %v657 = vunpack.c.h.b16 %v235
    %v658 = vunpack.c.l.b16 %v236
    %v659 = vunpack.c.l.b16 %v237
    %v660 = vunpack.c.h.b16 %v237
    %v661 = vunpack.c.l.b16 %v238
    %v662 = vunpack.c.l.b16 %v239
    %v663 = vunpack.c.h.b16 %v239
    %v664 = vunpack.c.l.b16 %v240
    %v665 = vunpack.c.l.b16 %v241
    %v666 = vunpack.c.h.b16 %v241
    %v667 = vunpack.c.l.b16 %v242
    %v668 = vunpack.c.l.b16 %v243
    %v669 = vunpack.c.h.b16 %v243
    %v670 = vunpack.c.l.b16 %v244
    %v671 = vunpack.c.l.b16 %v245
    %v672 = vunpack.c.h.b16 %v245
    %v673 = vunpack.c.l.b16 %v246
    %v674 = vunpack.c.l.b16 %v247
    %v675 = vunpack.c.h.b16 %v247
    %v676 = vunpack.c.l.b16 %v248
    %v677 = vunpack.c.l.b16 %v249
    %v678 = vunpack.c.h.b16 %v249
    %v679 = vunpack.c.l.b16 %v250
    %v680 = vunpack.c.l.b16 %v251
    %v681 = vunpack.c.h.b16 %v251
    %v682 = vunpack.c.l.b16 %v252
    %v683 = vunpack.c.l.b16 %v253
    %v684 = vunpack.c.h.b16 %v253
    %v685 = vunpack.c.l.b16 %v254
    %v686 = vunpack.c.l.b16 %v255
    %v687 = vunpack.c.h.b16 %v255
    %v688 = vunpack.c.l.b16 %v256
    %v689 = vunpack.c.l.b16 %v257
    %v690 = vunpack.c.h.b16 %v257
    %v691 = vunpack.c.l.b16 %v258
    %v692 = vunpack.c.l.b16 %v259
    %v693 = vunpack.c.h.b16 %v259
    %v694 = vunpack.c.l.b16 %v260
    %v695 = vunpack.c.l.b16 %v261
    %v696 = vunpack.c.h.b16 %v261
    %v697 = vunpack.c.l.b16 %v262
    %v698 = vpack.c.b16 %v461, %v458
    %v699 = vpack.c.b16 %v462, %v459
    %v700 = vpack.c.b16 %v463, %v460
    %v701 = vpack.c.b16 %v467, %v464
    %v702 = vpack.c.b16 %v468, %v465
    %v703 = vpack.c.b16 %v469, %v466
    %v704 = vpack.c.b16 %v473, %v470
    %v705 = vpack.c.b16 %v474, %v471
    %v706 = vpack.c.b16 %v475, %v472
    %v707 = vpack.c.b16 %v479, %v476
    %v708 = vpack.c.b16 %v480, %v477
    %v709 = vpack.c.b16 %v481, %v478
    %v710 = vpack.c.b16 %v485, %v482
    %v711 = vpack.c.b16 %v486, %v483
    %v712 = vpack.c.b16 %v487, %v484
    %v713 = vpack.c.b16 %v491, %v488
    %v714 = vpack.c.b16 %v492, %v489
    %v715 = vpack.c.b16 %v493, %v490
    %v716 = vpack.c.b16 %v497, %v494
    %v717 = vpack.c.b16 %v498, %v495
    %v718 = vpack.c.b16 %v499, %v496
    %v719 = vpack.c.b16 %v503, %v500
    %v720 = vpack.c.b16 %v504, %v501
    %v721 = vpack.c.b16 %v505, %v502
    %v722 = vpack.c.b16 %v509, %v506
    %v723 = vpack.c.b16 %v510, %v507
    %v724 = vpack.c.b16 %v511, %v508
    %v725 = vpack.c.b16 %v515, %v512
    %v726 = vpack.c.b16 %v516, %v513
    %v727 = vpack.c.b16 %v517, %v514
    %v728 = vpack.c.b16 %v521, %v518
    %v729 = vpack.c.b16 %v522, %v519
    %v730 = vpack.c.b16 %v523, %v520
    %v731 = vpack.c.b16 %v527, %v524
    %v732 = vpack.c.b16 %v528, %v525
    %v733 = vpack.c.b16 %v529, %v526
    %v734 = vpack.c.b16 %v533, %v530
    %v735 = vpack.c.b16 %v534, %v531
    %v736 = vpack.c.b16 %v535, %v532
    %v737 = vpack.c.b16 %v539, %v536
    %v738 = vpack.c.b16 %v540, %v537
    %v739 = vpack.c.b16 %v541, %v538
    %v740 = vpack.c.b16 %v545, %v542
    %v741 = vpack.c.b16 %v546, %v543
    %v742 = vpack.c.b16 %v547, %v544
    %v743 = vpack.c.b16 %v551, %v548
    %v744 = vpack.c.b16 %v552, %v549
    %v745 = vpack.c.b16 %v553, %v550
    %v746 = vpack.c.b16 %v557, %v554
    %v747 = vpack.c.b16 %v558, %v555
    %v748 = vpack.c.b16 %v559, %v556
    %v749 = vpack.c.b16 %v563, %v560
    %v750 = vpack.c.b16 %v564, %v561
    %v751 = vpack.c.b16 %v565, %v562
    %v752 = vpack.c.b16 %v569, %v566
    %v753 = vpack.c.b16 %v570, %v567
    %v754 = vpack.c.b16 %v571, %v568
    %v755 = vpack.c.b16 %v575, %v572
    %v756 = vpack.c.b16 %v576, %v573
    %v757 = vpack.c.b16 %v577, %v574
    %v758 = vpack.c.b16 %v581, %v578
    %v759 = vpack.c.b16 %v582, %v579
    %v760 = vpack.c.b16 %v583, %v580
    %v761 = vpack.c.b16 %v587, %v584
    %v762 = vpack.c.b16 %v588, %v585
    %v763 = vpack.c.b16 %v589, %v586
    %v764 = vpack.c.b16 %v593, %v590
    %v765 = vpack.c.b16 %v594, %v591
    %v766 = vpack.c.b16 %v595, %v592
    %v767 = vpack.c.b16 %v599, %v596
    %v768 = vpack.c.b16 %v600, %v597
    %v769 = vpack.c.b16 %v601, %v598
    %v770 = vpack.c.b16 %v605, %v602
    %v771 = vpack.c.b16 %v606, %v603
    %v772 = vpack.c.b16 %v607, %v604
    %v773 = vpack.c.b16 %v611, %v608
    %v774 = vpack.c.b16 %v612, %v609
    %v775 = vpack.c.b16 %v613, %v610
    %v776 = vpack.c.b16 %v617, %v614
    %v777 = vpack.c.b16 %v618, %v615
    %v778 = vpack.c.b16 %v619, %v616
    %v779 = vpack.c.b16 %v623, %v620
    %v780 = vpack.c.b16 %v624, %v621
    %v781 = vpack.c.b16 %v625, %v622
    %v782 = vpack.c.b16 %v629, %v626
    %v783 = vpack.c.b16 %v630, %v627
    %v784 = vpack.c.b16 %v631, %v628
    %v785 = vpack.c.b16 %v635, %v632
    %v786 = vpack.c.b16 %v636, %v633
    %v787 = vpack.c.b16 %v637, %v634
    %v788 = vpack.c.b16 %v641, %v638
    %v789 = vpack.c.b16 %v642, %v639
    %v790 = vpack.c.b16 %v643, %v640
    %v791 = vpack.c.b16 %v647, %v644
    %v792 = vpack.c.b16 %v648, %v645
    %v793 = vpack.c.b16 %v649, %v646
    %v794 = vpack.c.b16 %v653, %v650
    %v795 = vpack.c.b16 %v654, %v651
    %v796 = vpack.c.b16 %v655, %v652
    %v797 = vpack.c.b16 %v659, %v656
    %v798 = vpack.c.b16 %v660, %v657
    %v799 = vpack.c.b16 %v661, %v658
    %v800 = vpack.c.b16 %v665, %v662
    %v801 = vpack.c.b16 %v666, %v663
    %v802 = vpack.c.b16 %v667, %v664
    %v803 = vpack.c.b16 %v671, %v668
    %v804 = vpack.c.b16 %v672, %v669
    %v805 = vpack.c.b16 %v673, %v670
    %v806 = vpack.c.b16 %v677, %v674
    %v807 = vpack.c.b16 %v678, %v675
    %v808 = vpack.c.b16 %v679, %v676
    %v809 = vpack.c.b16 %v683, %v680
    %v810 = vpack.c.b16 %v684, %v681
    %v811 = vpack.c.b16 %v685, %v682
    %v812 = vpack.c.b16 %v689, %v686
    %v813 = vpack.c.b16 %v690, %v687
    %v814 = vpack.c.b16 %v691, %v688
    %v815 = vpack.c.b16 %v695, %v692
    %v816 = vpack.c.b16 %v696, %v693
    %v817 = vpack.c.b16 %v697, %v694
    %938 = vmatprep.subr.bf16.mxu0 %v699
    %939 = vmatpush1.bf16.msra.mxu0 %v698
    %940 = vmatprep.subr.bf16.mxu0 %v702
    %941 = vmatpush1.bf16.msra.mxu0 %v701
    %942 = vmatprep.subr.bf16.mxu0 %v705
    %943 = vmatpush1.bf16.msra.mxu0 %v704
    %944 = vmatprep.subr.bf16.mxu0 %v708
    %945 = vmatpush1.bf16.msra.mxu0 %v707
    %946 = vmatprep.subr.bf16.mxu0 %v711
    %947 = vmatpush1.bf16.msra.mxu0 %v710
    %948 = vmatprep.subr.bf16.mxu0 %v714
    %949 = vmatpush1.bf16.msra.mxu0 %v713
    %950 = vmatprep.subr.bf16.mxu0 %v717
    %951 = vmatpush1.bf16.msra.mxu0 %v716
    %952 = vmatprep.subr.bf16.mxu0 %v720
    %953 = vmatpush1.bf16.msra.mxu0 %v719
    %954 = vmatprep.subr.bf16.mxu0 %v723
    %955 = vmatpush1.bf16.msra.mxu0 %v722
    %956 = vmatprep.subr.bf16.mxu0 %v726
    %957 = vmatpush1.bf16.msra.mxu0 %v725
    %958 = vmatprep.subr.bf16.mxu0 %v729
    %959 = vmatpush1.bf16.msra.mxu0 %v728
    %960 = vmatprep.subr.bf16.mxu0 %v732
    %961 = vmatpush1.bf16.msra.mxu0 %v731
    %962 = vmatprep.subr.bf16.mxu0 %v735
    %963 = vmatpush1.bf16.msra.mxu0 %v734
    %964 = vmatprep.subr.bf16.mxu0 %v738
    %965 = vmatpush1.bf16.msra.mxu0 %v737
    %966 = vmatprep.subr.bf16.mxu0 %v741
    %967 = vmatpush1.bf16.msra.mxu0 %v740
    %968 = vmatprep.subr.bf16.mxu0 %v744
    %969 = vmatpush1.bf16.msra.mxu0 %v743
    %970 = vmatprep.mubr.bf16.mxu0 %v289
    %971 = vmatmul.mubr.bf16.gmra.mrb[0].mxu0 %v288
    %v972 = vpop.f32.mrb[0].mxu0
    %v973 = vadd.f32 %v268, %v972
    %v974 = vpop.f32.mrb[0].mxu0
    %v975 = vadd.f32 %v272, %v974
    %v976 = vpop.f32.mrb[0].mxu0
    %v977 = vpop.f32.mrb[0].mxu0
    %978 = vdwg.mxu0
    %979 = vmatprep.subr.bf16.mxu0 %v747
    %980 = vmatpush1.bf16.msra.mxu0 %v746
    %981 = vmatprep.subr.bf16.mxu0 %v750
    %982 = vmatpush1.bf16.msra.mxu0 %v749
    %983 = vmatprep.subr.bf16.mxu0 %v753
    %984 = vmatpush1.bf16.msra.mxu0 %v752
    %985 = vmatprep.subr.bf16.mxu0 %v756
    %986 = vmatpush1.bf16.msra.mxu0 %v755
    %987 = vmatprep.subr.bf16.mxu0 %v759
    %988 = vmatpush1.bf16.msra.mxu0 %v758
    %989 = vmatprep.subr.bf16.mxu0 %v762
    %990 = vmatpush1.bf16.msra.mxu0 %v761
    %991 = vmatprep.subr.bf16.mxu0 %v765
    %992 = vmatpush1.bf16.msra.mxu0 %v764
    %993 = vmatprep.subr.bf16.mxu0 %v768
    %994 = vmatpush1.bf16.msra.mxu0 %v767
    %995 = vmatprep.subr.bf16.mxu0 %v771
    %996 = vmatpush1.bf16.msra.mxu0 %v770
    %997 = vmatprep.subr.bf16.mxu0 %v774
    %998 = vmatpush1.bf16.msra.mxu0 %v773
    %999 = vmatprep.subr.bf16.mxu0 %v777
    %1000 = vmatpush1.bf16.msra.mxu0 %v776
    %1001 = vmatprep.subr.bf16.mxu0 %v780
    %1002 = vmatpush1.bf16.msra.mxu0 %v779
    %1003 = vmatprep.subr.bf16.mxu0 %v783
    %1004 = vmatpush1.bf16.msra.mxu0 %v782
    %1005 = vmatprep.subr.bf16.mxu0 %v786
    %1006 = vmatpush1.bf16.msra.mxu0 %v785
    %1007 = vmatprep.subr.bf16.mxu0 %v789
    %1008 = vmatpush1.bf16.msra.mxu0 %v788
    %1009 = vmatprep.subr.bf16.mxu0 %v792
    %1010 = vmatpush1.bf16.msra.mxu0 %v791
    %1011 = vmatprep.mubr.bf16.mxu0 %v291
    %1012 = vmatmul.mubr.bf16.gmra.mrb[0].mxu0 %v290
    %v1013 = vpop.f32.mrb[0].mxu0
    %v1014 = vadd.f32 %v973, %v1013
    %v1015 = vpop.f32.mrb[0].mxu0
    %v1016 = vadd.f32 %v975, %v1015
    %v1017 = vpop.f32.mrb[0].mxu0
    %v1018 = vpop.f32.mrb[0].mxu0
    %1019 = vdwg.mxu0
    %1020 = vmatprep.subr.bf16.mxu0 %v795
    %1021 = vmatpush1.bf16.msra.mxu0 %v794
    %1022 = vmatprep.subr.bf16.mxu0 %v798
    %1023 = vmatpush1.bf16.msra.mxu0 %v797
    %1024 = vmatprep.subr.bf16.mxu0 %v801
    %1025 = vmatpush1.bf16.msra.mxu0 %v800
    %1026 = vmatprep.subr.bf16.mxu0 %v804
    %1027 = vmatpush1.bf16.msra.mxu0 %v803
    %1028 = vmatprep.subr.bf16.mxu0 %v807
    %1029 = vmatpush1.bf16.msra.mxu0 %v806
    %1030 = vmatprep.subr.bf16.mxu0 %v810
    %1031 = vmatpush1.bf16.msra.mxu0 %v809
    %1032 = vmatprep.subr.bf16.mxu0 %v813
    %1033 = vmatpush1.bf16.msra.mxu0 %v812
    %1034 = vmatprep.subr.bf16.mxu0 %v816
    %1035 = vmatpush1.bf16.msra.mxu0 %v815
    %1036 = vmatprep.subr.bf16.mxu0 0
    %1037 = vmatpush1.bf16.msra.mxu0 0
    %1038 = vmatprep.subr.bf16.mxu0 0
    %1039 = vmatpush1.bf16.msra.mxu0 0
    %1040 = vmatprep.subr.bf16.mxu0 0
    %1041 = vmatpush1.bf16.msra.mxu0 0
    %1042 = vmatprep.subr.bf16.mxu0 0
    %1043 = vmatpush1.bf16.msra.mxu0 0
    %1044 = vmatprep.subr.bf16.mxu0 0
    %1045 = vmatpush1.bf16.msra.mxu0 0
    %1046 = vmatprep.subr.bf16.mxu0 0
    %1047 = vmatpush1.bf16.msra.mxu0 0
    %1048 = vmatprep.subr.bf16.mxu0 0
    %1049 = vmatpush1.bf16.msra.mxu0 0
    %1050 = vmatprep.subr.bf16.mxu0 0
    %1051 = vmatpush1.bf16.msra.mxu0 0
    %1052 = vmatprep.mubr.bf16.mxu0 0
    %1053 = vmatmul.mubr.bf16.gmra.mrb[0].mxu0 %v292
    %v1054 = vpop.f32.mrb[0].mxu0
    %v1055 = vadd.f32 %v1014, %v1054
    %v1056 = vpop.f32.mrb[0].mxu0
    %v1057 = vadd.f32 %v1016, %v1056
    %v1058 = vpop.f32.mrb[0].mxu0
    %v1059 = vpop.f32.mrb[0].mxu0
    %1060 = vdwg.mxu0
    %1061 = vmatprep.subr.bf16.mxu0 0
    %1062 = vmatpush1.bf16.msra.mxu0 %v700
    %1063 = vmatprep.subr.bf16.mxu0 0
    %1064 = vmatpush1.bf16.msra.mxu0 %v703
    %1065 = vmatprep.subr.bf16.mxu0 0
    %1066 = vmatpush1.bf16.msra.mxu0 %v706
    %1067 = vmatprep.subr.bf16.mxu0 0
    %1068 = vmatpush1.bf16.msra.mxu0 %v709
    %1069 = vmatprep.subr.bf16.mxu0 0
    %1070 = vmatpush1.bf16.msra.mxu0 %v712
    %1071 = vmatprep.subr.bf16.mxu0 0
    %1072 = vmatpush1.bf16.msra.mxu0 %v715
    %1073 = vmatprep.subr.bf16.mxu0 0
    %1074 = vmatpush1.bf16.msra.mxu0 %v718
    %1075 = vmatprep.subr.bf16.mxu0 0
    %1076 = vmatpush1.bf16.msra.mxu0 %v721
    %1077 = vmatprep.subr.bf16.mxu0 0
    %1078 = vmatpush1.bf16.msra.mxu0 %v724
    %1079 = vmatprep.subr.bf16.mxu0 0
    %1080 = vmatpush1.bf16.msra.mxu0 %v727
    %1081 = vmatprep.subr.bf16.mxu0 0
    %1082 = vmatpush1.bf16.msra.mxu0 %v730
    %1083 = vmatprep.subr.bf16.mxu0 0
    %1084 = vmatpush1.bf16.msra.mxu0 %v733
    %1085 = vmatprep.subr.bf16.mxu0 0
    %1086 = vmatpush1.bf16.msra.mxu0 %v736
    %1087 = vmatprep.subr.bf16.mxu0 0
    %1088 = vmatpush1.bf16.msra.mxu0 %v739
    %1089 = vmatprep.subr.bf16.mxu0 0
    %1090 = vmatpush1.bf16.msra.mxu0 %v742
    %1091 = vmatprep.subr.bf16.mxu0 0
    %1092 = vmatpush1.bf16.msra.mxu0 %v745
    %1093 = vmatprep.mubr.bf16.mxu0 %v289
    %1094 = vmatmul.mubr.bf16.gmra.mrb[0].mxu0 %v288
    %v1095 = vpop.f32.mrb[0].mxu0
    %v1096 = vadd.f32 %v276, %v1095
    %v1097 = vpop.f32.mrb[0].mxu0
    %v1098 = vpop.f32.mrb[0].mxu0
    %v1099 = vpop.f32.mrb[0].mxu0
    %1100 = vdwg.mxu0
    %1101 = vmatprep.subr.bf16.mxu0 0
    %1102 = vmatpush1.bf16.msra.mxu0 %v748
    %1103 = vmatprep.subr.bf16.mxu0 0
    %1104 = vmatpush1.bf16.msra.mxu0 %v751
    %1105 = vmatprep.subr.bf16.mxu0 0
    %1106 = vmatpush1.bf16.msra.mxu0 %v754
    %1107 = vmatprep.subr.bf16.mxu0 0
    %1108 = vmatpush1.bf16.msra.mxu0 %v757
    %1109 = vmatprep.subr.bf16.mxu0 0
    %1110 = vmatpush1.bf16.msra.mxu0 %v760
    %1111 = vmatprep.subr.bf16.mxu0 0
    %1112 = vmatpush1.bf16.msra.mxu0 %v763
    %1113 = vmatprep.subr.bf16.mxu0 0
    %1114 = vmatpush1.bf16.msra.mxu0 %v766
    %1115 = vmatprep.subr.bf16.mxu0 0
    %1116 = vmatpush1.bf16.msra.mxu0 %v769
    %1117 = vmatprep.subr.bf16.mxu0 0
    %1118 = vmatpush1.bf16.msra.mxu0 %v772
    %1119 = vmatprep.subr.bf16.mxu0 0
    %1120 = vmatpush1.bf16.msra.mxu0 %v775
    %1121 = vmatprep.subr.bf16.mxu0 0
    %1122 = vmatpush1.bf16.msra.mxu0 %v778
    %1123 = vmatprep.subr.bf16.mxu0 0
    %1124 = vmatpush1.bf16.msra.mxu0 %v781
    %1125 = vmatprep.subr.bf16.mxu0 0
    %1126 = vmatpush1.bf16.msra.mxu0 %v784
    %1127 = vmatprep.subr.bf16.mxu0 0
    %1128 = vmatpush1.bf16.msra.mxu0 %v787
    %1129 = vmatprep.subr.bf16.mxu0 0
    %1130 = vmatpush1.bf16.msra.mxu0 %v790
    %1131 = vmatprep.subr.bf16.mxu0 0
    %1132 = vmatpush1.bf16.msra.mxu0 %v793
    %1133 = vmatprep.mubr.bf16.mxu0 %v291
    %1134 = vmatmul.mubr.bf16.gmra.mrb[0].mxu0 %v290
    %v1135 = vpop.f32.mrb[0].mxu0
    %v1136 = vadd.f32 %v1096, %v1135
    %v1137 = vpop.f32.mrb[0].mxu0
    %v1138 = vpop.f32.mrb[0].mxu0
    %v1139 = vpop.f32.mrb[0].mxu0
    %1140 = vdwg.mxu0
    %1141 = vmatprep.subr.bf16.mxu0 0
    %1142 = vmatpush1.bf16.msra.mxu0 %v796
    %1143 = vmatprep.subr.bf16.mxu0 0
    %1144 = vmatpush1.bf16.msra.mxu0 %v799
    %1145 = vmatprep.subr.bf16.mxu0 0
    %1146 = vmatpush1.bf16.msra.mxu0 %v802
    %1147 = vmatprep.subr.bf16.mxu0 0
    %1148 = vmatpush1.bf16.msra.mxu0 %v805
    %1149 = vmatprep.subr.bf16.mxu0 0
    %1150 = vmatpush1.bf16.msra.mxu0 %v808
    %1151 = vmatprep.subr.bf16.mxu0 0
    %1152 = vmatpush1.bf16.msra.mxu0 %v811
    %1153 = vmatprep.subr.bf16.mxu0 0
    %1154 = vmatpush1.bf16.msra.mxu0 %v814
    %1155 = vmatprep.subr.bf16.mxu0 0
    %1156 = vmatpush1.bf16.msra.mxu0 %v817
    %1157 = vmatprep.subr.bf16.mxu0 0
    %1158 = vmatpush1.bf16.msra.mxu0 0
    %1159 = vmatprep.subr.bf16.mxu0 0
    %1160 = vmatpush1.bf16.msra.mxu0 0
    %1161 = vmatprep.subr.bf16.mxu0 0
    %1162 = vmatpush1.bf16.msra.mxu0 0
    %1163 = vmatprep.subr.bf16.mxu0 0
    %1164 = vmatpush1.bf16.msra.mxu0 0
    %1165 = vmatprep.subr.bf16.mxu0 0
    %1166 = vmatpush1.bf16.msra.mxu0 0
    %1167 = vmatprep.subr.bf16.mxu0 0
    %1168 = vmatpush1.bf16.msra.mxu0 0
    %1169 = vmatprep.subr.bf16.mxu0 0
    %1170 = vmatpush1.bf16.msra.mxu0 0
    %1171 = vmatprep.subr.bf16.mxu0 0
    %1172 = vmatpush1.bf16.msra.mxu0 0
    %1173 = vmatprep.mubr.bf16.mxu0 0
    %1174 = vmatmul.mubr.bf16.gmra.mrb[0].mxu0 %v292
    %v1175 = vpop.f32.mrb[0].mxu0
    %v1176 = vadd.f32 %v1136, %v1175
    %v1177 = vpop.f32.mrb[0].mxu0
    %v1178 = vpop.f32.mrb[0].mxu0
    %v1179 = vpop.f32.mrb[0].mxu0
    %1180 = vdwg.mxu0
    %v1181 = vmax.f32 %v1055, 0.0
    %v1182 = vmax.f32 %v1057, 0.0
    %v1183 = vmax.f32 %v1176, 0.0
    %v1184 = vpack.c.bf16 %v1181, %v1181
    %v1185 = vpack.c.bf16 %v1182, %v1182
    %v1186 = vpack.c.bf16 %v1183, %v1183
    %v1187 = vld [vmem:[#allocation7] sm:$0xff]
    %v1188 = vld [vmem:[#allocation7 + $0x8] sm:$0xff]
    %v1189 = vld [vmem:[#allocation7 + $0x10] sm:$0xff]
    %v1190 = vld [vmem:[#allocation7 + $0x18] sm:$0xff]
    %v1191 = vld [vmem:[#allocation7 + $0x20] sm:$0xff]
    %v1192 = vld [vmem:[#allocation7 + $0x28] sm:$0xff]
    %v1193 = vld [vmem:[#allocation7 + $0x30] sm:$0xff]
    %v1194 = vld [vmem:[#allocation7 + $0x38] sm:$0xff]
    %v1195 = vld [vmem:[#allocation7 + $0x40] sm:$0xff]
    %v1196 = vld [vmem:[#allocation7 + $0x48] sm:$0xff]
    %v1197 = vld [vmem:[#allocation7 + $0x50] sm:$0xff]
    %v1198 = vld [vmem:[#allocation7 + $0x58] sm:$0xff]
    %v1199 = vld [vmem:[#allocation7 + $0x60] sm:$0xff]
    %v1200 = vld [vmem:[#allocation7 + $0x68] sm:$0xff]
    %v1201 = vld [vmem:[#allocation7 + $0x70] sm:$0xff]
    %v1202 = vld [vmem:[#allocation7 + $0x78] sm:$0xff]
    %v1203 = vld [vmem:[#allocation7 + $0x80] sm:$0xff]
    %v1204 = vld [vmem:[#allocation7 + $0x88] sm:$0xff]
    %v1205 = vld [vmem:[#allocation7 + $0x90] sm:$0xff]
    %v1206 = vld [vmem:[#allocation7 + $0x98] sm:$0xff]
    %v1207 = vld [vmem:[#allocation7 + $0xa0] sm:$0xff]
    %v1208 = vld [vmem:[#allocation7 + $0xa8] sm:$0xff]
    %v1209 = vld [vmem:[#allocation7 + $0xb0] sm:$0xff]
    %v1210 = vld [vmem:[#allocation7 + $0xb8] sm:$0xff]
    %v1211 = vld [vmem:[#allocation7 + $0xc0] sm:$0xff]
    %v1212 = vld [vmem:[#allocation7 + $0xc8] sm:$0xff]
    %v1213 = vld [vmem:[#allocation7 + $0xd0] sm:$0xff]
    %v1214 = vld [vmem:[#allocation7 + $0xd8] sm:$0xff]
    %v1215 = vld [vmem:[#allocation7 + $0xe0] sm:$0xff]
    %v1216 = vld [vmem:[#allocation7 + $0xe8] sm:$0xff]
    %v1217 = vld [vmem:[#allocation7 + $0xf0] sm:$0xff]
    %v1218 = vld [vmem:[#allocation7 + $0xf8] sm:$0xff]
    %v1219 = vld [vmem:[#allocation7 + $0x100] sm:$0xff]
    %v1220 = vld [vmem:[#allocation7 + $0x108] sm:$0xff]
    %v1221 = vld [vmem:[#allocation7 + $0x110] sm:$0xff]
    %v1222 = vld [vmem:[#allocation7 + $0x118] sm:$0xff]
    %v1223 = vld [vmem:[#allocation7 + $0x120] sm:$0xff]
    %v1224 = vld [vmem:[#allocation7 + $0x128] sm:$0xff]
    %v1225 = vld [vmem:[#allocation7 + $0x130] sm:$0xff]
    %v1226 = vld [vmem:[#allocation7 + $0x138] sm:$0xff]
    %v1227 = vld [vmem:[#allocation7 + $0x140] sm:$0xff]
    %v1228 = vld [vmem:[#allocation7 + $0x148] sm:$0xff]
    %v1229 = vld [vmem:[#allocation7 + $0x150] sm:$0xff]
    %v1230 = vld [vmem:[#allocation7 + $0x158] sm:$0xff]
    %v1231 = vld [vmem:[#allocation7 + $0x160] sm:$0xff]
    %v1232 = vld [vmem:[#allocation7 + $0x168] sm:$0xff]
    %v1233 = vld [vmem:[#allocation7 + $0x170] sm:$0xff]
    %v1234 = vld [vmem:[#allocation7 + $0x178] sm:$0xff]
    %v1235 = vld [vmem:[%s4] sm:$0x3]
    %v1237 = vlaneseq
    %v1238 = vshrl.u32 %v1237, 7
    %v1239 = vsub.s32 0, %v1238
    %v1240 = vrot.slane %v1235, %v1239
    %v1241 = vlaneseq
    %v1242 = vshrl.u32 %v1241, 7
    %v1243 = vsub.s32 1, %v1242
    %v1244 = vrot.slane %v1235, %v1243
    %v1295 = vunpack.c.l.b16 %v1187
    %v1296 = vunpack.c.h.b16 %v1187
    %v1297 = vunpack.c.l.b16 %v1188
    %v1298 = vunpack.c.h.b16 %v1188
    %v1299 = vunpack.c.l.b16 %v1189
    %v1300 = vunpack.c.h.b16 %v1189
    %v1301 = vunpack.c.l.b16 %v1190
    %v1302 = vunpack.c.h.b16 %v1190
    %v1303 = vunpack.c.l.b16 %v1191
    %v1304 = vunpack.c.h.b16 %v1191
    %v1305 = vunpack.c.l.b16 %v1192
    %v1306 = vunpack.c.h.b16 %v1192
    %v1307 = vunpack.c.l.b16 %v1193
    %v1308 = vunpack.c.h.b16 %v1193
    %v1309 = vunpack.c.l.b16 %v1194
    %v1310 = vunpack.c.h.b16 %v1194
    %v1311 = vunpack.c.l.b16 %v1195
    %v1312 = vunpack.c.h.b16 %v1195
    %v1313 = vunpack.c.l.b16 %v1196
    %v1314 = vunpack.c.h.b16 %v1196
    %v1315 = vunpack.c.l.b16 %v1197
    %v1316 = vunpack.c.h.b16 %v1197
    %v1317 = vunpack.c.l.b16 %v1198
    %v1318 = vunpack.c.h.b16 %v1198
    %v1319 = vunpack.c.l.b16 %v1199
    %v1320 = vunpack.c.h.b16 %v1199
    %v1321 = vunpack.c.l.b16 %v1200
    %v1322 = vunpack.c.h.b16 %v1200
    %v1323 = vunpack.c.l.b16 %v1201
    %v1324 = vunpack.c.h.b16 %v1201
    %v1325 = vunpack.c.l.b16 %v1202
    %v1326 = vunpack.c.h.b16 %v1202
    %v1327 = vunpack.c.l.b16 %v1203
    %v1328 = vunpack.c.h.b16 %v1203
    %v1329 = vunpack.c.l.b16 %v1204
    %v1330 = vunpack.c.h.b16 %v1204
    %v1331 = vunpack.c.l.b16 %v1205
    %v1332 = vunpack.c.h.b16 %v1205
    %v1333 = vunpack.c.l.b16 %v1206
    %v1334 = vunpack.c.h.b16 %v1206
    %v1335 = vunpack.c.l.b16 %v1207
    %v1336 = vunpack.c.h.b16 %v1207
    %v1337 = vunpack.c.l.b16 %v1208
    %v1338 = vunpack.c.h.b16 %v1208
    %v1339 = vunpack.c.l.b16 %v1209
    %v1340 = vunpack.c.h.b16 %v1209
    %v1341 = vunpack.c.l.b16 %v1210
    %v1342 = vunpack.c.h.b16 %v1210
    %v1343 = vunpack.c.l.b16 %v1211
    %v1344 = vunpack.c.h.b16 %v1211
    %v1345 = vunpack.c.l.b16 %v1212
    %v1346 = vunpack.c.h.b16 %v1212
    %v1347 = vunpack.c.l.b16 %v1213
    %v1348 = vunpack.c.h.b16 %v1213
    %v1349 = vunpack.c.l.b16 %v1214
    %v1350 = vunpack.c.h.b16 %v1214
    %v1351 = vunpack.c.l.b16 %v1215
    %v1352 = vunpack.c.h.b16 %v1215
    %v1353 = vunpack.c.l.b16 %v1216
    %v1354 = vunpack.c.h.b16 %v1216
    %v1355 = vunpack.c.l.b16 %v1217
    %v1356 = vunpack.c.h.b16 %v1217
    %v1357 = vunpack.c.l.b16 %v1218
    %v1358 = vunpack.c.h.b16 %v1218
    %v1359 = vunpack.c.l.b16 %v1219
    %v1360 = vunpack.c.h.b16 %v1219
    %v1361 = vunpack.c.l.b16 %v1220
    %v1362 = vunpack.c.h.b16 %v1220
    %v1363 = vunpack.c.l.b16 %v1221
    %v1364 = vunpack.c.h.b16 %v1221
    %v1365 = vunpack.c.l.b16 %v1222
    %v1366 = vunpack.c.h.b16 %v1222
    %v1367 = vunpack.c.l.b16 %v1223
    %v1368 = vunpack.c.h.b16 %v1223
    %v1369 = vunpack.c.l.b16 %v1224
    %v1370 = vunpack.c.h.b16 %v1224
    %v1371 = vunpack.c.l.b16 %v1225
    %v1372 = vunpack.c.h.b16 %v1225
    %v1373 = vunpack.c.l.b16 %v1226
    %v1374 = vunpack.c.h.b16 %v1226
    %v1375 = vunpack.c.l.b16 %v1227
    %v1376 = vunpack.c.h.b16 %v1227
    %v1377 = vunpack.c.l.b16 %v1228
    %v1378 = vunpack.c.h.b16 %v1228
    %v1379 = vunpack.c.l.b16 %v1229
    %v1380 = vunpack.c.h.b16 %v1229
    %v1381 = vunpack.c.l.b16 %v1230
    %v1382 = vunpack.c.h.b16 %v1230
    %v1383 = vunpack.c.l.b16 %v1231
    %v1384 = vunpack.c.h.b16 %v1231
    %v1385 = vunpack.c.l.b16 %v1232
    %v1386 = vunpack.c.h.b16 %v1232
    %v1387 = vunpack.c.l.b16 %v1233
    %v1388 = vunpack.c.h.b16 %v1233
    %v1389 = vunpack.c.l.b16 %v1234
    %v1390 = vunpack.c.h.b16 %v1234
    %v1391 = vpack.c.b16 %v1297, %v1295
    %v1392 = vpack.c.b16 %v1298, %v1296
    %v1393 = vpack.c.b16 %v1301, %v1299
    %v1394 = vpack.c.b16 %v1302, %v1300
    %v1395 = vpack.c.b16 %v1305, %v1303
    %v1396 = vpack.c.b16 %v1306, %v1304
    %v1397 = vpack.c.b16 %v1309, %v1307
    %v1398 = vpack.c.b16 %v1310, %v1308
    %v1399 = vpack.c.b16 %v1313, %v1311
    %v1400 = vpack.c.b16 %v1314, %v1312
    %v1401 = vpack.c.b16 %v1317, %v1315
    %v1402 = vpack.c.b16 %v1318, %v1316
    %v1403 = vpack.c.b16 %v1321, %v1319
    %v1404 = vpack.c.b16 %v1322, %v1320
    %v1405 = vpack.c.b16 %v1325, %v1323
    %v1406 = vpack.c.b16 %v1326, %v1324
    %v1407 = vpack.c.b16 %v1329, %v1327
    %v1408 = vpack.c.b16 %v1330, %v1328
    %v1409 = vpack.c.b16 %v1333, %v1331
    %v1410 = vpack.c.b16 %v1334, %v1332
    %v1411 = vpack.c.b16 %v1337, %v1335
    %v1412 = vpack.c.b16 %v1338, %v1336
    %v1413 = vpack.c.b16 %v1341, %v1339
    %v1414 = vpack.c.b16 %v1342, %v1340
    %v1415 = vpack.c.b16 %v1345, %v1343
    %v1416 = vpack.c.b16 %v1346, %v1344
    %v1417 = vpack.c.b16 %v1349, %v1347
    %v1418 = vpack.c.b16 %v1350, %v1348
    %v1419 = vpack.c.b16 %v1353, %v1351
    %v1420 = vpack.c.b16 %v1354, %v1352
    %v1421 = vpack.c.b16 %v1357, %v1355
    %v1422 = vpack.c.b16 %v1358, %v1356
    %v1423 = vpack.c.b16 %v1361, %v1359
    %v1424 = vpack.c.b16 %v1362, %v1360
    %v1425 = vpack.c.b16 %v1365, %v1363
    %v1426 = vpack.c.b16 %v1366, %v1364
    %v1427 = vpack.c.b16 %v1369, %v1367
    %v1428 = vpack.c.b16 %v1370, %v1368
    %v1429 = vpack.c.b16 %v1373, %v1371
    %v1430 = vpack.c.b16 %v1374, %v1372
    %v1431 = vpack.c.b16 %v1377, %v1375
    %v1432 = vpack.c.b16 %v1378, %v1376
    %v1433 = vpack.c.b16 %v1381, %v1379
    %v1434 = vpack.c.b16 %v1382, %v1380
    %v1435 = vpack.c.b16 %v1385, %v1383
    %v1436 = vpack.c.b16 %v1386, %v1384
    %v1437 = vpack.c.b16 %v1389, %v1387
    %v1438 = vpack.c.b16 %v1390, %v1388
    %1487 = vmatprep.subr.bf16.mxu0 %v1392
    %1488 = vmatpush1.bf16.msra.mxu0 %v1391
    %1489 = vmatprep.subr.bf16.mxu0 %v1394
    %1490 = vmatpush1.bf16.msra.mxu0 %v1393
    %1491 = vmatprep.subr.bf16.mxu0 %v1396
    %1492 = vmatpush1.bf16.msra.mxu0 %v1395
    %1493 = vmatprep.subr.bf16.mxu0 %v1398
    %1494 = vmatpush1.bf16.msra.mxu0 %v1397
    %1495 = vmatprep.subr.bf16.mxu0 %v1400
    %1496 = vmatpush1.bf16.msra.mxu0 %v1399
    %1497 = vmatprep.subr.bf16.mxu0 %v1402
    %1498 = vmatpush1.bf16.msra.mxu0 %v1401
    %1499 = vmatprep.subr.bf16.mxu0 %v1404
    %1500 = vmatpush1.bf16.msra.mxu0 %v1403
    %1501 = vmatprep.subr.bf16.mxu0 %v1406
    %1502 = vmatpush1.bf16.msra.mxu0 %v1405
    %1503 = vmatprep.subr.bf16.mxu0 %v1408
    %1504 = vmatpush1.bf16.msra.mxu0 %v1407
    %1505 = vmatprep.subr.bf16.mxu0 %v1410
    %1506 = vmatpush1.bf16.msra.mxu0 %v1409
    %1507 = vmatprep.subr.bf16.mxu0 %v1412
    %1508 = vmatpush1.bf16.msra.mxu0 %v1411
    %1509 = vmatprep.subr.bf16.mxu0 %v1414
    %1510 = vmatpush1.bf16.msra.mxu0 %v1413
    %1511 = vmatprep.subr.bf16.mxu0 %v1416
    %1512 = vmatpush1.bf16.msra.mxu0 %v1415
    %1513 = vmatprep.subr.bf16.mxu0 %v1418
    %1514 = vmatpush1.bf16.msra.mxu0 %v1417
    %1515 = vmatprep.subr.bf16.mxu0 %v1420
    %1516 = vmatpush1.bf16.msra.mxu0 %v1419
    %1517 = vmatprep.subr.bf16.mxu0 %v1422
    %1518 = vmatpush1.bf16.msra.mxu0 %v1421
    %1519 = vmatprep.mubr.bf16.mxu0 %v1185
    %1520 = vmatmul.mubr.bf16.gmra.mrb[0].mxu0 %v1184
    %v1521 = vpop.f32.mrb[0].mxu0
    %v1522 = vadd.f32 %v1240, %v1521
    %v1523 = vpop.f32.mrb[0].mxu0
    %v1524 = vadd.f32 %v1244, %v1523
    %v1525 = vpop.f32.mrb[0].mxu0
    %v1526 = vpop.f32.mrb[0].mxu0
    %1527 = vdwg.mxu0
    %1528 = vmatprep.subr.bf16.mxu0 %v1424
    %1529 = vmatpush1.bf16.msra.mxu0 %v1423
    %1530 = vmatprep.subr.bf16.mxu0 %v1426
    %1531 = vmatpush1.bf16.msra.mxu0 %v1425
    %1532 = vmatprep.subr.bf16.mxu0 %v1428
    %1533 = vmatpush1.bf16.msra.mxu0 %v1427
    %1534 = vmatprep.subr.bf16.mxu0 %v1430
    %1535 = vmatpush1.bf16.msra.mxu0 %v1429
    %1536 = vmatprep.subr.bf16.mxu0 %v1432
    %1537 = vmatpush1.bf16.msra.mxu0 %v1431
    %1538 = vmatprep.subr.bf16.mxu0 %v1434
    %1539 = vmatpush1.bf16.msra.mxu0 %v1433
    %1540 = vmatprep.subr.bf16.mxu0 %v1436
    %1541 = vmatpush1.bf16.msra.mxu0 %v1435
    %1542 = vmatprep.subr.bf16.mxu0 %v1438
    %1543 = vmatpush1.bf16.msra.mxu0 %v1437
    %1544 = vmatprep.subr.bf16.mxu0 0
    %1545 = vmatpush1.bf16.msra.mxu0 0
    %1546 = vmatprep.subr.bf16.mxu0 0
    %1547 = vmatpush1.bf16.msra.mxu0 0
    %1548 = vmatprep.subr.bf16.mxu0 0
    %1549 = vmatpush1.bf16.msra.mxu0 0
    %1550 = vmatprep.subr.bf16.mxu0 0
    %1551 = vmatpush1.bf16.msra.mxu0 0
    %1552 = vmatprep.subr.bf16.mxu0 0
    %1553 = vmatpush1.bf16.msra.mxu0 0
    %1554 = vmatprep.subr.bf16.mxu0 0
    %1555 = vmatpush1.bf16.msra.mxu0 0
    %1556 = vmatprep.subr.bf16.mxu0 0
    %1557 = vmatpush1.bf16.msra.mxu0 0
    %1558 = vmatprep.subr.bf16.mxu0 0
    %1559 = vmatpush1.bf16.msra.mxu0 0
    %1560 = vmatprep.mubr.bf16.mxu0 0
    %1561 = vmatmul.mubr.bf16.gmra.mrb[0].mxu0 %v1186
    %v1562 = vpop.f32.mrb[0].mxu0
    %v1563 = vadd.f32 %v1522, %v1562
    %v1564 = vpop.f32.mrb[0].mxu0
    %v1565 = vadd.f32 %v1524, %v1564
    %v1566 = vpop.f32.mrb[0].mxu0
    %v1567 = vpop.f32.mrb[0].mxu0
    %1568 = vdwg.mxu0
    %v1569 = vmax.f32 %v1563, 0.0
    %v1570 = vmax.f32 %v1565, 0.0
    %v1571 = vpack.c.bf16 %v1569, %v1569
    %v1572 = vpack.c.bf16 %v1570, %v1570
    %v1573 = vld [vmem:[#allocation8] sm:$0xf]
    %v1574 = vld [vmem:[#allocation8 + $0x4] sm:$0xf]
    %v1575 = vld [vmem:[#allocation8 + $0x8] sm:$0xf]
    %v1576 = vld [vmem:[#allocation8 + $0xc] sm:$0xf]
    %v1577 = vld [vmem:[#allocation8 + $0x10] sm:$0xf]
    %v1578 = vld [vmem:[#allocation8 + $0x14] sm:$0xf]
    %v1579 = vld [vmem:[#allocation8 + $0x18] sm:$0xf]
    %v1580 = vld [vmem:[#allocation8 + $0x1c] sm:$0xf]
    %v1581 = vld [vmem:[#allocation8 + $0x20] sm:$0xf]
    %v1582 = vld [vmem:[#allocation8 + $0x24] sm:$0xf]
    %v1583 = vld [vmem:[#allocation8 + $0x28] sm:$0xf]
    %v1584 = vld [vmem:[#allocation8 + $0x2c] sm:$0xf]
    %v1585 = vld [vmem:[#allocation8 + $0x30] sm:$0xf]
    %v1586 = vld [vmem:[#allocation8 + $0x34] sm:$0xf]
    %v1587 = vld [vmem:[#allocation8 + $0x38] sm:$0xf]
    %v1588 = vld [vmem:[#allocation8 + $0x3c] sm:$0xf]
    %v1589 = vld [vmem:[#allocation8 + $0x40] sm:$0xf]
    %v1590 = vld [vmem:[#allocation8 + $0x44] sm:$0xf]
    %v1591 = vld [vmem:[#allocation8 + $0x48] sm:$0xf]
    %v1592 = vld [vmem:[#allocation8 + $0x4c] sm:$0xf]
    %v1593 = vld [vmem:[#allocation8 + $0x50] sm:$0xf]
    %v1594 = vld [vmem:[#allocation8 + $0x54] sm:$0xf]
    %v1595 = vld [vmem:[#allocation8 + $0x58] sm:$0xf]
    %v1596 = vld [vmem:[#allocation8 + $0x5c] sm:$0xf]
    %v1597 = vld [vmem:[#allocation8 + $0x60] sm:$0xf]
    %v1598 = vld [vmem:[#allocation8 + $0x64] sm:$0xf]
    %v1599 = vld [vmem:[#allocation8 + $0x68] sm:$0xf]
    %v1600 = vld [vmem:[#allocation8 + $0x6c] sm:$0xf]
    %v1601 = vld [vmem:[#allocation8 + $0x70] sm:$0xf]
    %v1602 = vld [vmem:[#allocation8 + $0x74] sm:$0xf]
    %v1603 = vld [vmem:[#allocation8 + $0x78] sm:$0xf]
    %v1604 = vld [vmem:[#allocation8 + $0x7c] sm:$0xf]
    %v1605 = vld [vmem:[%s6] sm:$0x1]
    %v1607 = vlaneseq
    %v1608 = vshrl.u32 %v1607, 7
    %v1609 = vsub.s32 0, %v1608
    %v1610 = vrot.slane %v1605, %v1609
    %v1644 = vunpack.c.l.b16 %v1573
    %v1645 = vunpack.c.l.b16 %v1574
    %v1646 = vunpack.c.l.b16 %v1575
    %v1647 = vunpack.c.l.b16 %v1576
    %v1648 = vunpack.c.l.b16 %v1577
    %v1649 = vunpack.c.l.b16 %v1578
    %v1650 = vunpack.c.l.b16 %v1579
    %v1651 = vunpack.c.l.b16 %v1580
    %v1652 = vunpack.c.l.b16 %v1581
    %v1653 = vunpack.c.l.b16 %v1582
    %v1654 = vunpack.c.l.b16 %v1583
    %v1655 = vunpack.c.l.b16 %v1584
    %v1656 = vunpack.c.l.b16 %v1585
    %v1657 = vunpack.c.l.b16 %v1586
    %v1658 = vunpack.c.l.b16 %v1587
    %v1659 = vunpack.c.l.b16 %v1588
    %v1660 = vunpack.c.l.b16 %v1589
    %v1661 = vunpack.c.l.b16 %v1590
    %v1662 = vunpack.c.l.b16 %v1591
    %v1663 = vunpack.c.l.b16 %v1592
    %v1664 = vunpack.c.l.b16 %v1593
    %v1665 = vunpack.c.l.b16 %v1594
    %v1666 = vunpack.c.l.b16 %v1595
    %v1667 = vunpack.c.l.b16 %v1596
    %v1668 = vunpack.c.l.b16 %v1597
    %v1669 = vunpack.c.l.b16 %v1598
    %v1670 = vunpack.c.l.b16 %v1599
    %v1671 = vunpack.c.l.b16 %v1600
    %v1672 = vunpack.c.l.b16 %v1601
    %v1673 = vunpack.c.l.b16 %v1602
    %v1674 = vunpack.c.l.b16 %v1603
    %v1675 = vunpack.c.l.b16 %v1604
    %v1676 = vpack.c.b16 %v1645, %v1644
    %v1677 = vpack.c.b16 %v1647, %v1646
    %v1678 = vpack.c.b16 %v1649, %v1648
    %v1679 = vpack.c.b16 %v1651, %v1650
    %v1680 = vpack.c.b16 %v1653, %v1652
    %v1681 = vpack.c.b16 %v1655, %v1654
    %v1682 = vpack.c.b16 %v1657, %v1656
    %v1683 = vpack.c.b16 %v1659, %v1658
    %v1684 = vpack.c.b16 %v1661, %v1660
    %v1685 = vpack.c.b16 %v1663, %v1662
    %v1686 = vpack.c.b16 %v1665, %v1664
    %v1687 = vpack.c.b16 %v1667, %v1666
    %v1688 = vpack.c.b16 %v1669, %v1668
    %v1689 = vpack.c.b16 %v1671, %v1670
    %v1690 = vpack.c.b16 %v1673, %v1672
    %v1691 = vpack.c.b16 %v1675, %v1674
    %1708 = vmatprep.subr.bf16.mxu0 0
    %1709 = vmatpush1.bf16.msra.mxu0 %v1676
    %1710 = vmatprep.subr.bf16.mxu0 0
    %1711 = vmatpush1.bf16.msra.mxu0 %v1677
    %1712 = vmatprep.subr.bf16.mxu0 0
    %1713 = vmatpush1.bf16.msra.mxu0 %v1678
    %1714 = vmatprep.subr.bf16.mxu0 0
    %1715 = vmatpush1.bf16.msra.mxu0 %v1679
    %1716 = vmatprep.subr.bf16.mxu0 0
    %1717 = vmatpush1.bf16.msra.mxu0 %v1680
    %1718 = vmatprep.subr.bf16.mxu0 0
    %1719 = vmatpush1.bf16.msra.mxu0 %v1681
    %1720 = vmatprep.subr.bf16.mxu0 0
    %1721 = vmatpush1.bf16.msra.mxu0 %v1682
    %1722 = vmatprep.subr.bf16.mxu0 0
    %1723 = vmatpush1.bf16.msra.mxu0 %v1683
    %1724 = vmatprep.subr.bf16.mxu0 0
    %1725 = vmatpush1.bf16.msra.mxu0 %v1684
    %1726 = vmatprep.subr.bf16.mxu0 0
    %1727 = vmatpush1.bf16.msra.mxu0 %v1685
    %1728 = vmatprep.subr.bf16.mxu0 0
    %1729 = vmatpush1.bf16.msra.mxu0 %v1686
    %1730 = vmatprep.subr.bf16.mxu0 0
    %1731 = vmatpush1.bf16.msra.mxu0 %v1687
    %1732 = vmatprep.subr.bf16.mxu0 0
    %1733 = vmatpush1.bf16.msra.mxu0 %v1688
    %1734 = vmatprep.subr.bf16.mxu0 0
    %1735 = vmatpush1.bf16.msra.mxu0 %v1689
    %1736 = vmatprep.subr.bf16.mxu0 0
    %1737 = vmatpush1.bf16.msra.mxu0 %v1690
    %1738 = vmatprep.subr.bf16.mxu0 0
    %1739 = vmatpush1.bf16.msra.mxu0 %v1691
    %1740 = vmatprep.mubr.bf16.mxu0 %v1572
    %1741 = vmatmul.mubr.bf16.gmra.mrb[0].mxu0 %v1571
    %v1742 = vpop.f32.mrb[0].mxu0
    %v1743 = vadd.f32 %v1610, %v1742
    %v1744 = vpop.f32.mrb[0].mxu0
    %v1745 = vpop.f32.mrb[0].mxu0
    %v1746 = vpop.f32.mrb[0].mxu0
    %1747 = vdwg.mxu0
    %v1748 = vmax.f32 %v1743, 0.0
    %v1749 = vpack.c.bf16 %v1748, %v1748
    %v1750 = vld [vmem:[#allocation10] sm:$0xf]
    %v1751 = vld [vmem:[#allocation10 + $0x4] sm:$0xf]
    %v1752 = vld [vmem:[#allocation10 + $0x8] sm:$0xf]
    %v1753 = vld [vmem:[#allocation10 + $0xc] sm:$0xf]
    %v1754 = vld [vmem:[#allocation10 + $0x10] sm:$0xf]
    %v1755 = vld [vmem:[#allocation10 + $0x14] sm:$0xf]
    %v1756 = vld [vmem:[#allocation10 + $0x18] sm:$0xf]
    %v1757 = vld [vmem:[#allocation10 + $0x1c] sm:$0xf]
    %v1758 = vld [vmem:[#allocation10 + $0x20] sm:$0xf]
    %v1759 = vld [vmem:[#allocation10 + $0x24] sm:$0xf]
    %v1760 = vld [vmem:[#allocation10 + $0x28] sm:$0xf]
    %v1761 = vld [vmem:[#allocation10 + $0x2c] sm:$0xf]
    %v1762 = vld [vmem:[#allocation10 + $0x30] sm:$0xf]
    %v1763 = vld [vmem:[#allocation10 + $0x34] sm:$0xf]
    %v1764 = vld [vmem:[#allocation10 + $0x38] sm:$0xf]
    %v1765 = vld [vmem:[#allocation10 + $0x3c] sm:$0xf]
    %v1766 = vld [vmem:[%s8] sm:$0x1]
    %v1768 = vlaneseq
    %v1769 = vshrl.u32 %v1768, 7
    %v1770 = vsub.s32 0, %v1769
    %v1771 = vrot.slane %v1766, %v1770
    %v1789 = vunpack.c.l.b16 %v1750
    %v1790 = vunpack.c.l.b16 %v1751
    %v1791 = vunpack.c.l.b16 %v1752
    %v1792 = vunpack.c.l.b16 %v1753
    %v1793 = vunpack.c.l.b16 %v1754
    %v1794 = vunpack.c.l.b16 %v1755
    %v1795 = vunpack.c.l.b16 %v1756
    %v1796 = vunpack.c.l.b16 %v1757
    %v1797 = vunpack.c.l.b16 %v1758
    %v1798 = vunpack.c.l.b16 %v1759
    %v1799 = vunpack.c.l.b16 %v1760
    %v1800 = vunpack.c.l.b16 %v1761
    %v1801 = vunpack.c.l.b16 %v1762
    %v1802 = vunpack.c.l.b16 %v1763
    %v1803 = vunpack.c.l.b16 %v1764
    %v1804 = vunpack.c.l.b16 %v1765
    %v1805 = vpack.c.b16 %v1790, %v1789
    %v1806 = vpack.c.b16 %v1792, %v1791
    %v1807 = vpack.c.b16 %v1794, %v1793
    %v1808 = vpack.c.b16 %v1796, %v1795
    %v1809 = vpack.c.b16 %v1798, %v1797
    %v1810 = vpack.c.b16 %v1800, %v1799
    %v1811 = vpack.c.b16 %v1802, %v1801
    %v1812 = vpack.c.b16 %v1804, %v1803
    %1821 = vmatprep.subr.bf16.mxu0 0
    %1822 = vmatpush1.bf16.msra.mxu0 %v1805
    %1823 = vmatprep.subr.bf16.mxu0 0
    %1824 = vmatpush1.bf16.msra.mxu0 %v1806
    %1825 = vmatprep.subr.bf16.mxu0 0
    %1826 = vmatpush1.bf16.msra.mxu0 %v1807
    %1827 = vmatprep.subr.bf16.mxu0 0
    %1828 = vmatpush1.bf16.msra.mxu0 %v1808
    %1829 = vmatprep.subr.bf16.mxu0 0
    %1830 = vmatpush1.bf16.msra.mxu0 %v1809
    %1831 = vmatprep.subr.bf16.mxu0 0
    %1832 = vmatpush1.bf16.msra.mxu0 %v1810
    %1833 = vmatprep.subr.bf16.mxu0 0
    %1834 = vmatpush1.bf16.msra.mxu0 %v1811
    %1835 = vmatprep.subr.bf16.mxu0 0
    %1836 = vmatpush1.bf16.msra.mxu0 %v1812
    %1837 = vmatprep.subr.bf16.mxu0 0
    %1838 = vmatpush1.bf16.msra.mxu0 0
    %1839 = vmatprep.subr.bf16.mxu0 0
    %1840 = vmatpush1.bf16.msra.mxu0 0
    %1841 = vmatprep.subr.bf16.mxu0 0
    %1842 = vmatpush1.bf16.msra.mxu0 0
    %1843 = vmatprep.subr.bf16.mxu0 0
    %1844 = vmatpush1.bf16.msra.mxu0 0
    %1845 = vmatprep.subr.bf16.mxu0 0
    %1846 = vmatpush1.bf16.msra.mxu0 0
    %1847 = vmatprep.subr.bf16.mxu0 0
    %1848 = vmatpush1.bf16.msra.mxu0 0
    %1849 = vmatprep.subr.bf16.mxu0 0
    %1850 = vmatpush1.bf16.msra.mxu0 0
    %1851 = vmatprep.subr.bf16.mxu0 0
    %1852 = vmatpush1.bf16.msra.mxu0 0
    %1853 = vmatprep.mubr.bf16.mxu0 0
    %1854 = vmatmul.mubr.bf16.gmra.mrb[0].mxu0 %v1749
    %v1855 = vpop.f32.mrb[0].mxu0
    %v1856 = vadd.f32 %v1771, %v1855
    %v1857 = vpop.f32.mrb[0].mxu0
    %v1858 = vpop.f32.mrb[0].mxu0
    %v1859 = vpop.f32.mrb[0].mxu0
    %1860 = vdwg.mxu0
    %v1861 = vmax.f32 %v1856, 0.0
    %1862 = vst [vmem:[#allocation11] sm:$0xff] %v1861
    // Predicated region
    $region58: #{tpu_custom_call.1} parent=1 // pred_check
      _
    $region59: #{tpu_custom_call.1} parent=1 // pred_check_branch
      %1864 = sbr.rel (0) target = $region61
    $region60: #{tpu_custom_call.1} parent=1 // pred_region
      %s1866 = ssub.s32 128, 128
      %1867 = vsyncadd [#allocation4], %s1866
      %s1869 = sshll.u32 [#allocation11], 4
      %s1870 = int_to_ptr.vmem [resolvable:$true] %s1869
      %1872 = dma.vmem_to_hbm [thread:$0]  %s1870, 128, %s9, [#allocation4]
    $region61: #{tpu_custom_call.1} parent=1 // pred_fallthru
      _
    // Predicated region
    $region62: #{tpu_custom_call.1} parent=1 // pred_check
      _
    $region63: #{tpu_custom_call.1} parent=1 // pred_check_branch
      %1874 = sbr.rel (0) target = $region65
    $region64: #{tpu_custom_call.1} parent=1 // pred_region
      %1875 = dma.done [#allocation4], 128
    $region65: #{tpu_custom_call.1} parent=1 // pred_fallthru
      _
    %1876 = vsyncpa [#allocation3], 1
    %1877 = vsyncpa [#allocation6], 1
    %1878 = vsyncpa [#allocation9], 1
    %1879 = vsyncpa [#allocation4], 1

// kernel: tpu_custom_call.1
$region0: #{tpu_custom_call.1}
  #allocation0 [shape = 'u32[]', space=smem, size = 0x4, offset = 0x4, fixed_abs, tag = 'smem constant byte address 0x4 - core index']
  #allocation1 [shape = 'u32[144,128]{1,0:T(1,128)}', space=vmem, size = 0x12000, scoped, tag = 'internal scratch']
  %s0 = inlined_call_operand.hbm [shape: bf16[8,640], index: 0, kind: input, shape index: {}]
  %s1 = inlined_call_operand.hbm [shape: bf16[640,384], index: 1, kind: input, shape index: {}]
  %s2 = inlined_call_operand.vmem [shape: f32[1,384], index: 2, kind: input, shape index: {}]
  %s3 = inlined_call_operand.hbm [shape: bf16[384,256], index: 3, kind: input, shape index: {}]
  %s4 = inlined_call_operand.vmem [shape: f32[1,256], index: 4, kind: input, shape index: {}]
  %s5 = inlined_call_operand.hbm [shape: bf16[256,128], index: 5, kind: input, shape index: {}]
  %s6 = inlined_call_operand.vmem [shape: f32[1,128], index: 6, kind: input, shape index: {}]
  %s7 = inlined_call_operand.hbm [shape: bf16[128,128], index: 7, kind: input, shape index: {}]
  %s8 = inlined_call_operand.vmem [shape: f32[1,128], index: 8, kind: input, shape index: {}]
  %s9 = inlined_call_operand.hbm [shape: f32[8,128], index: 9, kind: output, shape index: {}]
  %s10 = sld [smem:[#allocation0]]
  $region66: #{tpu_custom_call.1} parent=0
    _
  %s12 = ssub.s32 1, %s10
  %s13 = scalar_select 0, %s12, %s10
  $region1: #{tpu_custom_call.1} parent=0
    #allocation2 [shape = 'u8[10240]{0}', space=vmem, size = 0x2800, scoped, tag = 'input window, operand 0, single buffered']
    #allocation3 [shape = 's32[1]{0}', space=sflag, size = 0x4, scoped, tag = 'scoped memory for tpu_custom_call.1']
    #allocation4 [shape = 's32[1]{0}', space=sflag, size = 0x4, scoped, tag = 'scoped memory for tpu_custom_call.1']
    #allocation5 [shape = 'u8[491520]{0}', space=vmem, size = 0x78000, scoped, tag = 'input window, operand 1, single buffered']
    #allocation6 [shape = 's32[1]{0}', space=sflag, size = 0x4, scoped, tag = 'scoped memory for tpu_custom_call.1']
    #allocation7 [shape = 'u8[196608]{0}', space=vmem, size = 0x30000, scoped, tag = 'input window, operand 3, single buffered']
    #allocation8 [shape = 'u8[65536]{0}', space=vmem, size = 0x10000, scoped, tag = 'input window, operand 5, single buffered']
    #allocation9 [shape = 's32[1]{0}', space=sflag, size = 0x4, scoped, tag = 'scoped memory for tpu_custom_call.1']
    #allocation10 [shape = 'u8[32768]{0}', space=vmem, size = 0x8000, scoped, tag = 'input window, operand 7, single buffered']
    #allocation11 [shape = 'u8[4096]{0}', space=vmem, size = 0x1000, scoped, tag = 'output window, operand 0, single buffered']
    %14 = vsyncpa [#allocation3], 0
    %15 = vsyncpa [#allocation6], 0
    %16 = vsyncpa [#allocation9], 0
    %17 = vsyncpa [#allocation4], 0
    // Predicated region
    $region2: #{tpu_custom_call.1} parent=1 // pred_check
      _
    $region3: #{tpu_custom_call.1} parent=1 // pred_check_branch
      %19 = sbr.rel (0) target = $region5
    $region4: #{tpu_custom_call.1} parent=1 // pred_region
      %s21 = ssub.s32 320, 320
      %22 = vsyncadd [#allocation3], %s21
      %s24 = sshll.u32 [#allocation2], 4
      %s25 = int_to_ptr.vmem [resolvable:$true] %s24
      %27 = dma.hbm_to_vmem [thread:$0]  %s0, 320, %s25, [#allocation3]
    $region5: #{tpu_custom_call.1} parent=1 // pred_fallthru
      _
    // Predicated region
    $region6: #{tpu_custom_call.1} parent=1 // pred_check
      _
    $region7: #{tpu_custom_call.1} parent=1 // pred_check_branch
      %29 = sbr.rel (0) target = $region9
    $region8: #{tpu_custom_call.1} parent=1 // pred_region
      %s31 = ssub.s32 15360, 15360
      %32 = vsyncadd [#allocation6], %s31
      %s33 = sshll.u32 [#allocation5], 4
      %s34 = int_to_ptr.vmem [resolvable:$true] %s33
      %39 = dma.hbm_to_vmem [thread:$0]  %s1, 15360, %s34, [#allocation6], 192, 192, 12
    $region9: #{tpu_custom_call.1} parent=1 // pred_fallthru
      _
    // Predicated region
    $region10: #{tpu_custom_call.1} parent=1 // pred_check
      _
    $region11: #{tpu_custom_call.1} parent=1 // pred_check_branch
      %41 = sbr.rel (0) target = $region13
    $region12: #{tpu_custom_call.1} parent=1 // pred_region
      _
    $region13: #{tpu_custom_call.1} parent=1 // pred_fallthru
      _
    // Predicated region
    $region14: #{tpu_custom_call.1} parent=1 // pred_check
      _
    $region15: #{tpu_custom_call.1} parent=1 // pred_check_branch
      %43 = sbr.rel (0) target = $region17
    $region16: #{tpu_custom_call.1} parent=1 // pred_region
      %s45 = ssub.s32 6144, 6144
      %46 = vsyncadd [#allocation6], %s45
      %s47 = sshll.u32 [#allocation7], 4
      %s48 = int_to_ptr.vmem [resolvable:$true] %s47
      %53 = dma.hbm_to_vmem [thread:$0]  %s3, 6144, %s48, [#allocation6], 128, 128, 8
    $region17: #{tpu_custom_call.1} parent=1 // pred_fallthru
      _
    // Predicated region
    $region18: #{tpu_custom_call.1} parent=1 // pred_check
      _
    $region19: #{tpu_custom_call.1} parent=1 // pred_check_branch
      %55 = sbr.rel (0) target = $region21
    $region20: #{tpu_custom_call.1} parent=1 // pred_region
      _
    $region21: #{tpu_custom_call.1} parent=1 // pred_fallthru
      _
    // Predicated region
    $region22: #{tpu_custom_call.1} parent=1 // pred_check
      _
    $region23: #{tpu_custom_call.1} parent=1 // pred_check_branch
      %57 = sbr.rel (0) target = $region25
    $region24: #{tpu_custom_call.1} parent=1 // pred_region
      %s59 = ssub.s32 2048, 2048
      %60 = vsyncadd [#allocation9], %s59
      %s61 = sshll.u32 [#allocation8], 4
      %s62 = int_to_ptr.vmem [resolvable:$true] %s61
      %67 = dma.hbm_to_vmem [thread:$0]  %s5, 2048, %s62, [#allocation9], 64, 64, 4
    $region25: #{tpu_custom_call.1} parent=1 // pred_fallthru
      _
    // Predicated region
    $region26: #{tpu_custom_call.1} parent=1 // pred_check
      _
    $region27: #{tpu_custom_call.1} parent=1 // pred_check_branch
      %69 = sbr.rel (0) target = $region29
    $region28: #{tpu_custom_call.1} parent=1 // pred_region
      _
    $region29: #{tpu_custom_call.1} parent=1 // pred_fallthru
      _
    // Predicated region
    $region30: #{tpu_custom_call.1} parent=1 // pred_check
      _
    $region31: #{tpu_custom_call.1} parent=1 // pred_check_branch
      %71 = sbr.rel (0) target = $region33
    $region32: #{tpu_custom_call.1} parent=1 // pred_region
      %s73 = ssub.s32 1024, 1024
      %74 = vsyncadd [#allocation9], %s73
      %s75 = sshll.u32 [#allocation10], 4
      %s76 = int_to_ptr.vmem [resolvable:$true] %s75
      %81 = dma.hbm_to_vmem [thread:$0]  %s7, 1024, %s76, [#allocation9], 64, 64, 4
    $region33: #{tpu_custom_call.1} parent=1 // pred_fallthru
      _
    // Predicated region
    $region34: #{tpu_custom_call.1} parent=1 // pred_check
      _
    $region35: #{tpu_custom_call.1} parent=1 // pred_check_branch
      %83 = sbr.rel (0) target = $region37
    $region36: #{tpu_custom_call.1} parent=1 // pred_region
      _
    $region37: #{tpu_custom_call.1} parent=1 // pred_fallthru
      _
    // Predicated region
    $region38: #{tpu_custom_call.1} parent=1 // pred_check
      _
    $region39: #{tpu_custom_call.1} parent=1 // pred_check_branch
      %85 = sbr.rel (0) target = $region41
    $region40: #{tpu_custom_call.1} parent=1 // pred_region
      %86 = dma.done [#allocation3], 320
    $region41: #{tpu_custom_call.1} parent=1 // pred_fallthru
      _
    // Predicated region
    $region42: #{tpu_custom_call.1} parent=1 // pred_check
      _
    $region43: #{tpu_custom_call.1} parent=1 // pred_check_branch
      %88 = sbr.rel (0) target = $region45
    $region44: #{tpu_custom_call.1} parent=1 // pred_region
      %89 = dma.done [#allocation6], 15360
    $region45: #{tpu_custom_call.1} parent=1 // pred_fallthru
      _
    // Predicated region
    $region46: #{tpu_custom_call.1} parent=1 // pred_check
      _
    $region47: #{tpu_custom_call.1} parent=1 // pred_check_branch
      %91 = sbr.rel (0) target = $region49
    $region48: #{tpu_custom_call.1} parent=1 // pred_region
      %92 = dma.done [#allocation6], 6144
    $region49: #{tpu_custom_call.1} parent=1 // pred_fallthru
      _
    // Predicated region
    $region50: #{tpu_custom_call.1} parent=1 // pred_check
      _
    $region51: #{tpu_custom_call.1} parent=1 // pred_check_branch
      %94 = sbr.rel (0) target = $region53
    $region52: #{tpu_custom_call.1} parent=1 // pred_region
      %95 = dma.done [#allocation9], 2048
    $region53: #{tpu_custom_call.1} parent=1 // pred_fallthru
      _
    // Predicated region
    $region54: #{tpu_custom_call.1} parent=1 // pred_check
      _
    $region55: #{tpu_custom_call.1} parent=1 // pred_check_branch
      %97 = sbr.rel (0) target = $region57
    $region56: #{tpu_custom_call.1} parent=1 // pred_region
      %98 = dma.done [#allocation9], 1024
    $region57: #{tpu_custom_call.1} parent=1 // pred_fallthru
      _
    %v100 = vld [vmem:[#allocation2] sm:$0xff]
    %v101 = vld [vmem:[#allocation2 + $0x8] sm:$0xff]
    %v102 = vld [vmem:[#allocation2 + $0x10] sm:$0xf]
    %v103 = vld [vmem:[#allocation5] sm:$0xff]
    %v104 = vld [vmem:[#allocation5 + $0x8] sm:$0xf]
    %v105 = vld [vmem:[#allocation5 + $0xc] sm:$0xff]
    %v106 = vld [vmem:[#allocation5 + $0x14] sm:$0xf]
    %v107 = vld [vmem:[#allocation5 + $0x18] sm:$0xff]
    %v108 = vld [vmem:[#allocation5 + $0x20] sm:$0xf]
    %v109 = vld [vmem:[#allocation5 + $0x24] sm:$0xff]
    %v110 = vld [vmem:[#allocation5 + $0x2c] sm:$0xf]
    %v111 = vld [vmem:[#allocation5 + $0x30] sm:$0xff]
    %v112 = vld [vmem:[#allocation5 + $0x38] sm:$0xf]
    %v113 = vld [vmem:[#allocation5 + $0x3c] sm:$0xff]
    %v114 = vld [vmem:[#allocation5 + $0x44] sm:$0xf]
    %v115 = vld [vmem:[#allocation5 + $0x48] sm:$0xff]
    %v116 = vld [vmem:[#allocation5 + $0x50] sm:$0xf]
    %v117 = vld [vmem:[#allocation5 + $0x54] sm:$0xff]
    %v118 = vld [vmem:[#allocation5 + $0x5c] sm:$0xf]
    %v119 = vld [vmem:[#allocation5 + $0x60] sm:$0xff]
    %v120 = vld [vmem:[#allocation5 + $0x68] sm:$0xf]
    %v121 = vld [vmem:[#allocation5 + $0x6c] sm:$0xff]
    %v122 = vld [vmem:[#allocation5 + $0x74] sm:$0xf]
    %v123 = vld [vmem:[#allocation5 + $0x78] sm:$0xff]
    %v124 = vld [vmem:[#allocation5 + $0x80] sm:$0xf]
    %v125 = vld [vmem:[#allocation5 + $0x84] sm:$0xff]
    %v126 = vld [vmem:[#allocation5 + $0x8c] sm:$0xf]
    %v127 = vld [vmem:[#allocation5 + $0x90] sm:$0xff]
    %v128 = vld [vmem:[#allocation5 + $0x98] sm:$0xf]
    %v129 = vld [vmem:[#allocation5 + $0x9c] sm:$0xff]
    %v130 = vld [vmem:[#allocation5 + $0xa4] sm:$0xf]
    %v131 = vld [vmem:[#allocation5 + $0xa8] sm:$0xff]
    %v132 = vld [vmem:[#allocation5 + $0xb0] sm:$0xf]
    %v133 = vld [vmem:[#allocation5 + $0xb4] sm:$0xff]
    %v134 = vld [vmem:[#allocation5 + $0xbc] sm:$0xf]
    %v135 = vld [vmem:[#allocation5 + $0xc0] sm:$0xff]
    %v136 = vld [vmem:[#allocation5 + $0xc8] sm:$0xf]
    %v137 = vld [vmem:[#allocation5 + $0xcc] sm:$0xff]
    %v138 = vld [vmem:[#allocation5 + $0xd4] sm:$0xf]
    %v139 = vld [vmem:[#allocation5 + $0xd8] sm:$0xff]
    %v140 = vld [vmem:[#allocation5 + $0xe0] sm:$0xf]
    %v141 = vld [vmem:[#allocation5 + $0xe4] sm:$0xff]
    %v142 = vld [vmem:[#allocation5 + $0xec] sm:$0xf]
    %v143 = vld [vmem:[#allocation5 + $0xf0] sm:$0xff]
    %v144 = vld [vmem:[#allocation5 + $0xf8] sm:$0xf]
    %v145 = vld [vmem:[#allocation5 + $0xfc] sm:$0xff]
    %v146 = vld [vmem:[#allocation5 + $0x104] sm:$0xf]
    %v147 = vld [vmem:[#allocation5 + $0x108] sm:$0xff]
    %v148 = vld [vmem:[#allocation5 + $0x110] sm:$0xf]
    %v149 = vld [vmem:[#allocation5 + $0x114] sm:$0xff]
    %v150 = vld [vmem:[#allocation5 + $0x11c] sm:$0xf]
    %v151 = vld [vmem:[#allocation5 + $0x120] sm:$0xff]
    %v152 = vld [vmem:[#allocation5 + $0x128] sm:$0xf]
    %v153 = vld [vmem:[#allocation5 + $0x12c] sm:$0xff]
    %v154 = vld [vmem:[#allocation5 + $0x134] sm:$0xf]
    %v155 = vld [vmem:[#allocation5 + $0x138] sm:$0xff]
    %v156 = vld [vmem:[#allocation5 + $0x140] sm:$0xf]
    %v157 = vld [vmem:[#allocation5 + $0x144] sm:$0xff]
    %v158 = vld [vmem:[#allocation5 + $0x14c] sm:$0xf]
    %v159 = vld [vmem:[#allocation5 + $0x150] sm:$0xff]
    %v160 = vld [vmem:[#allocation5 + $0x158] sm:$0xf]
    %v161 = vld [vmem:[#allocation5 + $0x15c] sm:$0xff]
    %v162 = vld [vmem:[#allocation5 + $0x164] sm:$0xf]
    %v163 = vld [vmem:[#allocation5 + $0x168] sm:$0xff]
    %v164 = vld [vmem:[#allocation5 + $0x170] sm:$0xf]
    %v165 = vld [vmem:[#allocation5 + $0x174] sm:$0xff]
    %v166 = vld [vmem:[#allocation5 + $0x17c] sm:$0xf]
    %v167 = vld [vmem:[#allocation5 + $0x180] sm:$0xff]
    %v168 = vld [vmem:[#allocation5 + $0x188] sm:$0xf]
    %v169 = vld [vmem:[#allocation5 + $0x18c] sm:$0xff]
    %v170 = vld [vmem:[#allocation5 + $0x194] sm:$0xf]
    %v171 = vld [vmem:[#allocation5 + $0x198] sm:$0xff]
    %v172 = vld [vmem:[#allocation5 + $0x1a0] sm:$0xf]
    %v173 = vld [vmem:[#allocation5 + $0x1a4] sm:$0xff]
    %v174 = vld [vmem:[#allocation5 + $0x1ac] sm:$0xf]
    %v175 = vld [vmem:[#allocation5 + $0x1b0] sm:$0xff]
    %v176 = vld [vmem:[#allocation5 + $0x1b8] sm:$0xf]
    %v177 = vld [vmem:[#allocation5 + $0x1bc] sm:$0xff]
    %v178 = vld [vmem:[#allocation5 + $0x1c4] sm:$0xf]
    %v179 = vld [vmem:[#allocation5 + $0x1c8] sm:$0xff]
    %v180 = vld [vmem:[#allocation5 + $0x1d0] sm:$0xf]
    %v181 = vld [vmem:[#allocation5 + $0x1d4] sm:$0xff]
    %v182 = vld [vmem:[#allocation5 + $0x1dc] sm:$0xf]
    %v183 = vld [vmem:[#allocation5 + $0x1e0] sm:$0xff]
    %v184 = vld [vmem:[#allocation5 + $0x1e8] sm:$0xf]
    %v185 = vld [vmem:[#allocation5 + $0x1ec] sm:$0xff]
    %v186 = vld [vmem:[#allocation5 + $0x1f4] sm:$0xf]
    %v187 = vld [vmem:[#allocation5 + $0x1f8] sm:$0xff]
    %v188 = vld [vmem:[#allocation5 + $0x200] sm:$0xf]
    %v189 = vld [vmem:[#allocation5 + $0x204] sm:$0xff]
    %v190 = vld [vmem:[#allocation5 + $0x20c] sm:$0xf]
    %v191 = vld [vmem:[#allocation5 + $0x210] sm:$0xff]
    %v192 = vld [vmem:[#allocation5 + $0x218] sm:$0xf]
    %v193 = vld [vmem:[#allocation5 + $0x21c] sm:$0xff]
    %v194 = vld [vmem:[#allocation5 + $0x224] sm:$0xf]
    %v195 = vld [vmem:[#allocation5 + $0x228] sm:$0xff]
    %v196 = vld [vmem:[#allocation5 + $0x230] sm:$0xf]
    %v197 = vld [vmem:[#allocation5 + $0x234] sm:$0xff]
    %v198 = vld [vmem:[#allocation5 + $0x23c] sm:$0xf]
    %v199 = vld [vmem:[#allocation5 + $0x240] sm:$0xff]
    %v200 = vld [vmem:[#allocation5 + $0x248] sm:$0xf]
    %v201 = vld [vmem:[#allocation5 + $0x24c] sm:$0xff]
    %v202 = vld [vmem:[#allocation5 + $0x254] sm:$0xf]
    %v203 = vld [vmem:[#allocation5 + $0x258] sm:$0xff]
    %v204 = vld [vmem:[#allocation5 + $0x260] sm:$0xf]
    %v205 = vld [vmem:[#allocation5 + $0x264] sm:$0xff]
    %v206 = vld [vmem:[#allocation5 + $0x26c] sm:$0xf]
    %v207 = vld [vmem:[#allocation5 + $0x270] sm:$0xff]
    %v208 = vld [vmem:[#allocation5 + $0x278] sm:$0xf]
    %v209 = vld [vmem:[#allocation5 + $0x27c] sm:$0xff]
    %v210 = vld [vmem:[#allocation5 + $0x284] sm:$0xf]
    %v211 = vld [vmem:[#allocation5 + $0x288] sm:$0xff]
    %v212 = vld [vmem:[#allocation5 + $0x290] sm:$0xf]
    %v213 = vld [vmem:[#allocation5 + $0x294] sm:$0xff]
    %v214 = vld [vmem:[#allocation5 + $0x29c] sm:$0xf]
    %v215 = vld [vmem:[#allocation5 + $0x2a0] sm:$0xff]
    %v216 = vld [vmem:[#allocation5 + $0x2a8] sm:$0xf]
    %v217 = vld [vmem:[#allocation5 + $0x2ac] sm:$0xff]
    %v218 = vld [vmem:[#allocation5 + $0x2b4] sm:$0xf]
    %v219 = vld [vmem:[#allocation5 + $0x2b8] sm:$0xff]
    %v220 = vld [vmem:[#allocation5 + $0x2c0] sm:$0xf]
    %v221 = vld [vmem:[#allocation5 + $0x2c4] sm:$0xff]
    %v222 = vld [vmem:[#allocation5 + $0x2cc] sm:$0xf]
    %v223 = vld [vmem:[#allocation5 + $0x2d0] sm:$0xff]
    %v224 = vld [vmem:[#allocation5 + $0x2d8] sm:$0xf]
    %v225 = vld [vmem:[#allocation5 + $0x2dc] sm:$0xff]
    %v226 = vld [vmem:[#allocation5 + $0x2e4] sm:$0xf]
    %v227 = vld [vmem:[#allocation5 + $0x2e8] sm:$0xff]
    %v228 = vld [vmem:[#allocation5 + $0x2f0] sm:$0xf]
    %v229 = vld [vmem:[#allocation5 + $0x2f4] sm:$0xff]
    %v230 = vld [vmem:[#allocation5 + $0x2fc] sm:$0xf]
    %v231 = vld [vmem:[#allocation5 + $0x300] sm:$0xff]
    %v232 = vld [vmem:[#allocation5 + $0x308] sm:$0xf]
    %v233 = vld [vmem:[#allocation5 + $0x30c] sm:$0xff]
    %v234 = vld [vmem:[#allocation5 + $0x314] sm:$0xf]
    %v235 = vld [vmem:[#allocation5 + $0x318] sm:$0xff]
    %v236 = vld [vmem:[#allocation5 + $0x320] sm:$0xf]
    %v237 = vld [vmem:[#allocation5 + $0x324] sm:$0xff]
    %v238 = vld [vmem:[#allocation5 + $0x32c] sm:$0xf]
    %v239 = vld [vmem:[#allocation5 + $0x330] sm:$0xff]
    %v240 = vld [vmem:[#allocation5 + $0x338] sm:$0xf]
    %v241 = vld [vmem:[#allocation5 + $0x33c] sm:$0xff]
    %v242 = vld [vmem:[#allocation5 + $0x344] sm:$0xf]
    %v243 = vld [vmem:[#allocation5 + $0x348] sm:$0xff]
    %v244 = vld [vmem:[#allocation5 + $0x350] sm:$0xf]
    %v245 = vld [vmem:[#allocation5 + $0x354] sm:$0xff]
    %v246 = vld [vmem:[#allocation5 + $0x35c] sm:$0xf]
    %v247 = vld [vmem:[#allocation5 + $0x360] sm:$0xff]
    %v248 = vld [vmem:[#allocation5 + $0x368] sm:$0xf]
    %v249 = vld [vmem:[#allocation5 + $0x36c] sm:$0xff]
    %v250 = vld [vmem:[#allocation5 + $0x374] sm:$0xf]
    %v251 = vld [vmem:[#allocation5 + $0x378] sm:$0xff]
    %v252 = vld [vmem:[#allocation5 + $0x380] sm:$0xf]
    %v253 = vld [vmem:[#allocation5 + $0x384] sm:$0xff]
    %v254 = vld [vmem:[#allocation5 + $0x38c] sm:$0xf]
    %v255 = vld [vmem:[#allocation5 + $0x390] sm:$0xff]
    %v256 = vld [vmem:[#allocation5 + $0x398] sm:$0xf]
    %v257 = vld [vmem:[#allocation5 + $0x39c] sm:$0xff]
    %v258 = vld [vmem:[#allocation5 + $0x3a4] sm:$0xf]
    %v259 = vld [vmem:[#allocation5 + $0x3a8] sm:$0xff]
    %v260 = vld [vmem:[#allocation5 + $0x3b0] sm:$0xf]
    %v261 = vld [vmem:[#allocation5 + $0x3b4] sm:$0xff]
    %v262 = vld [vmem:[#allocation5 + $0x3bc] sm:$0xf]
    %v263 = vld [vmem:[%s2] sm:$0x7]
    %v265 = vlaneseq
    %v266 = vshrl.u32 %v265, 7
    %v267 = vsub.s32 0, %v266
    %v268 = vrot.slane %v263, %v267
    %v269 = vlaneseq
    %v270 = vshrl.u32 %v269, 7
    %v271 = vsub.s32 1, %v270
    %v272 = vrot.slane %v263, %v271
    %v273 = vlaneseq
    %v274 = vshrl.u32 %v273, 7
    %v275 = vsub.s32 2, %v274
    %v276 = vrot.slane %v263, %v275
    %v283 = vunpack.c.l.b16 %v100
    %v284 = vunpack.c.h.b16 %v100
    %v285 = vunpack.c.l.b16 %v101
    %v286 = vunpack.c.h.b16 %v101
    %v287 = vunpack.c.l.b16 %v102
    %v288 = vpack.c.b16 %v283, %v283
    %v289 = vpack.c.b16 %v284, %v284
    %v290 = vpack.c.b16 %v285, %v285
    %v291 = vpack.c.b16 %v286, %v286
    %v292 = vpack.c.b16 %v287, %v287
    %v458 = vunpack.c.l.b16 %v103
    %v459 = vunpack.c.h.b16 %v103
    %v460 = vunpack.c.l.b16 %v104
    %v461 = vunpack.c.l.b16 %v105
    %v462 = vunpack.c.h.b16 %v105
    %v463 = vunpack.c.l.b16 %v106
    %v464 = vunpack.c.l.b16 %v107
    %v465 = vunpack.c.h.b16 %v107
    %v466 = vunpack.c.l.b16 %v108
    %v467 = vunpack.c.l.b16 %v109
    %v468 = vunpack.c.h.b16 %v109
    %v469 = vunpack.c.l.b16 %v110
    %v470 = vunpack.c.l.b16 %v111
    %v471 = vunpack.c.h.b16 %v111
    %v472 = vunpack.c.l.b16 %v112
    %v473 = vunpack.c.l.b16 %v113
    %v474 = vunpack.c.h.b16 %v113
    %v475 = vunpack.c.l.b16 %v114
    %v476 = vunpack.c.l.b16 %v115
    %v477 = vunpack.c.h.b16 %v115
    %v478 = vunpack.c.l.b16 %v116
    %v479 = vunpack.c.l.b16 %v117
    %v480 = vunpack.c.h.b16 %v117
    %v481 = vunpack.c.l.b16 %v118
    %v482 = vunpack.c.l.b16 %v119
    %v483 = vunpack.c.h.b16 %v119
    %v484 = vunpack.c.l.b16 %v120
    %v485 = vunpack.c.l.b16 %v121
    %v486 = vunpack.c.h.b16 %v121
    %v487 = vunpack.c.l.b16 %v122
    %v488 = vunpack.c.l.b16 %v123
    %v489 = vunpack.c.h.b16 %v123
    %v490 = vunpack.c.l.b16 %v124
    %v491 = vunpack.c.l.b16 %v125
    %v492 = vunpack.c.h.b16 %v125
    %v493 = vunpack.c.l.b16 %v126
    %v494 = vunpack.c.l.b16 %v127
    %v495 = vunpack.c.h.b16 %v127
    %v496 = vunpack.c.l.b16 %v128
    %v497 = vunpack.c.l.b16 %v129
    %v498 = vunpack.c.h.b16 %v129
    %v499 = vunpack.c.l.b16 %v130
    %v500 = vunpack.c.l.b16 %v131
    %v501 = vunpack.c.h.b16 %v131
    %v502 = vunpack.c.l.b16 %v132
    %v503 = vunpack.c.l.b16 %v133
    %v504 = vunpack.c.h.b16 %v133
    %v505 = vunpack.c.l.b16 %v134
    %v506 = vunpack.c.l.b16 %v135
    %v507 = vunpack.c.h.b16 %v135
    %v508 = vunpack.c.l.b16 %v136
    %v509 = vunpack.c.l.b16 %v137
    %v510 = vunpack.c.h.b16 %v137
    %v511 = vunpack.c.l.b16 %v138
    %v512 = vunpack.c.l.b16 %v139
    %v513 = vunpack.c.h.b16 %v139
    %v514 = vunpack.c.l.b16 %v140
    %v515 = vunpack.c.l.b16 %v141
    %v516 = vunpack.c.h.b16 %v141
    %v517 = vunpack.c.l.b16 %v142
    %v518 = vunpack.c.l.b16 %v143
    %v519 = vunpack.c.h.b16 %v143
    %v520 = vunpack.c.l.b16 %v144
    %v521 = vunpack.c.l.b16 %v145
    %v522 = vunpack.c.h.b16 %v145
    %v523 = vunpack.c.l.b16 %v146
    %v524 = vunpack.c.l.b16 %v147
    %v525 = vunpack.c.h.b16 %v147
    %v526 = vunpack.c.l.b16 %v148
    %v527 = vunpack.c.l.b16 %v149
    %v528 = vunpack.c.h.b16 %v149
    %v529 = vunpack.c.l.b16 %v150
    %v530 = vunpack.c.l.b16 %v151
    %v531 = vunpack.c.h.b16 %v151
    %v532 = vunpack.c.l.b16 %v152
    %v533 = vunpack.c.l.b16 %v153
    %v534 = vunpack.c.h.b16 %v153
    %v535 = vunpack.c.l.b16 %v154
    %v536 = vunpack.c.l.b16 %v155
    %v537 = vunpack.c.h.b16 %v155
    %v538 = vunpack.c.l.b16 %v156
    %v539 = vunpack.c.l.b16 %v157
    %v540 = vunpack.c.h.b16 %v157
    %v541 = vunpack.c.l.b16 %v158
    %v542 = vunpack.c.l.b16 %v159
    %v543 = vunpack.c.h.b16 %v159
    %v544 = vunpack.c.l.b16 %v160
    %v545 = vunpack.c.l.b16 %v161
    %v546 = vunpack.c.h.b16 %v161
    %v547 = vunpack.c.l.b16 %v162
    %v548 = vunpack.c.l.b16 %v163
    %v549 = vunpack.c.h.b16 %v163
    %v550 = vunpack.c.l.b16 %v164
    %v551 = vunpack.c.l.b16 %v165
    %v552 = vunpack.c.h.b16 %v165
    %v553 = vunpack.c.l.b16 %v166
    %v554 = vunpack.c.l.b16 %v167
    %v555 = vunpack.c.h.b16 %v167
    %v556 = vunpack.c.l.b16 %v168
    %v557 = vunpack.c.l.b16 %v169
    %v558 = vunpack.c.h.b16 %v169
    %v559 = vunpack.c.l.b16 %v170
    %v560 = vunpack.c.l.b16 %v171
    %v561 = vunpack.c.h.b16 %v171
    %v562 = vunpack.c.l.b16 %v172
    %v563 = vunpack.c.l.b16 %v173
    %v564 = vunpack.c.h.b16 %v173
    %v565 = vunpack.c.l.b16 %v174
    %v566 = vunpack.c.l.b16 %v175
    %v567 = vunpack.c.h.b16 %v175
    %v568 = vunpack.c.l.b16 %v176
    %v569 = vunpack.c.l.b16 %v177
    %v570 = vunpack.c.h.b16 %v177
    %v571 = vunpack.c.l.b16 %v178
    %v572 = vunpack.c.l.b16 %v179
    %v573 = vunpack.c.h.b16 %v179
    %v574 = vunpack.c.l.b16 %v180
    %v575 = vunpack.c.l.b16 %v181
    %v576 = vunpack.c.h.b16 %v181
    %v577 = vunpack.c.l.b16 %v182
    %v578 = vunpack.c.l.b16 %v183
    %v579 = vunpack.c.h.b16 %v183
    %v580 = vunpack.c.l.b16 %v184
    %v581 = vunpack.c.l.b16 %v185
    %v582 = vunpack.c.h.b16 %v185
    %v583 = vunpack.c.l.b16 %v186
    %v584 = vunpack.c.l.b16 %v187
    %v585 = vunpack.c.h.b16 %v187
    %v586 = vunpack.c.l.b16 %v188
    %v587 = vunpack.c.l.b16 %v189
    %v588 = vunpack.c.h.b16 %v189
    %v589 = vunpack.c.l.b16 %v190
    %v590 = vunpack.c.l.b16 %v191
    %v591 = vunpack.c.h.b16 %v191
    %v592 = vunpack.c.l.b16 %v192
    %v593 = vunpack.c.l.b16 %v193
    %v594 = vunpack.c.h.b16 %v193
    %v595 = vunpack.c.l.b16 %v194
    %v596 = vunpack.c.l.b16 %v195
    %v597 = vunpack.c.h.b16 %v195
    %v598 = vunpack.c.l.b16 %v196
    %v599 = vunpack.c.l.b16 %v197
    %v600 = vunpack.c.h.b16 %v197
    %v601 = vunpack.c.l.b16 %v198
    %v602 = vunpack.c.l.b16 %v199
    %v603 = vunpack.c.h.b16 %v199
    %v604 = vunpack.c.l.b16 %v200
    %v605 = vunpack.c.l.b16 %v201
    %v606 = vunpack.c.h.b16 %v201
    %v607 = vunpack.c.l.b16 %v202
    %v608 = vunpack.c.l.b16 %v203
    %v609 = vunpack.c.h.b16 %v203
    %v610 = vunpack.c.l.b16 %v204
    %v611 = vunpack.c.l.b16 %v205
    %v612 = vunpack.c.h.b16 %v205
    %v613 = vunpack.c.l.b16 %v206
    %v614 = vunpack.c.l.b16 %v207
    %v615 = vunpack.c.h.b16 %v207
    %v616 = vunpack.c.l.b16 %v208
    %v617 = vunpack.c.l.b16 %v209
    %v618 = vunpack.c.h.b16 %v209
    %v619 = vunpack.c.l.b16 %v210
    %v620 = vunpack.c.l.b16 %v211
    %v621 = vunpack.c.h.b16 %v211
    %v622 = vunpack.c.l.b16 %v212
    %v623 = vunpack.c.l.b16 %v213
    %v624 = vunpack.c.h.b16 %v213
    %v625 = vunpack.c.l.b16 %v214
    %v626 = vunpack.c.l.b16 %v215
    %v627 = vunpack.c.h.b16 %v215
    %v628 = vunpack.c.l.b16 %v216
    %v629 = vunpack.c.l.b16 %v217
    %v630 = vunpack.c.h.b16 %v217
    %v631 = vunpack.c.l.b16 %v218
    %v632 = vunpack.c.l.b16 %v219
    %v633 = vunpack.c.h.b16 %v219
    %v634 = vunpack.c.l.b16 %v220
    %v635 = vunpack.c.l.b16 %v221
    %v636 = vunpack.c.h.b16 %v221
    %v637 = vunpack.c.l.b16 %v222
    %v638 = vunpack.c.l.b16 %v223
    %v639 = vunpack.c.h.b16 %v223
    %v640 = vunpack.c.l.b16 %v224
    %v641 = vunpack.c.l.b16 %v225
    %v642 = vunpack.c.h.b16 %v225
    %v643 = vunpack.c.l.b16 %v226
    %v644 = vunpack.c.l.b16 %v227
    %v645 = vunpack.c.h.b16 %v227
    %v646 = vunpack.c.l.b16 %v228
    %v647 = vunpack.c.l.b16 %v229
    %v648 = vunpack.c.h.b16 %v229
    %v649 = vunpack.c.l.b16 %v230
    %v650 = vunpack.c.l.b16 %v231
    %v651 = vunpack.c.h.b16 %v231
    %v652 = vunpack.c.l.b16 %v232
    %v653 = vunpack.c.l.b16 %v233
    %v654 = vunpack.c.h.b16 %v233
    %v655 = vunpack.c.l.b16 %v234
    %v656 = vunpack.c.l.b16 %v235
    %v657 = vunpack.c.h.b16 %v235
    %v658 = vunpack.c.l.b16 %v236
    %v659 = vunpack.c.l.b16 %v237
    %v660 = vunpack.c.h.b16 %v237
    %v661 = vunpack.c.l.b16 %v238
    %v662 = vunpack.c.l.b16 %v239
    %v663 = vunpack.c.h.b16 %v239
    %v664 = vunpack.c.l.b16 %v240
    %v665 = vunpack.c.l.b16 %v241
    %v666 = vunpack.c.h.b16 %v241
    %v667 = vunpack.c.l.b16 %v242
    %v668 = vunpack.c.l.b16 %v243
    %v669 = vunpack.c.h.b16 %v243
    %v670 = vunpack.c.l.b16 %v244
    %v671 = vunpack.c.l.b16 %v245
    %v672 = vunpack.c.h.b16 %v245
    %v673 = vunpack.c.l.b16 %v246
    %v674 = vunpack.c.l.b16 %v247
    %v675 = vunpack.c.h.b16 %v247
    %v676 = vunpack.c.l.b16 %v248
    %v677 = vunpack.c.l.b16 %v249
    %v678 = vunpack.c.h.b16 %v249
    %v679 = vunpack.c.l.b16 %v250
    %v680 = vunpack.c.l.b16 %v251
    %v681 = vunpack.c.h.b16 %v251
    %v682 = vunpack.c.l.b16 %v252
    %v683 = vunpack.c.l.b16 %v253
    %v684 = vunpack.c.h.b16 %v253
    %v685 = vunpack.c.l.b16 %v254
    %v686 = vunpack.c.l.b16 %v255
    %v687 = vunpack.c.h.b16 %v255
    %v688 = vunpack.c.l.b16 %v256
    %v689 = vunpack.c.l.b16 %v257
    %v690 = vunpack.c.h.b16 %v257
    %v691 = vunpack.c.l.b16 %v258
    %v692 = vunpack.c.l.b16 %v259
    %v693 = vunpack.c.h.b16 %v259
    %v694 = vunpack.c.l.b16 %v260
    %v695 = vunpack.c.l.b16 %v261
    %v696 = vunpack.c.h.b16 %v261
    %v697 = vunpack.c.l.b16 %v262
    %v698 = vpack.c.b16 %v461, %v458
    %v699 = vpack.c.b16 %v462, %v459
    %v700 = vpack.c.b16 %v463, %v460
    %v701 = vpack.c.b16 %v467, %v464
    %v702 = vpack.c.b16 %v468, %v465
    %v703 = vpack.c.b16 %v469, %v466
    %v704 = vpack.c.b16 %v473, %v470
    %v705 = vpack.c.b16 %v474, %v471
    %v706 = vpack.c.b16 %v475, %v472
    %v707 = vpack.c.b16 %v479, %v476
    %v708 = vpack.c.b16 %v480, %v477
    %v709 = vpack.c.b16 %v481, %v478
    %v710 = vpack.c.b16 %v485, %v482
    %v711 = vpack.c.b16 %v486, %v483
    %v712 = vpack.c.b16 %v487, %v484
    %v713 = vpack.c.b16 %v491, %v488
    %v714 = vpack.c.b16 %v492, %v489
    %v715 = vpack.c.b16 %v493, %v490
    %v716 = vpack.c.b16 %v497, %v494
    %v717 = vpack.c.b16 %v498, %v495
    %v718 = vpack.c.b16 %v499, %v496
    %v719 = vpack.c.b16 %v503, %v500
    %v720 = vpack.c.b16 %v504, %v501
    %v721 = vpack.c.b16 %v505, %v502
    %v722 = vpack.c.b16 %v509, %v506
    %v723 = vpack.c.b16 %v510, %v507
    %v724 = vpack.c.b16 %v511, %v508
    %v725 = vpack.c.b16 %v515, %v512
    %v726 = vpack.c.b16 %v516, %v513
    %v727 = vpack.c.b16 %v517, %v514
    %v728 = vpack.c.b16 %v521, %v518
    %v729 = vpack.c.b16 %v522, %v519
    %v730 = vpack.c.b16 %v523, %v520
    %v731 = vpack.c.b16 %v527, %v524
    %v732 = vpack.c.b16 %v528, %v525
    %v733 = vpack.c.b16 %v529, %v526
    %v734 = vpack.c.b16 %v533, %v530
    %v735 = vpack.c.b16 %v534, %v531
    %v736 = vpack.c.b16 %v535, %v532
    %v737 = vpack.c.b16 %v539, %v536
    %v738 = vpack.c.b16 %v540, %v537
    %v739 = vpack.c.b16 %v541, %v538
    %v740 = vpack.c.b16 %v545, %v542
    %v741 = vpack.c.b16 %v546, %v543
    %v742 = vpack.c.b16 %v547, %v544
    %v743 = vpack.c.b16 %v551, %v548
    %v744 = vpack.c.b16 %v552, %v549
    %v745 = vpack.c.b16 %v553, %v550
    %v746 = vpack.c.b16 %v557, %v554
    %v747 = vpack.c.b16 %v558, %v555
    %v748 = vpack.c.b16 %v559, %v556
    %v749 = vpack.c.b16 %v563, %v560
    %v750 = vpack.c.b16 %v564, %v561
    %v751 = vpack.c.b16 %v565, %v562
    %v752 = vpack.c.b16 %v569, %v566
    %v753 = vpack.c.b16 %v570, %v567
    %v754 = vpack.c.b16 %v571, %v568
    %v755 = vpack.c.b16 %v575, %v572
    %v756 = vpack.c.b16 %v576, %v573
    %v757 = vpack.c.b16 %v577, %v574
    %v758 = vpack.c.b16 %v581, %v578
    %v759 = vpack.c.b16 %v582, %v579
    %v760 = vpack.c.b16 %v583, %v580
    %v761 = vpack.c.b16 %v587, %v584
    %v762 = vpack.c.b16 %v588, %v585
    %v763 = vpack.c.b16 %v589, %v586
    %v764 = vpack.c.b16 %v593, %v590
    %v765 = vpack.c.b16 %v594, %v591
    %v766 = vpack.c.b16 %v595, %v592
    %v767 = vpack.c.b16 %v599, %v596
    %v768 = vpack.c.b16 %v600, %v597
    %v769 = vpack.c.b16 %v601, %v598
    %v770 = vpack.c.b16 %v605, %v602
    %v771 = vpack.c.b16 %v606, %v603
    %v772 = vpack.c.b16 %v607, %v604
    %v773 = vpack.c.b16 %v611, %v608
    %v774 = vpack.c.b16 %v612, %v609
    %v775 = vpack.c.b16 %v613, %v610
    %v776 = vpack.c.b16 %v617, %v614
    %v777 = vpack.c.b16 %v618, %v615
    %v778 = vpack.c.b16 %v619, %v616
    %v779 = vpack.c.b16 %v623, %v620
    %v780 = vpack.c.b16 %v624, %v621
    %v781 = vpack.c.b16 %v625, %v622
    %v782 = vpack.c.b16 %v629, %v626
    %v783 = vpack.c.b16 %v630, %v627
    %v784 = vpack.c.b16 %v631, %v628
    %v785 = vpack.c.b16 %v635, %v632
    %v786 = vpack.c.b16 %v636, %v633
    %v787 = vpack.c.b16 %v637, %v634
    %v788 = vpack.c.b16 %v641, %v638
    %v789 = vpack.c.b16 %v642, %v639
    %v790 = vpack.c.b16 %v643, %v640
    %v791 = vpack.c.b16 %v647, %v644
    %v792 = vpack.c.b16 %v648, %v645
    %v793 = vpack.c.b16 %v649, %v646
    %v794 = vpack.c.b16 %v653, %v650
    %v795 = vpack.c.b16 %v654, %v651
    %v796 = vpack.c.b16 %v655, %v652
    %v797 = vpack.c.b16 %v659, %v656
    %v798 = vpack.c.b16 %v660, %v657
    %v799 = vpack.c.b16 %v661, %v658
    %v800 = vpack.c.b16 %v665, %v662
    %v801 = vpack.c.b16 %v666, %v663
    %v802 = vpack.c.b16 %v667, %v664
    %v803 = vpack.c.b16 %v671, %v668
    %v804 = vpack.c.b16 %v672, %v669
    %v805 = vpack.c.b16 %v673, %v670
    %v806 = vpack.c.b16 %v677, %v674
    %v807 = vpack.c.b16 %v678, %v675
    %v808 = vpack.c.b16 %v679, %v676
    %v809 = vpack.c.b16 %v683, %v680
    %v810 = vpack.c.b16 %v684, %v681
    %v811 = vpack.c.b16 %v685, %v682
    %v812 = vpack.c.b16 %v689, %v686
    %v813 = vpack.c.b16 %v690, %v687
    %v814 = vpack.c.b16 %v691, %v688
    %v815 = vpack.c.b16 %v695, %v692
    %v816 = vpack.c.b16 %v696, %v693
    %v817 = vpack.c.b16 %v697, %v694
    %938 = vmatprep.subr.bf16.mxu0 %v699
    %939 = vmatpush1.bf16.msra.mxu0 %v698
    %940 = vmatprep.subr.bf16.mxu0 %v702
    %941 = vmatpush1.bf16.msra.mxu0 %v701
    %942 = vmatprep.subr.bf16.mxu0 %v705
    %943 = vmatpush1.bf16.msra.mxu0 %v704
    %944 = vmatprep.subr.bf16.mxu0 %v708
    %945 = vmatpush1.bf16.msra.mxu0 %v707
    %946 = vmatprep.subr.bf16.mxu0 %v711
    %947 = vmatpush1.bf16.msra.mxu0 %v710
    %948 = vmatprep.subr.bf16.mxu0 %v714
    %949 = vmatpush1.bf16.msra.mxu0 %v713
    %950 = vmatprep.subr.bf16.mxu0 %v717
    %951 = vmatpush1.bf16.msra.mxu0 %v716
    %952 = vmatprep.subr.bf16.mxu0 %v720
    %953 = vmatpush1.bf16.msra.mxu0 %v719
    %954 = vmatprep.subr.bf16.mxu0 %v723
    %955 = vmatpush1.bf16.msra.mxu0 %v722
    %956 = vmatprep.subr.bf16.mxu0 %v726
    %957 = vmatpush1.bf16.msra.mxu0 %v725
    %958 = vmatprep.subr.bf16.mxu0 %v729
    %959 = vmatpush1.bf16.msra.mxu0 %v728
    %960 = vmatprep.subr.bf16.mxu0 %v732
    %961 = vmatpush1.bf16.msra.mxu0 %v731
    %962 = vmatprep.subr.bf16.mxu0 %v735
    %963 = vmatpush1.bf16.msra.mxu0 %v734
    %964 = vmatprep.subr.bf16.mxu0 %v738
    %965 = vmatpush1.bf16.msra.mxu0 %v737
    %966 = vmatprep.subr.bf16.mxu0 %v741
    %967 = vmatpush1.bf16.msra.mxu0 %v740
    %968 = vmatprep.subr.bf16.mxu0 %v744
    %969 = vmatpush1.bf16.msra.mxu0 %v743
    %970 = vmatprep.mubr.bf16.mxu0 %v289
    %971 = vmatmul.mubr.bf16.gmra.mrb[0].mxu0 %v288
    %v972 = vpop.f32.mrb[0].mxu0
    %v973 = vadd.f32 %v268, %v972
    %v974 = vpop.f32.mrb[0].mxu0
    %v975 = vadd.f32 %v272, %v974
    %v976 = vpop.f32.mrb[0].mxu0
    %v977 = vpop.f32.mrb[0].mxu0
    %978 = vdwg.mxu0
    %979 = vmatprep.subr.bf16.mxu0 %v747
    %980 = vmatpush1.bf16.msra.mxu0 %v746
    %981 = vmatprep.subr.bf16.mxu0 %v750
    %982 = vmatpush1.bf16.msra.mxu0 %v749
    %983 = vmatprep.subr.bf16.mxu0 %v753
    %984 = vmatpush1.bf16.msra.mxu0 %v752
    %985 = vmatprep.subr.bf16.mxu0 %v756
    %986 = vmatpush1.bf16.msra.mxu0 %v755
    %987 = vmatprep.subr.bf16.mxu0 %v759
    %988 = vmatpush1.bf16.msra.mxu0 %v758
    %989 = vmatprep.subr.bf16.mxu0 %v762
    %990 = vmatpush1.bf16.msra.mxu0 %v761
    %991 = vmatprep.subr.bf16.mxu0 %v765
    %992 = vmatpush1.bf16.msra.mxu0 %v764
    %993 = vmatprep.subr.bf16.mxu0 %v768
    %994 = vmatpush1.bf16.msra.mxu0 %v767
    %995 = vmatprep.subr.bf16.mxu0 %v771
    %996 = vmatpush1.bf16.msra.mxu0 %v770
    %997 = vmatprep.subr.bf16.mxu0 %v774
    %998 = vmatpush1.bf16.msra.mxu0 %v773
    %999 = vmatprep.subr.bf16.mxu0 %v777
    %1000 = vmatpush1.bf16.msra.mxu0 %v776
    %1001 = vmatprep.subr.bf16.mxu0 %v780
    %1002 = vmatpush1.bf16.msra.mxu0 %v779
    %1003 = vmatprep.subr.bf16.mxu0 %v783
    %1004 = vmatpush1.bf16.msra.mxu0 %v782
    %1005 = vmatprep.subr.bf16.mxu0 %v786
    %1006 = vmatpush1.bf16.msra.mxu0 %v785
    %1007 = vmatprep.subr.bf16.mxu0 %v789
    %1008 = vmatpush1.bf16.msra.mxu0 %v788
    %1009 = vmatprep.subr.bf16.mxu0 %v792
    %1010 = vmatpush1.bf16.msra.mxu0 %v791
    %1011 = vmatprep.mubr.bf16.mxu0 %v291
    %1012 = vmatmul.mubr.bf16.gmra.mrb[0].mxu0 %v290
    %v1013 = vpop.f32.mrb[0].mxu0
    %v1014 = vadd.f32 %v973, %v1013
    %v1015 = vpop.f32.mrb[0].mxu0
    %v1016 = vadd.f32 %v975, %v1015
    %v1017 = vpop.f32.mrb[0].mxu0
    %v1018 = vpop.f32.mrb[0].mxu0
    %1019 = vdwg.mxu0
    %1020 = vmatprep.subr.bf16.mxu0 %v795
    %1021 = vmatpush1.bf16.msra.mxu0 %v794
    %1022 = vmatprep.subr.bf16.mxu0 %v798
    %1023 = vmatpush1.bf16.msra.mxu0 %v797
    %1024 = vmatprep.subr.bf16.mxu0 %v801
    %1025 = vmatpush1.bf16.msra.mxu0 %v800
    %1026 = vmatprep.subr.bf16.mxu0 %v804
    %1027 = vmatpush1.bf16.msra.mxu0 %v803
    %1028 = vmatprep.subr.bf16.mxu0 %v807
    %1029 = vmatpush1.bf16.msra.mxu0 %v806
    %1030 = vmatprep.subr.bf16.mxu0 %v810
    %1031 = vmatpush1.bf16.msra.mxu0 %v809
    %1032 = vmatprep.subr.bf16.mxu0 %v813
    %1033 = vmatpush1.bf16.msra.mxu0 %v812
    %1034 = vmatprep.subr.bf16.mxu0 %v816
    %1035 = vmatpush1.bf16.msra.mxu0 %v815
    %1036 = vmatprep.subr.bf16.mxu0 0
    %1037 = vmatpush1.bf16.msra.mxu0 0
    %1038 = vmatprep.subr.bf16.mxu0 0
    %1039 = vmatpush1.bf16.msra.mxu0 0
    %1040 = vmatprep.subr.bf16.mxu0 0
    %1041 = vmatpush1.bf16.msra.mxu0 0
    %1042 = vmatprep.subr.bf16.mxu0 0
    %1043 = vmatpush1.bf16.msra.mxu0 0
    %1044 = vmatprep.subr.bf16.mxu0 0
    %1045 = vmatpush1.bf16.msra.mxu0 0
    %1046 = vmatprep.subr.bf16.mxu0 0
    %1047 = vmatpush1.bf16.msra.mxu0 0
    %1048 = vmatprep.subr.bf16.mxu0 0
    %1049 = vmatpush1.bf16.msra.mxu0 0
    %1050 = vmatprep.subr.bf16.mxu0 0
    %1051 = vmatpush1.bf16.msra.mxu0 0
    %1052 = vmatprep.mubr.bf16.mxu0 0
    %1053 = vmatmul.mubr.bf16.gmra.mrb[0].mxu0 %v292
    %v1054 = vpop.f32.mrb[0].mxu0
    %v1055 = vadd.f32 %v1014, %v1054
    %v1056 = vpop.f32.mrb[0].mxu0
    %v1057 = vadd.f32 %v1016, %v1056
    %v1058 = vpop.f32.mrb[0].mxu0
    %v1059 = vpop.f32.mrb[0].mxu0
    %1060 = vdwg.mxu0
    %1061 = vmatprep.subr.bf16.mxu0 0
    %1062 = vmatpush1.bf16.msra.mxu0 %v700
    %1063 = vmatprep.subr.bf16.mxu0 0
    %1064 = vmatpush1.bf16.msra.mxu0 %v703
    %1065 = vmatprep.subr.bf16.mxu0 0
    %1066 = vmatpush1.bf16.msra.mxu0 %v706
    %1067 = vmatprep.subr.bf16.mxu0 0
    %1068 = vmatpush1.bf16.msra.mxu0 %v709
    %1069 = vmatprep.subr.bf16.mxu0 0
    %1070 = vmatpush1.bf16.msra.mxu0 %v712
    %1071 = vmatprep.subr.bf16.mxu0 0
    %1072 = vmatpush1.bf16.msra.mxu0 %v715
    %1073 = vmatprep.subr.bf16.mxu0 0
    %1074 = vmatpush1.bf16.msra.mxu0 %v718
    %1075 = vmatprep.subr.bf16.mxu0 0
    %1076 = vmatpush1.bf16.msra.mxu0 %v721
    %1077 = vmatprep.subr.bf16.mxu0 0
    %1078 = vmatpush1.bf16.msra.mxu0 %v724
    %1079 = vmatprep.subr.bf16.mxu0 0
    %1080 = vmatpush1.bf16.msra.mxu0 %v727
    %1081 = vmatprep.subr.bf16.mxu0 0
    %1082 = vmatpush1.bf16.msra.mxu0 %v730
    %1083 = vmatprep.subr.bf16.mxu0 0
    %1084 = vmatpush1.bf16.msra.mxu0 %v733
    %1085 = vmatprep.subr.bf16.mxu0 0
    %1086 = vmatpush1.bf16.msra.mxu0 %v736
    %1087 = vmatprep.subr.bf16.mxu0 0
    %1088 = vmatpush1.bf16.msra.mxu0 %v739
    %1089 = vmatprep.subr.bf16.mxu0 0
    %1090 = vmatpush1.bf16.msra.mxu0 %v742
    %1091 = vmatprep.subr.bf16.mxu0 0
    %1092 = vmatpush1.bf16.msra.mxu0 %v745
    %1093 = vmatprep.mubr.bf16.mxu0 %v289
    %1094 = vmatmul.mubr.bf16.gmra.mrb[0].mxu0 %v288
    %v1095 = vpop.f32.mrb[0].mxu0
    %v1096 = vadd.f32 %v276, %v1095
    %v1097 = vpop.f32.mrb[0].mxu0
    %v1098 = vpop.f32.mrb[0].mxu0
    %v1099 = vpop.f32.mrb[0].mxu0
    %1100 = vdwg.mxu0
    %1101 = vmatprep.subr.bf16.mxu0 0
    %1102 = vmatpush1.bf16.msra.mxu0 %v748
    %1103 = vmatprep.subr.bf16.mxu0 0
    %1104 = vmatpush1.bf16.msra.mxu0 %v751
    %1105 = vmatprep.subr.bf16.mxu0 0
    %1106 = vmatpush1.bf16.msra.mxu0 %v754
    %1107 = vmatprep.subr.bf16.mxu0 0
    %1108 = vmatpush1.bf16.msra.mxu0 %v757
    %1109 = vmatprep.subr.bf16.mxu0 0
    %1110 = vmatpush1.bf16.msra.mxu0 %v760
    %1111 = vmatprep.subr.bf16.mxu0 0
    %1112 = vmatpush1.bf16.msra.mxu0 %v763
    %1113 = vmatprep.subr.bf16.mxu0 0
    %1114 = vmatpush1.bf16.msra.mxu0 %v766
    %1115 = vmatprep.subr.bf16.mxu0 0
    %1116 = vmatpush1.bf16.msra.mxu0 %v769
    %1117 = vmatprep.subr.bf16.mxu0 0
    %1118 = vmatpush1.bf16.msra.mxu0 %v772
    %1119 = vmatprep.subr.bf16.mxu0 0
    %1120 = vmatpush1.bf16.msra.mxu0 %v775
    %1121 = vmatprep.subr.bf16.mxu0 0
    %1122 = vmatpush1.bf16.msra.mxu0 %v778
    %1123 = vmatprep.subr.bf16.mxu0 0
    %1124 = vmatpush1.bf16.msra.mxu0 %v781
    %1125 = vmatprep.subr.bf16.mxu0 0
    %1126 = vmatpush1.bf16.msra.mxu0 %v784
    %1127 = vmatprep.subr.bf16.mxu0 0
    %1128 = vmatpush1.bf16.msra.mxu0 %v787
    %1129 = vmatprep.subr.bf16.mxu0 0
    %1130 = vmatpush1.bf16.msra.mxu0 %v790
    %1131 = vmatprep.subr.bf16.mxu0 0
    %1132 = vmatpush1.bf16.msra.mxu0 %v793
    %1133 = vmatprep.mubr.bf16.mxu0 %v291
    %1134 = vmatmul.mubr.bf16.gmra.mrb[0].mxu0 %v290
    %v1135 = vpop.f32.mrb[0].mxu0
    %v1136 = vadd.f32 %v1096, %v1135
    %v1137 = vpop.f32.mrb[0].mxu0
    %v1138 = vpop.f32.mrb[0].mxu0
    %v1139 = vpop.f32.mrb[0].mxu0
    %1140 = vdwg.mxu0
    %1141 = vmatprep.subr.bf16.mxu0 0
    %1142 = vmatpush1.bf16.msra.mxu0 %v796
    %1143 = vmatprep.subr.bf16.mxu0 0
    %1144 = vmatpush1.bf16.msra.mxu0 %v799
    %1145 = vmatprep.subr.bf16.mxu0 0
    %1146 = vmatpush1.bf16.msra.mxu0 %v802
    %1147 = vmatprep.subr.bf16.mxu0 0
    %1148 = vmatpush1.bf16.msra.mxu0 %v805
    %1149 = vmatprep.subr.bf16.mxu0 0
    %1150 = vmatpush1.bf16.msra.mxu0 %v808
    %1151 = vmatprep.subr.bf16.mxu0 0
    %1152 = vmatpush1.bf16.msra.mxu0 %v811
    %1153 = vmatprep.subr.bf16.mxu0 0
    %1154 = vmatpush1.bf16.msra.mxu0 %v814
    %1155 = vmatprep.subr.bf16.mxu0 0
    %1156 = vmatpush1.bf16.msra.mxu0 %v817
    %1157 = vmatprep.subr.bf16.mxu0 0
    %1158 = vmatpush1.bf16.msra.mxu0 0
    %1159 = vmatprep.subr.bf16.mxu0 0
    %1160 = vmatpush1.bf16.msra.mxu0 0
    %1161 = vmatprep.subr.bf16.mxu0 0
    %1162 = vmatpush1.bf16.msra.mxu0 0
    %1163 = vmatprep.subr.bf16.mxu0 0
    %1164 = vmatpush1.bf16.msra.mxu0 0
    %1165 = vmatprep.subr.bf16.mxu0 0
    %1166 = vmatpush1.bf16.msra.mxu0 0
    %1167 = vmatprep.subr.bf16.mxu0 0
    %1168 = vmatpush1.bf16.msra.mxu0 0
    %1169 = vmatprep.subr.bf16.mxu0 0
    %1170 = vmatpush1.bf16.msra.mxu0 0
    %1171 = vmatprep.subr.bf16.mxu0 0
    %1172 = vmatpush1.bf16.msra.mxu0 0
    %1173 = vmatprep.mubr.bf16.mxu0 0
    %1174 = vmatmul.mubr.bf16.gmra.mrb[0].mxu0 %v292
    %v1175 = vpop.f32.mrb[0].mxu0
    %v1176 = vadd.f32 %v1136, %v1175
    %v1177 = vpop.f32.mrb[0].mxu0
    %v1178 = vpop.f32.mrb[0].mxu0
    %v1179 = vpop.f32.mrb[0].mxu0
    %1180 = vdwg.mxu0
    %v1181 = vmax.f32 %v1055, 0.0
    %v1182 = vmax.f32 %v1057, 0.0
    %v1183 = vmax.f32 %v1176, 0.0
    %v1184 = vpack.c.bf16 %v1181, %v1181
    %v1185 = vpack.c.bf16 %v1182, %v1182
    %v1186 = vpack.c.bf16 %v1183, %v1183
    %v1187 = vld [vmem:[#allocation7] sm:$0xff]
    %v1188 = vld [vmem:[#allocation7 + $0x8] sm:$0xff]
    %v1189 = vld [vmem:[#allocation7 + $0x10] sm:$0xff]
    %v1190 = vld [vmem:[#allocation7 + $0x18] sm:$0xff]
    %v1191 = vld [vmem:[#allocation7 + $0x20] sm:$0xff]
    %v1192 = vld [vmem:[#allocation7 + $0x28] sm:$0xff]
    %v1193 = vld [vmem:[#allocation7 + $0x30] sm:$0xff]
    %v1194 = vld [vmem:[#allocation7 + $0x38] sm:$0xff]
    %v1195 = vld [vmem:[#allocation7 + $0x40] sm:$0xff]
    %v1196 = vld [vmem:[#allocation7 + $0x48] sm:$0xff]
    %v1197 = vld [vmem:[#allocation7 + $0x50] sm:$0xff]
    %v1198 = vld [vmem:[#allocation7 + $0x58] sm:$0xff]
    %v1199 = vld [vmem:[#allocation7 + $0x60] sm:$0xff]
    %v1200 = vld [vmem:[#allocation7 + $0x68] sm:$0xff]
    %v1201 = vld [vmem:[#allocation7 + $0x70] sm:$0xff]
    %v1202 = vld [vmem:[#allocation7 + $0x78] sm:$0xff]
    %v1203 = vld [vmem:[#allocation7 + $0x80] sm:$0xff]
    %v1204 = vld [vmem:[#allocation7 + $0x88] sm:$0xff]
    %v1205 = vld [vmem:[#allocation7 + $0x90] sm:$0xff]
    %v1206 = vld [vmem:[#allocation7 + $0x98] sm:$0xff]
    %v1207 = vld [vmem:[#allocation7 + $0xa0] sm:$0xff]
    %v1208 = vld [vmem:[#allocation7 + $0xa8] sm:$0xff]
    %v1209 = vld [vmem:[#allocation7 + $0xb0] sm:$0xff]
    %v1210 = vld [vmem:[#allocation7 + $0xb8] sm:$0xff]
    %v1211 = vld [vmem:[#allocation7 + $0xc0] sm:$0xff]
    %v1212 = vld [vmem:[#allocation7 + $0xc8] sm:$0xff]
    %v1213 = vld [vmem:[#allocation7 + $0xd0] sm:$0xff]
    %v1214 = vld [vmem:[#allocation7 + $0xd8] sm:$0xff]
    %v1215 = vld [vmem:[#allocation7 + $0xe0] sm:$0xff]
    %v1216 = vld [vmem:[#allocation7 + $0xe8] sm:$0xff]
    %v1217 = vld [vmem:[#allocation7 + $0xf0] sm:$0xff]
    %v1218 = vld [vmem:[#allocation7 + $0xf8] sm:$0xff]
    %v1219 = vld [vmem:[#allocation7 + $0x100] sm:$0xff]
    %v1220 = vld [vmem:[#allocation7 + $0x108] sm:$0xff]
    %v1221 = vld [vmem:[#allocation7 + $0x110] sm:$0xff]
    %v1222 = vld [vmem:[#allocation7 + $0x118] sm:$0xff]
    %v1223 = vld [vmem:[#allocation7 + $0x120] sm:$0xff]
    %v1224 = vld [vmem:[#allocation7 + $0x128] sm:$0xff]
    %v1225 = vld [vmem:[#allocation7 + $0x130] sm:$0xff]
    %v1226 = vld [vmem:[#allocation7 + $0x138] sm:$0xff]
    %v1227 = vld [vmem:[#allocation7 + $0x140] sm:$0xff]
    %v1228 = vld [vmem:[#allocation7 + $0x148] sm:$0xff]
    %v1229 = vld [vmem:[#allocation7 + $0x150] sm:$0xff]
    %v1230 = vld [vmem:[#allocation7 + $0x158] sm:$0xff]
    %v1231 = vld [vmem:[#allocation7 + $0x160] sm:$0xff]
    %v1232 = vld [vmem:[#allocation7 + $0x168] sm:$0xff]
    %v1233 = vld [vmem:[#allocation7 + $0x170] sm:$0xff]
    %v1234 = vld [vmem:[#allocation7 + $0x178] sm:$0xff]
    %v1235 = vld [vmem:[%s4] sm:$0x3]
    %v1237 = vlaneseq
    %v1238 = vshrl.u32 %v1237, 7
    %v1239 = vsub.s32 0, %v1238
    %v1240 = vrot.slane %v1235, %v1239
    %v1241 = vlaneseq
    %v1242 = vshrl.u32 %v1241, 7
    %v1243 = vsub.s32 1, %v1242
    %v1244 = vrot.slane %v1235, %v1243
    %v1295 = vunpack.c.l.b16 %v1187
    %v1296 = vunpack.c.h.b16 %v1187
    %v1297 = vunpack.c.l.b16 %v1188
    %v1298 = vunpack.c.h.b16 %v1188
    %v1299 = vunpack.c.l.b16 %v1189
    %v1300 = vunpack.c.h.b16 %v1189
    %v1301 = vunpack.c.l.b16 %v1190
    %v1302 = vunpack.c.h.b16 %v1190
    %v1303 = vunpack.c.l.b16 %v1191
    %v1304 = vunpack.c.h.b16 %v1191
    %v1305 = vunpack.c.l.b16 %v1192
    %v1306 = vunpack.c.h.b16 %v1192
    %v1307 = vunpack.c.l.b16 %v1193
    %v1308 = vunpack.c.h.b16 %v1193
    %v1309 = vunpack.c.l.b16 %v1194
    %v1310 = vunpack.c.h.b16 %v1194
    %v1311 = vunpack.c.l.b16 %v1195
    %v1312 = vunpack.c.h.b16 %v1195
    %v1313 = vunpack.c.l.b16 %v1196
    %v1314 = vunpack.c.h.b16 %v1196
    %v1315 = vunpack.c.l.b16 %v1197
    %v1316 = vunpack.c.h.b16 %v1197
    %v1317 = vunpack.c.l.b16 %v1198
    %v1318 = vunpack.c.h.b16 %v1198
    %v1319 = vunpack.c.l.b16 %v1199
    %v1320 = vunpack.c.h.b16 %v1199
    %v1321 = vunpack.c.l.b16 %v1200
    %v1322 = vunpack.c.h.b16 %v1200
    %v1323 = vunpack.c.l.b16 %v1201
    %v1324 = vunpack.c.h.b16 %v1201
    %v1325 = vunpack.c.l.b16 %v1202
    %v1326 = vunpack.c.h.b16 %v1202
    %v1327 = vunpack.c.l.b16 %v1203
    %v1328 = vunpack.c.h.b16 %v1203
    %v1329 = vunpack.c.l.b16 %v1204
    %v1330 = vunpack.c.h.b16 %v1204
    %v1331 = vunpack.c.l.b16 %v1205
    %v1332 = vunpack.c.h.b16 %v1205
    %v1333 = vunpack.c.l.b16 %v1206
    %v1334 = vunpack.c.h.b16 %v1206
    %v1335 = vunpack.c.l.b16 %v1207
    %v1336 = vunpack.c.h.b16 %v1207
    %v1337 = vunpack.c.l.b16 %v1208
    %v1338 = vunpack.c.h.b16 %v1208
    %v1339 = vunpack.c.l.b16 %v1209
    %v1340 = vunpack.c.h.b16 %v1209
    %v1341 = vunpack.c.l.b16 %v1210
    %v1342 = vunpack.c.h.b16 %v1210
    %v1343 = vunpack.c.l.b16 %v1211
    %v1344 = vunpack.c.h.b16 %v1211
    %v1345 = vunpack.c.l.b16 %v1212
    %v1346 = vunpack.c.h.b16 %v1212
    %v1347 = vunpack.c.l.b16 %v1213
    %v1348 = vunpack.c.h.b16 %v1213
    %v1349 = vunpack.c.l.b16 %v1214
    %v1350 = vunpack.c.h.b16 %v1214
    %v1351 = vunpack.c.l.b16 %v1215
    %v1352 = vunpack.c.h.b16 %v1215
    %v1353 = vunpack.c.l.b16 %v1216
    %v1354 = vunpack.c.h.b16 %v1216
    %v1355 = vunpack.c.l.b16 %v1217
    %v1356 = vunpack.c.h.b16 %v1217
    %v1357 = vunpack.c.l.b16 %v1218
    %v1358 = vunpack.c.h.b16 %v1218
    %v1359 = vunpack.c.l.b16 %v1219
    %v1360 = vunpack.c.h.b16 %v1219
    %v1361 = vunpack.c.l.b16 %v1220
    %v1362 = vunpack.c.h.b16 %v1220
    %v1363 = vunpack.c.l.b16 %v1221
    %v1364 = vunpack.c.h.b16 %v1221
    %v1365 = vunpack.c.l.b16 %v1222
    %v1366 = vunpack.c.h.b16 %v1222
    %v1367 = vunpack.c.l.b16 %v1223
    %v1368 = vunpack.c.h.b16 %v1223
    %v1369 = vunpack.c.l.b16 %v1224
    %v1370 = vunpack.c.h.b16 %v1224
    %v1371 = vunpack.c.l.b16 %v1225
    %v1372 = vunpack.c.h.b16 %v1225
    %v1373 = vunpack.c.l.b16 %v1226
    %v1374 = vunpack.c.h.b16 %v1226
    %v1375 = vunpack.c.l.b16 %v1227
    %v1376 = vunpack.c.h.b16 %v1227
    %v1377 = vunpack.c.l.b16 %v1228
    %v1378 = vunpack.c.h.b16 %v1228
    %v1379 = vunpack.c.l.b16 %v1229
    %v1380 = vunpack.c.h.b16 %v1229
    %v1381 = vunpack.c.l.b16 %v1230
    %v1382 = vunpack.c.h.b16 %v1230
    %v1383 = vunpack.c.l.b16 %v1231
    %v1384 = vunpack.c.h.b16 %v1231
    %v1385 = vunpack.c.l.b16 %v1232
    %v1386 = vunpack.c.h.b16 %v1232
    %v1387 = vunpack.c.l.b16 %v1233
    %v1388 = vunpack.c.h.b16 %v1233
    %v1389 = vunpack.c.l.b16 %v1234
    %v1390 = vunpack.c.h.b16 %v1234
    %v1391 = vpack.c.b16 %v1297, %v1295
    %v1392 = vpack.c.b16 %v1298, %v1296
    %v1393 = vpack.c.b16 %v1301, %v1299
    %v1394 = vpack.c.b16 %v1302, %v1300
    %v1395 = vpack.c.b16 %v1305, %v1303
    %v1396 = vpack.c.b16 %v1306, %v1304
    %v1397 = vpack.c.b16 %v1309, %v1307
    %v1398 = vpack.c.b16 %v1310, %v1308
    %v1399 = vpack.c.b16 %v1313, %v1311
    %v1400 = vpack.c.b16 %v1314, %v1312
    %v1401 = vpack.c.b16 %v1317, %v1315
    %v1402 = vpack.c.b16 %v1318, %v1316
    %v1403 = vpack.c.b16 %v1321, %v1319
    %v1404 = vpack.c.b16 %v1322, %v1320
    %v1405 = vpack.c.b16 %v1325, %v1323
    %v1406 = vpack.c.b16 %v1326, %v1324
    %v1407 = vpack.c.b16 %v1329, %v1327
    %v1408 = vpack.c.b16 %v1330, %v1328
    %v1409 = vpack.c.b16 %v1333, %v1331
    %v1410 = vpack.c.b16 %v1334, %v1332
    %v1411 = vpack.c.b16 %v1337, %v1335
    %v1412 = vpack.c.b16 %v1338, %v1336
    %v1413 = vpack.c.b16 %v1341, %v1339
    %v1414 = vpack.c.b16 %v1342, %v1340
    %v1415 = vpack.c.b16 %v1345, %v1343
    %v1416 = vpack.c.b16 %v1346, %v1344
    %v1417 = vpack.c.b16 %v1349, %v1347
    %v1418 = vpack.c.b16 %v1350, %v1348
    %v1419 = vpack.c.b16 %v1353, %v1351
    %v1420 = vpack.c.b16 %v1354, %v1352
    %v1421 = vpack.c.b16 %v1357, %v1355
    %v1422 = vpack.c.b16 %v1358, %v1356
    %v1423 = vpack.c.b16 %v1361, %v1359
    %v1424 = vpack.c.b16 %v1362, %v1360
    %v1425 = vpack.c.b16 %v1365, %v1363
    %v1426 = vpack.c.b16 %v1366, %v1364
    %v1427 = vpack.c.b16 %v1369, %v1367
    %v1428 = vpack.c.b16 %v1370, %v1368
    %v1429 = vpack.c.b16 %v1373, %v1371
    %v1430 = vpack.c.b16 %v1374, %v1372
    %v1431 = vpack.c.b16 %v1377, %v1375
    %v1432 = vpack.c.b16 %v1378, %v1376
    %v1433 = vpack.c.b16 %v1381, %v1379
    %v1434 = vpack.c.b16 %v1382, %v1380
    %v1435 = vpack.c.b16 %v1385, %v1383
    %v1436 = vpack.c.b16 %v1386, %v1384
    %v1437 = vpack.c.b16 %v1389, %v1387
    %v1438 = vpack.c.b16 %v1390, %v1388
    %1487 = vmatprep.subr.bf16.mxu0 %v1392
    %1488 = vmatpush1.bf16.msra.mxu0 %v1391
    %1489 = vmatprep.subr.bf16.mxu0 %v1394
    %1490 = vmatpush1.bf16.msra.mxu0 %v1393
    %1491 = vmatprep.subr.bf16.mxu0 %v1396
    %1492 = vmatpush1.bf16.msra.mxu0 %v1395
    %1493 = vmatprep.subr.bf16.mxu0 %v1398
    %1494 = vmatpush1.bf16.msra.mxu0 %v1397
    %1495 = vmatprep.subr.bf16.mxu0 %v1400
    %1496 = vmatpush1.bf16.msra.mxu0 %v1399
    %1497 = vmatprep.subr.bf16.mxu0 %v1402
    %1498 = vmatpush1.bf16.msra.mxu0 %v1401
    %1499 = vmatprep.subr.bf16.mxu0 %v1404
    %1500 = vmatpush1.bf16.msra.mxu0 %v1403
    %1501 = vmatprep.subr.bf16.mxu0 %v1406
    %1502 = vmatpush1.bf16.msra.mxu0 %v1405
    %1503 = vmatprep.subr.bf16.mxu0 %v1408
    %1504 = vmatpush1.bf16.msra.mxu0 %v1407
    %1505 = vmatprep.subr.bf16.mxu0 %v1410
    %1506 = vmatpush1.bf16.msra.mxu0 %v1409
    %1507 = vmatprep.subr.bf16.mxu0 %v1412
    %1508 = vmatpush1.bf16.msra.mxu0 %v1411
    %1509 = vmatprep.subr.bf16.mxu0 %v1414
    %1510 = vmatpush1.bf16.msra.mxu0 %v1413
    %1511 = vmatprep.subr.bf16.mxu0 %v1416
    %1512 = vmatpush1.bf16.msra.mxu0 %v1415
    %1513 = vmatprep.subr.bf16.mxu0 %v1418
    %1514 = vmatpush1.bf16.msra.mxu0 %v1417
    %1515 = vmatprep.subr.bf16.mxu0 %v1420
    %1516 = vmatpush1.bf16.msra.mxu0 %v1419
    %1517 = vmatprep.subr.bf16.mxu0 %v1422
    %1518 = vmatpush1.bf16.msra.mxu0 %v1421
    %1519 = vmatprep.mubr.bf16.mxu0 %v1185
    %1520 = vmatmul.mubr.bf16.gmra.mrb[0].mxu0 %v1184
    %v1521 = vpop.f32.mrb[0].mxu0
    %v1522 = vadd.f32 %v1240, %v1521
    %v1523 = vpop.f32.mrb[0].mxu0
    %v1524 = vadd.f32 %v1244, %v1523
    %v1525 = vpop.f32.mrb[0].mxu0
    %v1526 = vpop.f32.mrb[0].mxu0
    %1527 = vdwg.mxu0
    %1528 = vmatprep.subr.bf16.mxu0 %v1424
    %1529 = vmatpush1.bf16.msra.mxu0 %v1423
    %1530 = vmatprep.subr.bf16.mxu0 %v1426
    %1531 = vmatpush1.bf16.msra.mxu0 %v1425
    %1532 = vmatprep.subr.bf16.mxu0 %v1428
    %1533 = vmatpush1.bf16.msra.mxu0 %v1427
    %1534 = vmatprep.subr.bf16.mxu0 %v1430
    %1535 = vmatpush1.bf16.msra.mxu0 %v1429
    %1536 = vmatprep.subr.bf16.mxu0 %v1432
    %1537 = vmatpush1.bf16.msra.mxu0 %v1431
    %1538 = vmatprep.subr.bf16.mxu0 %v1434
    %1539 = vmatpush1.bf16.msra.mxu0 %v1433
    %1540 = vmatprep.subr.bf16.mxu0 %v1436
    %1541 = vmatpush1.bf16.msra.mxu0 %v1435
    %1542 = vmatprep.subr.bf16.mxu0 %v1438
    %1543 = vmatpush1.bf16.msra.mxu0 %v1437
    %1544 = vmatprep.subr.bf16.mxu0 0
    %1545 = vmatpush1.bf16.msra.mxu0 0
    %1546 = vmatprep.subr.bf16.mxu0 0
    %1547 = vmatpush1.bf16.msra.mxu0 0
    %1548 = vmatprep.subr.bf16.mxu0 0
    %1549 = vmatpush1.bf16.msra.mxu0 0
    %1550 = vmatprep.subr.bf16.mxu0 0
    %1551 = vmatpush1.bf16.msra.mxu0 0
    %1552 = vmatprep.subr.bf16.mxu0 0
    %1553 = vmatpush1.bf16.msra.mxu0 0
    %1554 = vmatprep.subr.bf16.mxu0 0
    %1555 = vmatpush1.bf16.msra.mxu0 0
    %1556 = vmatprep.subr.bf16.mxu0 0
    %1557 = vmatpush1.bf16.msra.mxu0 0
    %1558 = vmatprep.subr.bf16.mxu0 0
    %1559 = vmatpush1.bf16.msra.mxu0 0
    %1560 = vmatprep.mubr.bf16.mxu0 0
    %1561 = vmatmul.mubr.bf16.gmra.mrb[0].mxu0 %v1186
    %v1562 = vpop.f32.mrb[0].mxu0
    %v1563 = vadd.f32 %v1522, %v1562
    %v1564 = vpop.f32.mrb[0].mxu0
    %v1565 = vadd.f32 %v1524, %v1564
    %v1566 = vpop.f32.mrb[0].mxu0
    %v1567 = vpop.f32.mrb[0].mxu0
    %1568 = vdwg.mxu0
    %v1569 = vmax.f32 %v1563, 0.0
    %v1570 = vmax.f32 %v1565, 0.0
    %v1571 = vpack.c.bf16 %v1569, %v1569
    %v1572 = vpack.c.bf16 %v1570, %v1570
    %v1573 = vld [vmem:[#allocation8] sm:$0xf]
    %v1574 = vld [vmem:[#allocation8 + $0x4] sm:$0xf]
    %v1575 = vld [vmem:[#allocation8 + $0x8] sm:$0xf]
    %v1576 = vld [vmem:[#allocation8 + $0xc] sm:$0xf]
    %v1577 = vld [vmem:[#allocation8 + $0x10] sm:$0xf]
    %v1578 = vld [vmem:[#allocation8 + $0x14] sm:$0xf]
    %v1579 = vld [vmem:[#allocation8 + $0x18] sm:$0xf]
    %v1580 = vld [vmem:[#allocation8 + $0x1c] sm:$0xf]
    %v1581 = vld [vmem:[#allocation8 + $0x20] sm:$0xf]
    %v1582 = vld [vmem:[#allocation8 + $0x24] sm:$0xf]
    %v1583 = vld [vmem:[#allocation8 + $0x28] sm:$0xf]
    %v1584 = vld [vmem:[#allocation8 + $0x2c] sm:$0xf]
    %v1585 = vld [vmem:[#allocation8 + $0x30] sm:$0xf]
    %v1586 = vld [vmem:[#allocation8 + $0x34] sm:$0xf]
    %v1587 = vld [vmem:[#allocation8 + $0x38] sm:$0xf]
    %v1588 = vld [vmem:[#allocation8 + $0x3c] sm:$0xf]
    %v1589 = vld [vmem:[#allocation8 + $0x40] sm:$0xf]
    %v1590 = vld [vmem:[#allocation8 + $0x44] sm:$0xf]
    %v1591 = vld [vmem:[#allocation8 + $0x48] sm:$0xf]
    %v1592 = vld [vmem:[#allocation8 + $0x4c] sm:$0xf]
    %v1593 = vld [vmem:[#allocation8 + $0x50] sm:$0xf]
    %v1594 = vld [vmem:[#allocation8 + $0x54] sm:$0xf]
    %v1595 = vld [vmem:[#allocation8 + $0x58] sm:$0xf]
    %v1596 = vld [vmem:[#allocation8 + $0x5c] sm:$0xf]
    %v1597 = vld [vmem:[#allocation8 + $0x60] sm:$0xf]
    %v1598 = vld [vmem:[#allocation8 + $0x64] sm:$0xf]
    %v1599 = vld [vmem:[#allocation8 + $0x68] sm:$0xf]
    %v1600 = vld [vmem:[#allocation8 + $0x6c] sm:$0xf]
    %v1601 = vld [vmem:[#allocation8 + $0x70] sm:$0xf]
    %v1602 = vld [vmem:[#allocation8 + $0x74] sm:$0xf]
    %v1603 = vld [vmem:[#allocation8 + $0x78] sm:$0xf]
    %v1604 = vld [vmem:[#allocation8 + $0x7c] sm:$0xf]
    %v1605 = vld [vmem:[%s6] sm:$0x1]
    %v1607 = vlaneseq
    %v1608 = vshrl.u32 %v1607, 7
    %v1609 = vsub.s32 0, %v1608
    %v1610 = vrot.slane %v1605, %v1609
    %v1644 = vunpack.c.l.b16 %v1573
    %v1645 = vunpack.c.l.b16 %v1574
    %v1646 = vunpack.c.l.b16 %v1575
    %v1647 = vunpack.c.l.b16 %v1576
    %v1648 = vunpack.c.l.b16 %v1577
    %v1649 = vunpack.c.l.b16 %v1578
    %v1650 = vunpack.c.l.b16 %v1579
    %v1651 = vunpack.c.l.b16 %v1580
    %v1652 = vunpack.c.l.b16 %v1581
    %v1653 = vunpack.c.l.b16 %v1582
    %v1654 = vunpack.c.l.b16 %v1583
    %v1655 = vunpack.c.l.b16 %v1584
    %v1656 = vunpack.c.l.b16 %v1585
    %v1657 = vunpack.c.l.b16 %v1586
    %v1658 = vunpack.c.l.b16 %v1587
    %v1659 = vunpack.c.l.b16 %v1588
    %v1660 = vunpack.c.l.b16 %v1589
    %v1661 = vunpack.c.l.b16 %v1590
    %v1662 = vunpack.c.l.b16 %v1591
    %v1663 = vunpack.c.l.b16 %v1592
    %v1664 = vunpack.c.l.b16 %v1593
    %v1665 = vunpack.c.l.b16 %v1594
    %v1666 = vunpack.c.l.b16 %v1595
    %v1667 = vunpack.c.l.b16 %v1596
    %v1668 = vunpack.c.l.b16 %v1597
    %v1669 = vunpack.c.l.b16 %v1598
    %v1670 = vunpack.c.l.b16 %v1599
    %v1671 = vunpack.c.l.b16 %v1600
    %v1672 = vunpack.c.l.b16 %v1601
    %v1673 = vunpack.c.l.b16 %v1602
    %v1674 = vunpack.c.l.b16 %v1603
    %v1675 = vunpack.c.l.b16 %v1604
    %v1676 = vpack.c.b16 %v1645, %v1644
    %v1677 = vpack.c.b16 %v1647, %v1646
    %v1678 = vpack.c.b16 %v1649, %v1648
    %v1679 = vpack.c.b16 %v1651, %v1650
    %v1680 = vpack.c.b16 %v1653, %v1652
    %v1681 = vpack.c.b16 %v1655, %v1654
    %v1682 = vpack.c.b16 %v1657, %v1656
    %v1683 = vpack.c.b16 %v1659, %v1658
    %v1684 = vpack.c.b16 %v1661, %v1660
    %v1685 = vpack.c.b16 %v1663, %v1662
    %v1686 = vpack.c.b16 %v1665, %v1664
    %v1687 = vpack.c.b16 %v1667, %v1666
    %v1688 = vpack.c.b16 %v1669, %v1668
    %v1689 = vpack.c.b16 %v1671, %v1670
    %v1690 = vpack.c.b16 %v1673, %v1672
    %v1691 = vpack.c.b16 %v1675, %v1674
    %1708 = vmatprep.subr.bf16.mxu0 0
    %1709 = vmatpush1.bf16.msra.mxu0 %v1676
    %1710 = vmatprep.subr.bf16.mxu0 0
    %1711 = vmatpush1.bf16.msra.mxu0 %v1677
    %1712 = vmatprep.subr.bf16.mxu0 0
    %1713 = vmatpush1.bf16.msra.mxu0 %v1678
    %1714 = vmatprep.subr.bf16.mxu0 0
    %1715 = vmatpush1.bf16.msra.mxu0 %v1679
    %1716 = vmatprep.subr.bf16.mxu0 0
    %1717 = vmatpush1.bf16.msra.mxu0 %v1680
    %1718 = vmatprep.subr.bf16.mxu0 0
    %1719 = vmatpush1.bf16.msra.mxu0 %v1681
    %1720 = vmatprep.subr.bf16.mxu0 0
    %1721 = vmatpush1.bf16.msra.mxu0 %v1682
    %1722 = vmatprep.subr.bf16.mxu0 0
    %1723 = vmatpush1.bf16.msra.mxu0 %v1683
    %1724 = vmatprep.subr.bf16.mxu0 0
    %1725 = vmatpush1.bf16.msra.mxu0 %v1684
    %1726 = vmatprep.subr.bf16.mxu0 0
    %1727 = vmatpush1.bf16.msra.mxu0 %v1685
    %1728 = vmatprep.subr.bf16.mxu0 0
    %1729 = vmatpush1.bf16.msra.mxu0 %v1686
    %1730 = vmatprep.subr.bf16.mxu0 0
    %1731 = vmatpush1.bf16.msra.mxu0 %v1687
    %1732 = vmatprep.subr.bf16.mxu0 0
    %1733 = vmatpush1.bf16.msra.mxu0 %v1688
    %1734 = vmatprep.subr.bf16.mxu0 0
    %1735 = vmatpush1.bf16.msra.mxu0 %v1689
    %1736 = vmatprep.subr.bf16.mxu0 0
    %1737 = vmatpush1.bf16.msra.mxu0 %v1690
    %1738 = vmatprep.subr.bf16.mxu0 0
    %1739 = vmatpush1.bf16.msra.mxu0 %v1691
    %1740 = vmatprep.mubr.bf16.mxu0 %v1572
    %1741 = vmatmul.mubr.bf16.gmra.mrb[0].mxu0 %v1571
    %v1742 = vpop.f32.mrb[0].mxu0
    %v1743 = vadd.f32 %v1610, %v1742
    %v1744 = vpop.f32.mrb[0].mxu0
    %v1745 = vpop.f32.mrb[0].mxu0
    %v1746 = vpop.f32.mrb[0].mxu0
    %1747 = vdwg.mxu0
    %v1748 = vmax.f32 %v1743, 0.0
    %v1749 = vpack.c.bf16 %v1748, %v1748
    %v1750 = vld [vmem:[#allocation10] sm:$0xf]
    %v1751 = vld [vmem:[#allocation10 + $0x4] sm:$0xf]
    %v1752 = vld [vmem:[#allocation10 + $0x8] sm:$0xf]
    %v1753 = vld [vmem:[#allocation10 + $0xc] sm:$0xf]
    %v1754 = vld [vmem:[#allocation10 + $0x10] sm:$0xf]
    %v1755 = vld [vmem:[#allocation10 + $0x14] sm:$0xf]
    %v1756 = vld [vmem:[#allocation10 + $0x18] sm:$0xf]
    %v1757 = vld [vmem:[#allocation10 + $0x1c] sm:$0xf]
    %v1758 = vld [vmem:[#allocation10 + $0x20] sm:$0xf]
    %v1759 = vld [vmem:[#allocation10 + $0x24] sm:$0xf]
    %v1760 = vld [vmem:[#allocation10 + $0x28] sm:$0xf]
    %v1761 = vld [vmem:[#allocation10 + $0x2c] sm:$0xf]
    %v1762 = vld [vmem:[#allocation10 + $0x30] sm:$0xf]
    %v1763 = vld [vmem:[#allocation10 + $0x34] sm:$0xf]
    %v1764 = vld [vmem:[#allocation10 + $0x38] sm:$0xf]
    %v1765 = vld [vmem:[#allocation10 + $0x3c] sm:$0xf]
    %v1766 = vld [vmem:[%s8] sm:$0x1]
    %v1768 = vlaneseq
    %v1769 = vshrl.u32 %v1768, 7
    %v1770 = vsub.s32 0, %v1769
    %v1771 = vrot.slane %v1766, %v1770
    %v1789 = vunpack.c.l.b16 %v1750
    %v1790 = vunpack.c.l.b16 %v1751
    %v1791 = vunpack.c.l.b16 %v1752
    %v1792 = vunpack.c.l.b16 %v1753
    %v1793 = vunpack.c.l.b16 %v1754
    %v1794 = vunpack.c.l.b16 %v1755
    %v1795 = vunpack.c.l.b16 %v1756
    %v1796 = vunpack.c.l.b16 %v1757
    %v1797 = vunpack.c.l.b16 %v1758
    %v1798 = vunpack.c.l.b16 %v1759
    %v1799 = vunpack.c.l.b16 %v1760
    %v1800 = vunpack.c.l.b16 %v1761
    %v1801 = vunpack.c.l.b16 %v1762
    %v1802 = vunpack.c.l.b16 %v1763
    %v1803 = vunpack.c.l.b16 %v1764
    %v1804 = vunpack.c.l.b16 %v1765
    %v1805 = vpack.c.b16 %v1790, %v1789
    %v1806 = vpack.c.b16 %v1792, %v1791
    %v1807 = vpack.c.b16 %v1794, %v1793
    %v1808 = vpack.c.b16 %v1796, %v1795
    %v1809 = vpack.c.b16 %v1798, %v1797
    %v1810 = vpack.c.b16 %v1800, %v1799
    %v1811 = vpack.c.b16 %v1802, %v1801
    %v1812 = vpack.c.b16 %v1804, %v1803
    %1821 = vmatprep.subr.bf16.mxu0 0
    %1822 = vmatpush1.bf16.msra.mxu0 %v1805
    %1823 = vmatprep.subr.bf16.mxu0 0
    %1824 = vmatpush1.bf16.msra.mxu0 %v1806
    %1825 = vmatprep.subr.bf16.mxu0 0
    %1826 = vmatpush1.bf16.msra.mxu0 %v1807
    %1827 = vmatprep.subr.bf16.mxu0 0
    %1828 = vmatpush1.bf16.msra.mxu0 %v1808
    %1829 = vmatprep.subr.bf16.mxu0 0
    %1830 = vmatpush1.bf16.msra.mxu0 %v1809
    %1831 = vmatprep.subr.bf16.mxu0 0
    %1832 = vmatpush1.bf16.msra.mxu0 %v1810
    %1833 = vmatprep.subr.bf16.mxu0 0
    %1834 = vmatpush1.bf16.msra.mxu0 %v1811
    %1835 = vmatprep.subr.bf16.mxu0 0
    %1836 = vmatpush1.bf16.msra.mxu0 %v1812
    %1837 = vmatprep.subr.bf16.mxu0 0
    %1838 = vmatpush1.bf16.msra.mxu0 0
    %1839 = vmatprep.subr.bf16.mxu0 0
    %1840 = vmatpush1.bf16.msra.mxu0 0
    %1841 = vmatprep.subr.bf16.mxu0 0
    %1842 = vmatpush1.bf16.msra.mxu0 0
    %1843 = vmatprep.subr.bf16.mxu0 0
    %1844 = vmatpush1.bf16.msra.mxu0 0
    %1845 = vmatprep.subr.bf16.mxu0 0
    %1846 = vmatpush1.bf16.msra.mxu0 0
    %1847 = vmatprep.subr.bf16.mxu0 0
    %1848 = vmatpush1.bf16.msra.mxu0 0
    %1849 = vmatprep.subr.bf16.mxu0 0
    %1850 = vmatpush1.bf16.msra.mxu0 0
    %1851 = vmatprep.subr.bf16.mxu0 0
    %1852 = vmatpush1.bf16.msra.mxu0 0
    %1853 = vmatprep.mubr.bf16.mxu0 0
    %1854 = vmatmul.mubr.bf16.gmra.mrb[0].mxu0 %v1749
    %v1855 = vpop.f32.mrb[0].mxu0
    %v1856 = vadd.f32 %v1771, %v1855
    %v1857 = vpop.f32.mrb[0].mxu0
    %v1858 = vpop.f32.mrb[0].mxu0
    %v1859 = vpop.f32.mrb[0].mxu0
    %1860 = vdwg.mxu0
    %v1861 = vmax.f32 %v1856, 0.0
    %1862 = vst [vmem:[#allocation11] sm:$0xff] %v1861
    // Predicated region
    $region58: #{tpu_custom_call.1} parent=1 // pred_check
      _
    $region59: #{tpu_custom_call.1} parent=1 // pred_check_branch
      %1864 = sbr.rel (0) target = $region61
    $region60: #{tpu_custom_call.1} parent=1 // pred_region
      %s1866 = ssub.s32 128, 128
      %1867 = vsyncadd [#allocation4], %s1866
      %s1869 = sshll.u32 [#allocation11], 4
      %s1870 = int_to_ptr.vmem [resolvable:$true] %s1869
      %1872 = dma.vmem_to_hbm [thread:$0]  %s1870, 128, %s9, [#allocation4]
    $region61: #{tpu_custom_call.1} parent=1 // pred_fallthru
      _
    // Predicated region
    $region62: #{tpu_custom_call.1} parent=1 // pred_check
      _
    $region63: #{tpu_custom_call.1} parent=1 // pred_check_branch
      %1874 = sbr.rel (0) target = $region65
    $region64: #{tpu_custom_call.1} parent=1 // pred_region
      %1875 = dma.done [#allocation4], 128
    $region65: #{tpu_custom_call.1} parent=1 // pred_fallthru
      _
    %1876 = vsyncpa [#allocation3], 1
    %1877 = vsyncpa [#allocation6], 1
    %1878 = vsyncpa [#allocation9], 1
    %1879 = vsyncpa [#allocation4], 1

</llo_original>
